<compile_context>
chip_gen: v7x
topology: tpu7x:2x2x1
jax: 0.10.0
libtpu: 0.0.40
codegen_flags: <defaults>
</compile_context>

<pallas_src>
import jax
import jax.numpy as jnp
from jax import lax
from jax.experimental import pallas as pl
from jax.experimental.pallas import tpu as pltpu

# Model sizes (consistent with the module's constants).
B = 2          # batch
T = 8          # sequence length
I = 41         # inputSize
I_PAD = 48     # inputSize padded to a sublane multiple
H = 32         # hiddenSize
L = 2          # layers
O = 16         # outputSize


def _lstm_step(gin, h, c, w_hh):
    """One LSTM cell step (single-sigmoid formulation).

    gin  : (B, 4H) precomputed x_t @ W_ih_scaled + (b_ih + b_hh)_scaled
    h, c : (B, H)
    w_hh : (H, 4H) with the g-gate columns pre-scaled by 2 in the wrapper.
    PyTorch gate order: [i, f, g, o].  tanh(z) = 2*sigmoid(2z) - 1.
    """
    gates = gin + jnp.dot(h, w_hh, preferred_element_type=jnp.float32)
    sig = jax.nn.sigmoid(gates)                       # single EUP pass over (B, 4H)
    i = sig[:, 0 * H:1 * H]
    f = sig[:, 1 * H:2 * H]
    g = 2.0 * sig[:, 2 * H:3 * H] - 1.0               # == tanh(original z_g)
    o = sig[:, 3 * H:4 * H]
    c_new = f * c + i * g
    h_new = o * jnp.tanh(c_new)
    return h_new, c_new


def decoder_kernel(
    x_ref,          # (T*B, I_PAD)  time-major, flattened, zero-padded input
    h0_ref,         # (L, B, H)     initial hidden
    c0_ref,         # (L, B, H)     initial cell
    w_ih0_ref,      # (I_PAD, 4H)   g-cols pre-scaled
    w_hh0_ref,      # (H, 4H)       g-cols pre-scaled
    b0_ref,         # (1, 4H)       (b_ih0 + b_hh0), g slice pre-scaled
    w_ih1_ref,      # (H, 4H)       g-cols pre-scaled
    w_hh1_ref,      # (H, 4H)       g-cols pre-scaled
    b1_ref,         # (1, 4H)       (b_ih1 + b_hh1), g slice pre-scaled
    w_fc_ref,       # (H, O)
    b_fc_ref,       # (1, O)
    pred_ref,       # (B, T*O)      lane-dense output
    hN_ref,         # (L, B, H)     final hidden
    cN_ref,         # (L, B, H)     final cell
):
    # ---- layer 0: batched input projection, biases folded in (off the chain) ----
    gin0 = (
        jnp.dot(x_ref[...], w_ih0_ref[...], preferred_element_type=jnp.float32)
        + b0_ref[...]
    )                                                  # (T*B, 4H)

    # Hoist all weight/bias reads out of the unrolled recurrence.
    w_hh0 = w_hh0_ref[...]
    w_ih1 = w_ih1_ref[...]
    w_hh1 = w_hh1_ref[...]
    b1 = b1_ref[...]
    w_fc = w_fc_ref[...]
    b_fc = b_fc_ref[...]

    h_l0 = h0_ref[0]
    c_l0 = c0_ref[0]
    h_l1 = h0_ref[1]
    c_l1 = c0_ref[1]

    ys = []
    # Wavefront over the two layers: layer-1 step t issues right after layer-0
    # produces h0_t; T is small and static so full unroll lets the scheduler
    # overlap layer-0 step t+1 with layer-1 step t.
    for t in range(T):
        h_l0, c_l0 = _lstm_step(gin0[t * B:(t + 1) * B, :], h_l0, c_l0, w_hh0)
        gin1_t = (
            jnp.dot(h_l0, w_ih1, preferred_element_type=jnp.float32) + b1
        )                                              # (B, 4H)
        h_l1, c_l1 = _lstm_step(gin1_t, h_l1, c_l1, w_hh1)
        ys.append(
            jnp.dot(h_l1, w_fc, preferred_element_type=jnp.float32) + b_fc
        )                                              # (B, O)

    hN_ref[0] = h_l0
    cN_ref[0] = c_l0
    hN_ref[1] = h_l1
    cN_ref[1] = c_l1

    # Single lane-dense (B, T*O) = (2, 128) store.
    pred_ref[...] = jnp.concatenate(ys, axis=1).astype(pred_ref.dtype)


@jax.jit
def decoder_forward(x, h0, c0, params):
    """x: (B, T, I), h0/c0: (L, B, H).  Returns (pred (B,T,O), (hN, cN))."""
    (w_ih0, w_hh0, b_ih0, b_hh0,
     w_ih1, w_hh1, b_ih1, b_hh1,
     w_fc, b_fc) = params

    # Time-major, flattened to (T*B, I), zero-padded to a sublane-aligned contraction dim.
    x_flat = jnp.transpose(x, (1, 0, 2)).reshape(T * B, I)
    x_pad = jnp.pad(x_flat, ((0, 0), (0, I_PAD - I)))

    # Fold the tanh(z)=2*sigmoid(2z)-1 trick into the g-gate columns (free in the wrapper).
    gate_scale = jnp.ones((4 * H,), jnp.float32).at[2 * H:3 * H].set(2.0)

    w_ih0_t = jnp.pad(w_ih0.T, ((0, I_PAD - I), (0, 0))) * gate_scale[None, :]  # (I_PAD, 4H)
    w_hh0_t = w_hh0.T * gate_scale[None, :]                                     # (H, 4H)
    b0 = ((b_ih0 + b_hh0) * gate_scale).reshape(1, 4 * H)

    w_ih1_t = w_ih1.T * gate_scale[None, :]                                     # (H, 4H)
    w_hh1_t = w_hh1.T * gate_scale[None, :]                                     # (H, 4H)
    b1 = ((b_ih1 + b_hh1) * gate_scale).reshape(1, 4 * H)

    w_fc_t = w_fc.T                                                             # (H, O)
    bfc = b_fc.reshape(1, O)

    vm = pl.BlockSpec(memory_space=pltpu.MemorySpace.VMEM)

    cost = pl.CostEstimate(
        flops=500_000,            # batched layer-0 projection + 16 cell matmuls + 8 FC
        transcendentals=6_000,    # one sigmoid(B,4H) + tanh(B,H) per cell step
        bytes_accessed=131_072,
    )

    pred_lane, hN, cN = pl.pallas_call(
        decoder_kernel,
        out_shape=(
            jax.ShapeDtypeStruct((B, T * O), jnp.float32),
            jax.ShapeDtypeStruct((L, B, H), jnp.float32),
            jax.ShapeDtypeStruct((L, B, H), jnp.float32),
        ),
        in_specs=[vm] * 11,
        out_specs=(vm, vm, vm),
        compiler_params=pltpu.CompilerParams(vmem_limit_bytes=4 * 1024 * 1024),
        cost_estimate=cost,
    )(
        x_pad, h0, c0,
        w_ih0_t, w_hh0_t, b0,
        w_ih1_t, w_hh1_t, b1,
        w_fc_t, bfc,
    )

    pred = pred_lane.reshape(B, T, O)
    return pred, (hN, cN)


def decoder_reference(x, h0, c0, params):
    """Pure-JAX reference (eval-mode nn.LSTM + nn.Linear)."""
    (w_ih0, w_hh0, b_ih0, b_hh0,
     w_ih1, w_hh1, b_ih1, b_hh1,
     w_fc, b_fc) = params

    def cell(xt, h, c, w_ih, w_hh, b_ih, b_hh):
        gates = xt @ w_ih.T + b_ih + h @ w_hh.T + b_hh
        i, f, g, o = jnp.split(gates, 4, axis=-1)
        i, f, o = jax.nn.sigmoid(i), jax.nn.sigmoid(f), jax.nn.sigmoid(o)
        g = jnp.tanh(g)
        c_new = f * c + i * g
        h_new = o * jnp.tanh(c_new)
        return h_new, c_new

    x_tm = jnp.transpose(x, (1, 0, 2))  # (T, B, I)

    def scan_layer(seq, h_init, c_init, w_ih, w_hh, b_ih, b_hh):
        def step(carry, xt):
            h, c = carry
            h, c = cell(xt, h, c, w_ih, w_hh, b_ih, b_hh)
            return (h, c), h
        (hN, cN), outs = lax.scan(step, (h_init, c_init), seq)
        return outs, hN, cN

    seq0, h0f, c0f = scan_layer(x_tm, h0[0], c0[0], w_ih0, w_hh0, b_ih0, b_hh0)
    seq1, h1f, c1f = scan_layer(seq0, h0[1], c0[1], w_ih1, w_hh1, b_ih1, b_hh1)
    pred = jnp.transpose(seq1 @ w_fc.T + b_fc, (1, 0, 2))
    return pred, (jnp.stack([h0f, h1f]), jnp.stack([c0f, c1f]))


def init_params(key):
    """Deterministic init mirroring PyTorch's U(-1/sqrt(H), 1/sqrt(H))."""
    k = 1.0 / jnp.sqrt(jnp.float32(H))
    keys = jax.random.split(key, 10)
    u = lambda kk, shape: jax.random.uniform(kk, shape, jnp.float32, -k, k)
    return (
        u(keys[0], (4 * H, I)),   # w_ih0
        u(keys[1], (4 * H, H)),   # w_hh0
        u(keys[2], (4 * H,)),     # b_ih0
        u(keys[3], (4 * H,)),     # b_hh0
        u(keys[4], (4 * H, H)),   # w_ih1
        u(keys[5], (4 * H, H)),   # w_hh1
        u(keys[6], (4 * H,)),     # b_ih1
        u(keys[7], (4 * H,)),     # b_hh1
        u(keys[8], (O, H)),       # w_fc
        u(keys[9], (O,)),         # b_fc
    )


if __name__ == "__main__":
    root = jax.random.PRNGKey(0)
    kp, kx, kh, kc = jax.random.split(root, 4)

    params = init_params(kp)
    x = jax.random.normal(kx, (B, T, I), jnp.float32)
    h0 = jax.random.normal(kh, (L, B, H), jnp.float32)
    c0 = jax.random.normal(kc, (L, B, H), jnp.float32)

    pred, (hN, cN) = decoder_forward(x, h0, c0, params)
    jax.block_until_ready((pred, hN, cN))

    pred_r, (hN_r, cN_r) = decoder_reference(x, h0, c0, params)
    assert pred.shape == (B, T, O) and hN.shape == (L, B, H) and cN.shape == (L, B, H)
    assert jnp.allclose(pred, pred_r, atol=1e-4, rtol=1e-4)
    assert jnp.allclose(hN, hN_r, atol=1e-4, rtol=1e-4)
    assert jnp.allclose(cN, cN_r, atol=1e-4, rtol=1e-4)

    print("KERNEL_OK")
</pallas_src>

<mosaic_0001>
module attributes {stable_mosaic.version = 11 : i64} {
  func.func @decoder_kernel(%arg0: memref<16x48xf32, #tpu.memory_space<vmem>>, %arg1: memref<2x2x32xf32, #tpu.memory_space<vmem>>, %arg2: memref<2x2x32xf32, #tpu.memory_space<vmem>>, %arg3: memref<48x128xf32, #tpu.memory_space<vmem>>, %arg4: memref<32x128xf32, #tpu.memory_space<vmem>>, %arg5: memref<1x128xf32, #tpu.memory_space<vmem>>, %arg6: memref<32x128xf32, #tpu.memory_space<vmem>>, %arg7: memref<32x128xf32, #tpu.memory_space<vmem>>, %arg8: memref<1x128xf32, #tpu.memory_space<vmem>>, %arg9: memref<32x16xf32, #tpu.memory_space<vmem>>, %arg10: memref<1x16xf32, #tpu.memory_space<vmem>>, %arg11: memref<2x128xf32, #tpu.memory_space<vmem>>, %arg12: memref<2x2x32xf32, #tpu.memory_space<vmem>>, %arg13: memref<2x2x32xf32, #tpu.memory_space<vmem>>) attributes {dimension_semantics = [], scalar_prefetch = 0 : i64, scratch_operands = 0 : i64, tpu.core_type = #tpu.core_type<tc>} {
    %c0 = arith.constant 0 : index
    %c0_0 = arith.constant 0 : index
    %0 = vector.load %arg0[%c0, %c0_0] : memref<16x48xf32, #tpu.memory_space<vmem>>, vector<16x48xf32>
    %c0_1 = arith.constant 0 : index
    %c0_2 = arith.constant 0 : index
    %1 = vector.load %arg3[%c0_1, %c0_2] : memref<48x128xf32, #tpu.memory_space<vmem>>, vector<48x128xf32>
    %cst = arith.constant dense<0.000000e+00> : vector<16x128xf32>
    %2 = tpu.matmul %0, %1, %cst {dimension_numbers = #tpu.dot_dimension_numbers<[1], [0], [0], [1], [0, 0, 1, 1], [], []>} : vector<16x48xf32>, vector<48x128xf32>, vector<16x128xf32> -> vector<16x128xf32>
    %c0_3 = arith.constant 0 : index
    %c0_4 = arith.constant 0 : index
    %3 = vector.load %arg5[%c0_3, %c0_4] : memref<1x128xf32, #tpu.memory_space<vmem>>, vector<1x128xf32>
    %4 = vector.broadcast %3 : vector<1x128xf32> to vector<16x128xf32>
    %5 = arith.addf %2, %4 : vector<16x128xf32>
    %c0_5 = arith.constant 0 : index
    %c0_6 = arith.constant 0 : index
    %6 = vector.load %arg4[%c0_5, %c0_6] : memref<32x128xf32, #tpu.memory_space<vmem>>, vector<32x128xf32>
    %c0_7 = arith.constant 0 : index
    %c0_8 = arith.constant 0 : index
    %7 = vector.load %arg6[%c0_7, %c0_8] : memref<32x128xf32, #tpu.memory_space<vmem>>, vector<32x128xf32>
    %c0_9 = arith.constant 0 : index
    %c0_10 = arith.constant 0 : index
    %8 = vector.load %arg7[%c0_9, %c0_10] : memref<32x128xf32, #tpu.memory_space<vmem>>, vector<32x128xf32>
    %c0_11 = arith.constant 0 : index
    %c0_12 = arith.constant 0 : index
    %9 = vector.load %arg8[%c0_11, %c0_12] : memref<1x128xf32, #tpu.memory_space<vmem>>, vector<1x128xf32>
    %c0_13 = arith.constant 0 : index
    %c0_14 = arith.constant 0 : index
    %10 = vector.load %arg9[%c0_13, %c0_14] : memref<32x16xf32, #tpu.memory_space<vmem>>, vector<32x16xf32>
    %c0_15 = arith.constant 0 : index
    %c0_16 = arith.constant 0 : index
    %11 = vector.load %arg10[%c0_15, %c0_16] : memref<1x16xf32, #tpu.memory_space<vmem>>, vector<1x16xf32>
    %c0_17 = arith.constant 0 : index
    %c0_18 = arith.constant 0 : index
    %c0_19 = arith.constant 0 : index
    %12 = vector.load %arg1[%c0_17, %c0_18, %c0_19] : memref<2x2x32xf32, #tpu.memory_space<vmem>>, vector<1x2x32xf32>
    %13 = vector.shape_cast %12 : vector<1x2x32xf32> to vector<2x32xf32>
    %c0_20 = arith.constant 0 : index
    %c0_21 = arith.constant 0 : index
    %c0_22 = arith.constant 0 : index
    %14 = vector.load %arg2[%c0_20, %c0_21, %c0_22] : memref<2x2x32xf32, #tpu.memory_space<vmem>>, vector<1x2x32xf32>
    %15 = vector.shape_cast %14 : vector<1x2x32xf32> to vector<2x32xf32>
    %c1 = arith.constant 1 : index
    %c0_23 = arith.constant 0 : index
    %c0_24 = arith.constant 0 : index
    %16 = vector.load %arg1[%c1, %c0_23, %c0_24] : memref<2x2x32xf32, #tpu.memory_space<vmem>>, vector<1x2x32xf32>
    %17 = vector.shape_cast %16 : vector<1x2x32xf32> to vector<2x32xf32>
    %c1_25 = arith.constant 1 : index
    %c0_26 = arith.constant 0 : index
    %c0_27 = arith.constant 0 : index
    %18 = vector.load %arg2[%c1_25, %c0_26, %c0_27] : memref<2x2x32xf32, #tpu.memory_space<vmem>>, vector<1x2x32xf32>
    %19 = vector.shape_cast %18 : vector<1x2x32xf32> to vector<2x32xf32>
    %20 = vector.extract_strided_slice %5 {offsets = [0, 0], sizes = [2, 128], strides = [1, 1]} : vector<16x128xf32> to vector<2x128xf32>
    %cst_28 = arith.constant dense<0.000000e+00> : vector<2x128xf32>
    %21 = tpu.matmul %13, %6, %cst_28 {dimension_numbers = #tpu.dot_dimension_numbers<[1], [0], [0], [1], [0, 0, 1, 1], [], []>} : vector<2x32xf32>, vector<32x128xf32>, vector<2x128xf32> -> vector<2x128xf32>
    %22 = arith.addf %20, %21 : vector<2x128xf32>
    %23 = arith.negf %22 : vector<2x128xf32>
    %24 = math.exp %23 : vector<2x128xf32>
    %cst_29 = arith.constant 1.000000e+00 : f32
    %25 = vector.broadcast %cst_29 : f32 to vector<2x128xf32>
    %26 = arith.addf %25, %24 : vector<2x128xf32>
    %27 = arith.divf %25, %26 : vector<2x128xf32>
    %28 = vector.extract_strided_slice %27 {offsets = [0, 0], sizes = [2, 32], strides = [1, 1]} : vector<2x128xf32> to vector<2x32xf32>
    %29 = vector.extract_strided_slice %27 {offsets = [0, 32], sizes = [2, 32], strides = [1, 1]} : vector<2x128xf32> to vector<2x32xf32>
    %30 = vector.extract_strided_slice %27 {offsets = [0, 64], sizes = [2, 32], strides = [1, 1]} : vector<2x128xf32> to vector<2x32xf32>
    %cst_30 = arith.constant 2.000000e+00 : f32
    %31 = vector.broadcast %cst_30 : f32 to vector<2x32xf32>
    %32 = arith.mulf %31, %30 : vector<2x32xf32>
    %cst_31 = arith.constant 1.000000e+00 : f32
    %33 = vector.broadcast %cst_31 : f32 to vector<2x32xf32>
    %34 = arith.subf %32, %33 : vector<2x32xf32>
    %35 = vector.extract_strided_slice %27 {offsets = [0, 96], sizes = [2, 32], strides = [1, 1]} : vector<2x128xf32> to vector<2x32xf32>
    %36 = arith.mulf %29, %15 : vector<2x32xf32>
    %37 = arith.mulf %28, %34 : vector<2x32xf32>
    %38 = arith.addf %36, %37 : vector<2x32xf32>
    %39 = math.tanh %38 : vector<2x32xf32>
    %40 = arith.mulf %35, %39 : vector<2x32xf32>
    %cst_32 = arith.constant dense<0.000000e+00> : vector<2x128xf32>
    %41 = tpu.matmul %40, %7, %cst_32 {dimension_numbers = #tpu.dot_dimension_numbers<[1], [0], [0], [1], [0, 0, 1, 1], [], []>} : vector<2x32xf32>, vector<32x128xf32>, vector<2x128xf32> -> vector<2x128xf32>
    %42 = vector.broadcast %9 : vector<1x128xf32> to vector<2x128xf32>
    %43 = arith.addf %41, %42 : vector<2x128xf32>
    %cst_33 = arith.constant dense<0.000000e+00> : vector<2x128xf32>
    %44 = tpu.matmul %17, %8, %cst_33 {dimension_numbers = #tpu.dot_dimension_numbers<[1], [0], [0], [1], [0, 0, 1, 1], [], []>} : vector<2x32xf32>, vector<32x128xf32>, vector<2x128xf32> -> vector<2x128xf32>
    %45 = arith.addf %43, %44 : vector<2x128xf32>
    %46 = arith.negf %45 : vector<2x128xf32>
    %47 = math.exp %46 : vector<2x128xf32>
    %cst_34 = arith.constant 1.000000e+00 : f32
    %48 = vector.broadcast %cst_34 : f32 to vector<2x128xf32>
    %49 = arith.addf %48, %47 : vector<2x128xf32>
    %50 = arith.divf %48, %49 : vector<2x128xf32>
    %51 = vector.extract_strided_slice %50 {offsets = [0, 0], sizes = [2, 32], strides = [1, 1]} : vector<2x128xf32> to vector<2x32xf32>
    %52 = vector.extract_strided_slice %50 {offsets = [0, 32], sizes = [2, 32], strides = [1, 1]} : vector<2x128xf32> to vector<2x32xf32>
    %53 = vector.extract_strided_slice %50 {offsets = [0, 64], sizes = [2, 32], strides = [1, 1]} : vector<2x128xf32> to vector<2x32xf32>
    %cst_35 = arith.constant 2.000000e+00 : f32
    %54 = vector.broadcast %cst_35 : f32 to vector<2x32xf32>
    %55 = arith.mulf %54, %53 : vector<2x32xf32>
    %cst_36 = arith.constant 1.000000e+00 : f32
    %56 = vector.broadcast %cst_36 : f32 to vector<2x32xf32>
    %57 = arith.subf %55, %56 : vector<2x32xf32>
    %58 = vector.extract_strided_slice %50 {offsets = [0, 96], sizes = [2, 32], strides = [1, 1]} : vector<2x128xf32> to vector<2x32xf32>
    %59 = arith.mulf %52, %19 : vector<2x32xf32>
    %60 = arith.mulf %51, %57 : vector<2x32xf32>
    %61 = arith.addf %59, %60 : vector<2x32xf32>
    %62 = math.tanh %61 : vector<2x32xf32>
    %63 = arith.mulf %58, %62 : vector<2x32xf32>
    %cst_37 = arith.constant dense<0.000000e+00> : vector<2x16xf32>
    %64 = tpu.matmul %63, %10, %cst_37 {dimension_numbers = #tpu.dot_dimension_numbers<[1], [0], [0], [1], [0, 0, 1, 1], [], []>} : vector<2x32xf32>, vector<32x16xf32>, vector<2x16xf32> -> vector<2x16xf32>
    %65 = vector.broadcast %11 : vector<1x16xf32> to vector<2x16xf32>
    %66 = arith.addf %64, %65 : vector<2x16xf32>
    %67 = vector.extract_strided_slice %5 {offsets = [2, 0], sizes = [2, 128], strides = [1, 1]} : vector<16x128xf32> to vector<2x128xf32>
    %cst_38 = arith.constant dense<0.000000e+00> : vector<2x128xf32>
    %68 = tpu.matmul %40, %6, %cst_38 {dimension_numbers = #tpu.dot_dimension_numbers<[1], [0], [0], [1], [0, 0, 1, 1], [], []>} : vector<2x32xf32>, vector<32x128xf32>, vector<2x128xf32> -> vector<2x128xf32>
    %69 = arith.addf %67, %68 : vector<2x128xf32>
    %70 = arith.negf %69 : vector<2x128xf32>
    %71 = math.exp %70 : vector<2x128xf32>
    %cst_39 = arith.constant 1.000000e+00 : f32
    %72 = vector.broadcast %cst_39 : f32 to vector<2x128xf32>
    %73 = arith.addf %72, %71 : vector<2x128xf32>
    %74 = arith.divf %72, %73 : vector<2x128xf32>
    %75 = vector.extract_strided_slice %74 {offsets = [0, 0], sizes = [2, 32], strides = [1, 1]} : vector<2x128xf32> to vector<2x32xf32>
    %76 = vector.extract_strided_slice %74 {offsets = [0, 32], sizes = [2, 32], strides = [1, 1]} : vector<2x128xf32> to vector<2x32xf32>
    %77 = vector.extract_strided_slice %74 {offsets = [0, 64], sizes = [2, 32], strides = [1, 1]} : vector<2x128xf32> to vector<2x32xf32>
    %cst_40 = arith.constant 2.000000e+00 : f32
    %78 = vector.broadcast %cst_40 : f32 to vector<2x32xf32>
    %79 = arith.mulf %78, %77 : vector<2x32xf32>
    %cst_41 = arith.constant 1.000000e+00 : f32
    %80 = vector.broadcast %cst_41 : f32 to vector<2x32xf32>
    %81 = arith.subf %79, %80 : vector<2x32xf32>
    %82 = vector.extract_strided_slice %74 {offsets = [0, 96], sizes = [2, 32], strides = [1, 1]} : vector<2x128xf32> to vector<2x32xf32>
    %83 = arith.mulf %76, %38 : vector<2x32xf32>
    %84 = arith.mulf %75, %81 : vector<2x32xf32>
    %85 = arith.addf %83, %84 : vector<2x32xf32>
    %86 = math.tanh %85 : vector<2x32xf32>
    %87 = arith.mulf %82, %86 : vector<2x32xf32>
    %cst_42 = arith.constant dense<0.000000e+00> : vector<2x128xf32>
    %88 = tpu.matmul %87, %7, %cst_42 {dimension_numbers = #tpu.dot_dimension_numbers<[1], [0], [0], [1], [0, 0, 1, 1], [], []>} : vector<2x32xf32>, vector<32x128xf32>, vector<2x128xf32> -> vector<2x128xf32>
    %89 = vector.broadcast %9 : vector<1x128xf32> to vector<2x128xf32>
    %90 = arith.addf %88, %89 : vector<2x128xf32>
    %cst_43 = arith.constant dense<0.000000e+00> : vector<2x128xf32>
    %91 = tpu.matmul %63, %8, %cst_43 {dimension_numbers = #tpu.dot_dimension_numbers<[1], [0], [0], [1], [0, 0, 1, 1], [], []>} : vector<2x32xf32>, vector<32x128xf32>, vector<2x128xf32> -> vector<2x128xf32>
    %92 = arith.addf %90, %91 : vector<2x128xf32>
    %93 = arith.negf %92 : vector<2x128xf32>
    %94 = math.exp %93 : vector<2x128xf32>
    %cst_44 = arith.constant 1.000000e+00 : f32
    %95 = vector.broadcast %cst_44 : f32 to vector<2x128xf32>
    %96 = arith.addf %95, %94 : vector<2x128xf32>
    %97 = arith.divf %95, %96 : vector<2x128xf32>
    %98 = vector.extract_strided_slice %97 {offsets = [0, 0], sizes = [2, 32], strides = [1, 1]} : vector<2x128xf32> to vector<2x32xf32>
    %99 = vector.extract_strided_slice %97 {offsets = [0, 32], sizes = [2, 32], strides = [1, 1]} : vector<2x128xf32> to vector<2x32xf32>
    %100 = vector.extract_strided_slice %97 {offsets = [0, 64], sizes = [2, 32], strides = [1, 1]} : vector<2x128xf32> to vector<2x32xf32>
    %cst_45 = arith.constant 2.000000e+00 : f32
    %101 = vector.broadcast %cst_45 : f32 to vector<2x32xf32>
    %102 = arith.mulf %101, %100 : vector<2x32xf32>
    %cst_46 = arith.constant 1.000000e+00 : f32
    %103 = vector.broadcast %cst_46 : f32 to vector<2x32xf32>
    %104 = arith.subf %102, %103 : vector<2x32xf32>
    %105 = vector.extract_strided_slice %97 {offsets = [0, 96], sizes = [2, 32], strides = [1, 1]} : vector<2x128xf32> to vector<2x32xf32>
    %106 = arith.mulf %99, %61 : vector<2x32xf32>
    %107 = arith.mulf %98, %104 : vector<2x32xf32>
    %108 = arith.addf %106, %107 : vector<2x32xf32>
    %109 = math.tanh %108 : vector<2x32xf32>
    %110 = arith.mulf %105, %109 : vector<2x32xf32>
    %cst_47 = arith.constant dense<0.000000e+00> : vector<2x16xf32>
    %111 = tpu.matmul %110, %10, %cst_47 {dimension_numbers = #tpu.dot_dimension_numbers<[1], [0], [0], [1], [0, 0, 1, 1], [], []>} : vector<2x32xf32>, vector<32x16xf32>, vector<2x16xf32> -> vector<2x16xf32>
    %112 = vector.broadcast %11 : vector<1x16xf32> to vector<2x16xf32>
    %113 = arith.addf %111, %112 : vector<2x16xf32>
    %114 = vector.extract_strided_slice %5 {offsets = [4, 0], sizes = [2, 128], strides = [1, 1]} : vector<16x128xf32> to vector<2x128xf32>
    %cst_48 = arith.constant dense<0.000000e+00> : vector<2x128xf32>
    %115 = tpu.matmul %87, %6, %cst_48 {dimension_numbers = #tpu.dot_dimension_numbers<[1], [0], [0], [1], [0, 0, 1, 1], [], []>} : vector<2x32xf32>, vector<32x128xf32>, vector<2x128xf32> -> vector<2x128xf32>
    %116 = arith.addf %114, %115 : vector<2x128xf32>
    %117 = arith.negf %116 : vector<2x128xf32>
    %118 = math.exp %117 : vector<2x128xf32>
    %cst_49 = arith.constant 1.000000e+00 : f32
    %119 = vector.broadcast %cst_49 : f32 to vector<2x128xf32>
    %120 = arith.addf %119, %118 : vector<2x128xf32>
    %121 = arith.divf %119, %120 : vector<2x128xf32>
    %122 = vector.extract_strided_slice %121 {offsets = [0, 0], sizes = [2, 32], strides = [1, 1]} : vector<2x128xf32> to vector<2x32xf32>
    %123 = vector.extract_strided_slice %121 {offsets = [0, 32], sizes = [2, 32], strides = [1, 1]} : vector<2x128xf32> to vector<2x32xf32>
    %124 = vector.extract_strided_slice %121 {offsets = [0, 64], sizes = [2, 32], strides = [1, 1]} : vector<2x128xf32> to vector<2x32xf32>
    %cst_50 = arith.constant 2.000000e+00 : f32
    %125 = vector.broadcast %cst_50 : f32 to vector<2x32xf32>
    %126 = arith.mulf %125, %124 : vector<2x32xf32>
    %cst_51 = arith.constant 1.000000e+00 : f32
    %127 = vector.broadcast %cst_51 : f32 to vector<2x32xf32>
    %128 = arith.subf %126, %127 : vector<2x32xf32>
    %129 = vector.extract_strided_slice %121 {offsets = [0, 96], sizes = [2, 32], strides = [1, 1]} : vector<2x128xf32> to vector<2x32xf32>
    %130 = arith.mulf %123, %85 : vector<2x32xf32>
    %131 = arith.mulf %122, %128 : vector<2x32xf32>
    %132 = arith.addf %130, %131 : vector<2x32xf32>
    %133 = math.tanh %132 : vector<2x32xf32>
    %134 = arith.mulf %129, %133 : vector<2x32xf32>
    %cst_52 = arith.constant dense<0.000000e+00> : vector<2x128xf32>
    %135 = tpu.matmul %134, %7, %cst_52 {dimension_numbers = #tpu.dot_dimension_numbers<[1], [0], [0], [1], [0, 0, 1, 1], [], []>} : vector<2x32xf32>, vector<32x128xf32>, vector<2x128xf32> -> vector<2x128xf32>
    %136 = vector.broadcast %9 : vector<1x128xf32> to vector<2x128xf32>
    %137 = arith.addf %135, %136 : vector<2x128xf32>
    %cst_53 = arith.constant dense<0.000000e+00> : vector<2x128xf32>
    %138 = tpu.matmul %110, %8, %cst_53 {dimension_numbers = #tpu.dot_dimension_numbers<[1], [0], [0], [1], [0, 0, 1, 1], [], []>} : vector<2x32xf32>, vector<32x128xf32>, vector<2x128xf32> -> vector<2x128xf32>
    %139 = arith.addf %137, %138 : vector<2x128xf32>
    %140 = arith.negf %139 : vector<2x128xf32>
    %141 = math.exp %140 : vector<2x128xf32>
    %cst_54 = arith.constant 1.000000e+00 : f32
    %142 = vector.broadcast %cst_54 : f32 to vector<2x128xf32>
    %143 = arith.addf %142, %141 : vector<2x128xf32>
    %144 = arith.divf %142, %143 : vector<2x128xf32>
    %145 = vector.extract_strided_slice %144 {offsets = [0, 0], sizes = [2, 32], strides = [1, 1]} : vector<2x128xf32> to vector<2x32xf32>
    %146 = vector.extract_strided_slice %144 {offsets = [0, 32], sizes = [2, 32], strides = [1, 1]} : vector<2x128xf32> to vector<2x32xf32>
    %147 = vector.extract_strided_slice %144 {offsets = [0, 64], sizes = [2, 32], strides = [1, 1]} : vector<2x128xf32> to vector<2x32xf32>
    %cst_55 = arith.constant 2.000000e+00 : f32
    %148 = vector.broadcast %cst_55 : f32 to vector<2x32xf32>
    %149 = arith.mulf %148, %147 : vector<2x32xf32>
    %cst_56 = arith.constant 1.000000e+00 : f32
    %150 = vector.broadcast %cst_56 : f32 to vector<2x32xf32>
    %151 = arith.subf %149, %150 : vector<2x32xf32>
    %152 = vector.extract_strided_slice %144 {offsets = [0, 96], sizes = [2, 32], strides = [1, 1]} : vector<2x128xf32> to vector<2x32xf32>
    %153 = arith.mulf %146, %108 : vector<2x32xf32>
    %154 = arith.mulf %145, %151 : vector<2x32xf32>
    %155 = arith.addf %153, %154 : vector<2x32xf32>
    %156 = math.tanh %155 : vector<2x32xf32>
    %157 = arith.mulf %152, %156 : vector<2x32xf32>
    %cst_57 = arith.constant dense<0.000000e+00> : vector<2x16xf32>
    %158 = tpu.matmul %157, %10, %cst_57 {dimension_numbers = #tpu.dot_dimension_numbers<[1], [0], [0], [1], [0, 0, 1, 1], [], []>} : vector<2x32xf32>, vector<32x16xf32>, vector<2x16xf32> -> vector<2x16xf32>
    %159 = vector.broadcast %11 : vector<1x16xf32> to vector<2x16xf32>
    %160 = arith.addf %158, %159 : vector<2x16xf32>
    %161 = vector.extract_strided_slice %5 {offsets = [6, 0], sizes = [2, 128], strides = [1, 1]} : vector<16x128xf32> to vector<2x128xf32>
    %cst_58 = arith.constant dense<0.000000e+00> : vector<2x128xf32>
    %162 = tpu.matmul %134, %6, %cst_58 {dimension_numbers = #tpu.dot_dimension_numbers<[1], [0], [0], [1], [0, 0, 1, 1], [], []>} : vector<2x32xf32>, vector<32x128xf32>, vector<2x128xf32> -> vector<2x128xf32>
    %163 = arith.addf %161, %162 : vector<2x128xf32>
    %164 = arith.negf %163 : vector<2x128xf32>
    %165 = math.exp %164 : vector<2x128xf32>
    %cst_59 = arith.constant 1.000000e+00 : f32
    %166 = vector.broadcast %cst_59 : f32 to vector<2x128xf32>
    %167 = arith.addf %166, %165 : vector<2x128xf32>
    %168 = arith.divf %166, %167 : vector<2x128xf32>
    %169 = vector.extract_strided_slice %168 {offsets = [0, 0], sizes = [2, 32], strides = [1, 1]} : vector<2x128xf32> to vector<2x32xf32>
    %170 = vector.extract_strided_slice %168 {offsets = [0, 32], sizes = [2, 32], strides = [1, 1]} : vector<2x128xf32> to vector<2x32xf32>
    %171 = vector.extract_strided_slice %168 {offsets = [0, 64], sizes = [2, 32], strides = [1, 1]} : vector<2x128xf32> to vector<2x32xf32>
    %cst_60 = arith.constant 2.000000e+00 : f32
    %172 = vector.broadcast %cst_60 : f32 to vector<2x32xf32>
    %173 = arith.mulf %172, %171 : vector<2x32xf32>
    %cst_61 = arith.constant 1.000000e+00 : f32
    %174 = vector.broadcast %cst_61 : f32 to vector<2x32xf32>
    %175 = arith.subf %173, %174 : vector<2x32xf32>
    %176 = vector.extract_strided_slice %168 {offsets = [0, 96], sizes = [2, 32], strides = [1, 1]} : vector<2x128xf32> to vector<2x32xf32>
    %177 = arith.mulf %170, %132 : vector<2x32xf32>
    %178 = arith.mulf %169, %175 : vector<2x32xf32>
    %179 = arith.addf %177, %178 : vector<2x32xf32>
    %180 = math.tanh %179 : vector<2x32xf32>
    %181 = arith.mulf %176, %180 : vector<2x32xf32>
    %cst_62 = arith.constant dense<0.000000e+00> : vector<2x128xf32>
    %182 = tpu.matmul %181, %7, %cst_62 {dimension_numbers = #tpu.dot_dimension_numbers<[1], [0], [0], [1], [0, 0, 1, 1], [], []>} : vector<2x32xf32>, vector<32x128xf32>, vector<2x128xf32> -> vector<2x128xf32>
    %183 = vector.broadcast %9 : vector<1x128xf32> to vector<2x128xf32>
    %184 = arith.addf %182, %183 : vector<2x128xf32>
    %cst_63 = arith.constant dense<0.000000e+00> : vector<2x128xf32>
    %185 = tpu.matmul %157, %8, %cst_63 {dimension_numbers = #tpu.dot_dimension_numbers<[1], [0], [0], [1], [0, 0, 1, 1], [], []>} : vector<2x32xf32>, vector<32x128xf32>, vector<2x128xf32> -> vector<2x128xf32>
    %186 = arith.addf %184, %185 : vector<2x128xf32>
    %187 = arith.negf %186 : vector<2x128xf32>
    %188 = math.exp %187 : vector<2x128xf32>
    %cst_64 = arith.constant 1.000000e+00 : f32
    %189 = vector.broadcast %cst_64 : f32 to vector<2x128xf32>
    %190 = arith.addf %189, %188 : vector<2x128xf32>
    %191 = arith.divf %189, %190 : vector<2x128xf32>
    %192 = vector.extract_strided_slice %191 {offsets = [0, 0], sizes = [2, 32], strides = [1, 1]} : vector<2x128xf32> to vector<2x32xf32>
    %193 = vector.extract_strided_slice %191 {offsets = [0, 32], sizes = [2, 32], strides = [1, 1]} : vector<2x128xf32> to vector<2x32xf32>
    %194 = vector.extract_strided_slice %191 {offsets = [0, 64], sizes = [2, 32], strides = [1, 1]} : vector<2x128xf32> to vector<2x32xf32>
    %cst_65 = arith.constant 2.000000e+00 : f32
    %195 = vector.broadcast %cst_65 : f32 to vector<2x32xf32>
    %196 = arith.mulf %195, %194 : vector<2x32xf32>
    %cst_66 = arith.constant 1.000000e+00 : f32
    %197 = vector.broadcast %cst_66 : f32 to vector<2x32xf32>
    %198 = arith.subf %196, %197 : vector<2x32xf32>
    %199 = vector.extract_strided_slice %191 {offsets = [0, 96], sizes = [2, 32], strides = [1, 1]} : vector<2x128xf32> to vector<2x32xf32>
    %200 = arith.mulf %193, %155 : vector<2x32xf32>
    %201 = arith.mulf %192, %198 : vector<2x32xf32>
    %202 = arith.addf %200, %201 : vector<2x32xf32>
    %203 = math.tanh %202 : vector<2x32xf32>
    %204 = arith.mulf %199, %203 : vector<2x32xf32>
    %cst_67 = arith.constant dense<0.000000e+00> : vector<2x16xf32>
    %205 = tpu.matmul %204, %10, %cst_67 {dimension_numbers = #tpu.dot_dimension_numbers<[1], [0], [0], [1], [0, 0, 1, 1], [], []>} : vector<2x32xf32>, vector<32x16xf32>, vector<2x16xf32> -> vector<2x16xf32>
    %206 = vector.broadcast %11 : vector<1x16xf32> to vector<2x16xf32>
    %207 = arith.addf %205, %206 : vector<2x16xf32>
    %208 = vector.extract_strided_slice %5 {offsets = [8, 0], sizes = [2, 128], strides = [1, 1]} : vector<16x128xf32> to vector<2x128xf32>
    %cst_68 = arith.constant dense<0.000000e+00> : vector<2x128xf32>
    %209 = tpu.matmul %181, %6, %cst_68 {dimension_numbers = #tpu.dot_dimension_numbers<[1], [0], [0], [1], [0, 0, 1, 1], [], []>} : vector<2x32xf32>, vector<32x128xf32>, vector<2x128xf32> -> vector<2x128xf32>
    %210 = arith.addf %208, %209 : vector<2x128xf32>
    %211 = arith.negf %210 : vector<2x128xf32>
    %212 = math.exp %211 : vector<2x128xf32>
    %cst_69 = arith.constant 1.000000e+00 : f32
    %213 = vector.broadcast %cst_69 : f32 to vector<2x128xf32>
    %214 = arith.addf %213, %212 : vector<2x128xf32>
    %215 = arith.divf %213, %214 : vector<2x128xf32>
    %216 = vector.extract_strided_slice %215 {offsets = [0, 0], sizes = [2, 32], strides = [1, 1]} : vector<2x128xf32> to vector<2x32xf32>
    %217 = vector.extract_strided_slice %215 {offsets = [0, 32], sizes = [2, 32], strides = [1, 1]} : vector<2x128xf32> to vector<2x32xf32>
    %218 = vector.extract_strided_slice %215 {offsets = [0, 64], sizes = [2, 32], strides = [1, 1]} : vector<2x128xf32> to vector<2x32xf32>
    %cst_70 = arith.constant 2.000000e+00 : f32
    %219 = vector.broadcast %cst_70 : f32 to vector<2x32xf32>
    %220 = arith.mulf %219, %218 : vector<2x32xf32>
    %cst_71 = arith.constant 1.000000e+00 : f32
    %221 = vector.broadcast %cst_71 : f32 to vector<2x32xf32>
    %222 = arith.subf %220, %221 : vector<2x32xf32>
    %223 = vector.extract_strided_slice %215 {offsets = [0, 96], sizes = [2, 32], strides = [1, 1]} : vector<2x128xf32> to vector<2x32xf32>
    %224 = arith.mulf %217, %179 : vector<2x32xf32>
    %225 = arith.mulf %216, %222 : vector<2x32xf32>
    %226 = arith.addf %224, %225 : vector<2x32xf32>
    %227 = math.tanh %226 : vector<2x32xf32>
    %228 = arith.mulf %223, %227 : vector<2x32xf32>
    %cst_72 = arith.constant dense<0.000000e+00> : vector<2x128xf32>
    %229 = tpu.matmul %228, %7, %cst_72 {dimension_numbers = #tpu.dot_dimension_numbers<[1], [0], [0], [1], [0, 0, 1, 1], [], []>} : vector<2x32xf32>, vector<32x128xf32>, vector<2x128xf32> -> vector<2x128xf32>
    %230 = vector.broadcast %9 : vector<1x128xf32> to vector<2x128xf32>
    %231 = arith.addf %229, %230 : vector<2x128xf32>
    %cst_73 = arith.constant dense<0.000000e+00> : vector<2x128xf32>
    %232 = tpu.matmul %204, %8, %cst_73 {dimension_numbers = #tpu.dot_dimension_numbers<[1], [0], [0], [1], [0, 0, 1, 1], [], []>} : vector<2x32xf32>, vector<32x128xf32>, vector<2x128xf32> -> vector<2x128xf32>
    %233 = arith.addf %231, %232 : vector<2x128xf32>
    %234 = arith.negf %233 : vector<2x128xf32>
    %235 = math.exp %234 : vector<2x128xf32>
    %cst_74 = arith.constant 1.000000e+00 : f32
    %236 = vector.broadcast %cst_74 : f32 to vector<2x128xf32>
    %237 = arith.addf %236, %235 : vector<2x128xf32>
    %238 = arith.divf %236, %237 : vector<2x128xf32>
    %239 = vector.extract_strided_slice %238 {offsets = [0, 0], sizes = [2, 32], strides = [1, 1]} : vector<2x128xf32> to vector<2x32xf32>
    %240 = vector.extract_strided_slice %238 {offsets = [0, 32], sizes = [2, 32], strides = [1, 1]} : vector<2x128xf32> to vector<2x32xf32>
    %241 = vector.extract_strided_slice %238 {offsets = [0, 64], sizes = [2, 32], strides = [1, 1]} : vector<2x128xf32> to vector<2x32xf32>
    %cst_75 = arith.constant 2.000000e+00 : f32
    %242 = vector.broadcast %cst_75 : f32 to vector<2x32xf32>
    %243 = arith.mulf %242, %241 : vector<2x32xf32>
    %cst_76 = arith.constant 1.000000e+00 : f32
    %244 = vector.broadcast %cst_76 : f32 to vector<2x32xf32>
    %245 = arith.subf %243, %244 : vector<2x32xf32>
    %246 = vector.extract_strided_slice %238 {offsets = [0, 96], sizes = [2, 32], strides = [1, 1]} : vector<2x128xf32> to vector<2x32xf32>
    %247 = arith.mulf %240, %202 : vector<2x32xf32>
    %248 = arith.mulf %239, %245 : vector<2x32xf32>
    %249 = arith.addf %247, %248 : vector<2x32xf32>
    %250 = math.tanh %249 : vector<2x32xf32>
    %251 = arith.mulf %246, %250 : vector<2x32xf32>
    %cst_77 = arith.constant dense<0.000000e+00> : vector<2x16xf32>
    %252 = tpu.matmul %251, %10, %cst_77 {dimension_numbers = #tpu.dot_dimension_numbers<[1], [0], [0], [1], [0, 0, 1, 1], [], []>} : vector<2x32xf32>, vector<32x16xf32>, vector<2x16xf32> -> vector<2x16xf32>
    %253 = vector.broadcast %11 : vector<1x16xf32> to vector<2x16xf32>
    %254 = arith.addf %252, %253 : vector<2x16xf32>
    %255 = vector.extract_strided_slice %5 {offsets = [10, 0], sizes = [2, 128], strides = [1, 1]} : vector<16x128xf32> to vector<2x128xf32>
    %cst_78 = arith.constant dense<0.000000e+00> : vector<2x128xf32>
    %256 = tpu.matmul %228, %6, %cst_78 {dimension_numbers = #tpu.dot_dimension_numbers<[1], [0], [0], [1], [0, 0, 1, 1], [], []>} : vector<2x32xf32>, vector<32x128xf32>, vector<2x128xf32> -> vector<2x128xf32>
    %257 = arith.addf %255, %256 : vector<2x128xf32>
    %258 = arith.negf %257 : vector<2x128xf32>
    %259 = math.exp %258 : vector<2x128xf32>
    %cst_79 = arith.constant 1.000000e+00 : f32
    %260 = vector.broadcast %cst_79 : f32 to vector<2x128xf32>
    %261 = arith.addf %260, %259 : vector<2x128xf32>
    %262 = arith.divf %260, %261 : vector<2x128xf32>
    %263 = vector.extract_strided_slice %262 {offsets = [0, 0], sizes = [2, 32], strides = [1, 1]} : vector<2x128xf32> to vector<2x32xf32>
    %264 = vector.extract_strided_slice %262 {offsets = [0, 32], sizes = [2, 32], strides = [1, 1]} : vector<2x128xf32> to vector<2x32xf32>
    %265 = vector.extract_strided_slice %262 {offsets = [0, 64], sizes = [2, 32], strides = [1, 1]} : vector<2x128xf32> to vector<2x32xf32>
    %cst_80 = arith.constant 2.000000e+00 : f32
    %266 = vector.broadcast %cst_80 : f32 to vector<2x32xf32>
    %267 = arith.mulf %266, %265 : vector<2x32xf32>
    %cst_81 = arith.constant 1.000000e+00 : f32
    %268 = vector.broadcast %cst_81 : f32 to vector<2x32xf32>
    %269 = arith.subf %267, %268 : vector<2x32xf32>
    %270 = vector.extract_strided_slice %262 {offsets = [0, 96], sizes = [2, 32], strides = [1, 1]} : vector<2x128xf32> to vector<2x32xf32>
    %271 = arith.mulf %264, %226 : vector<2x32xf32>
    %272 = arith.mulf %263, %269 : vector<2x32xf32>
    %273 = arith.addf %271, %272 : vector<2x32xf32>
    %274 = math.tanh %273 : vector<2x32xf32>
    %275 = arith.mulf %270, %274 : vector<2x32xf32>
    %cst_82 = arith.constant dense<0.000000e+00> : vector<2x128xf32>
    %276 = tpu.matmul %275, %7, %cst_82 {dimension_numbers = #tpu.dot_dimension_numbers<[1], [0], [0], [1], [0, 0, 1, 1], [], []>} : vector<2x32xf32>, vector<32x128xf32>, vector<2x128xf32> -> vector<2x128xf32>
    %277 = vector.broadcast %9 : vector<1x128xf32> to vector<2x128xf32>
    %278 = arith.addf %276, %277 : vector<2x128xf32>
    %cst_83 = arith.constant dense<0.000000e+00> : vector<2x128xf32>
    %279 = tpu.matmul %251, %8, %cst_83 {dimension_numbers = #tpu.dot_dimension_numbers<[1], [0], [0], [1], [0, 0, 1, 1], [], []>} : vector<2x32xf32>, vector<32x128xf32>, vector<2x128xf32> -> vector<2x128xf32>
    %280 = arith.addf %278, %279 : vector<2x128xf32>
    %281 = arith.negf %280 : vector<2x128xf32>
    %282 = math.exp %281 : vector<2x128xf32>
    %cst_84 = arith.constant 1.000000e+00 : f32
    %283 = vector.broadcast %cst_84 : f32 to vector<2x128xf32>
    %284 = arith.addf %283, %282 : vector<2x128xf32>
    %285 = arith.divf %283, %284 : vector<2x128xf32>
    %286 = vector.extract_strided_slice %285 {offsets = [0, 0], sizes = [2, 32], strides = [1, 1]} : vector<2x128xf32> to vector<2x32xf32>
    %287 = vector.extract_strided_slice %285 {offsets = [0, 32], sizes = [2, 32], strides = [1, 1]} : vector<2x128xf32> to vector<2x32xf32>
    %288 = vector.extract_strided_slice %285 {offsets = [0, 64], sizes = [2, 32], strides = [1, 1]} : vector<2x128xf32> to vector<2x32xf32>
    %cst_85 = arith.constant 2.000000e+00 : f32
    %289 = vector.broadcast %cst_85 : f32 to vector<2x32xf32>
    %290 = arith.mulf %289, %288 : vector<2x32xf32>
    %cst_86 = arith.constant 1.000000e+00 : f32
    %291 = vector.broadcast %cst_86 : f32 to vector<2x32xf32>
    %292 = arith.subf %290, %291 : vector<2x32xf32>
    %293 = vector.extract_strided_slice %285 {offsets = [0, 96], sizes = [2, 32], strides = [1, 1]} : vector<2x128xf32> to vector<2x32xf32>
    %294 = arith.mulf %287, %249 : vector<2x32xf32>
    %295 = arith.mulf %286, %292 : vector<2x32xf32>
    %296 = arith.addf %294, %295 : vector<2x32xf32>
    %297 = math.tanh %296 : vector<2x32xf32>
    %298 = arith.mulf %293, %297 : vector<2x32xf32>
    %cst_87 = arith.constant dense<0.000000e+00> : vector<2x16xf32>
    %299 = tpu.matmul %298, %10, %cst_87 {dimension_numbers = #tpu.dot_dimension_numbers<[1], [0], [0], [1], [0, 0, 1, 1], [], []>} : vector<2x32xf32>, vector<32x16xf32>, vector<2x16xf32> -> vector<2x16xf32>
    %300 = vector.broadcast %11 : vector<1x16xf32> to vector<2x16xf32>
    %301 = arith.addf %299, %300 : vector<2x16xf32>
    %302 = vector.extract_strided_slice %5 {offsets = [12, 0], sizes = [2, 128], strides = [1, 1]} : vector<16x128xf32> to vector<2x128xf32>
    %cst_88 = arith.constant dense<0.000000e+00> : vector<2x128xf32>
    %303 = tpu.matmul %275, %6, %cst_88 {dimension_numbers = #tpu.dot_dimension_numbers<[1], [0], [0], [1], [0, 0, 1, 1], [], []>} : vector<2x32xf32>, vector<32x128xf32>, vector<2x128xf32> -> vector<2x128xf32>
    %304 = arith.addf %302, %303 : vector<2x128xf32>
    %305 = arith.negf %304 : vector<2x128xf32>
    %306 = math.exp %305 : vector<2x128xf32>
    %cst_89 = arith.constant 1.000000e+00 : f32
    %307 = vector.broadcast %cst_89 : f32 to vector<2x128xf32>
    %308 = arith.addf %307, %306 : vector<2x128xf32>
    %309 = arith.divf %307, %308 : vector<2x128xf32>
    %310 = vector.extract_strided_slice %309 {offsets = [0, 0], sizes = [2, 32], strides = [1, 1]} : vector<2x128xf32> to vector<2x32xf32>
    %311 = vector.extract_strided_slice %309 {offsets = [0, 32], sizes = [2, 32], strides = [1, 1]} : vector<2x128xf32> to vector<2x32xf32>
    %312 = vector.extract_strided_slice %309 {offsets = [0, 64], sizes = [2, 32], strides = [1, 1]} : vector<2x128xf32> to vector<2x32xf32>
    %cst_90 = arith.constant 2.000000e+00 : f32
    %313 = vector.broadcast %cst_90 : f32 to vector<2x32xf32>
    %314 = arith.mulf %313, %312 : vector<2x32xf32>
    %cst_91 = arith.constant 1.000000e+00 : f32
    %315 = vector.broadcast %cst_91 : f32 to vector<2x32xf32>
    %316 = arith.subf %314, %315 : vector<2x32xf32>
    %317 = vector.extract_strided_slice %309 {offsets = [0, 96], sizes = [2, 32], strides = [1, 1]} : vector<2x128xf32> to vector<2x32xf32>
    %318 = arith.mulf %311, %273 : vector<2x32xf32>
    %319 = arith.mulf %310, %316 : vector<2x32xf32>
    %320 = arith.addf %318, %319 : vector<2x32xf32>
    %321 = math.tanh %320 : vector<2x32xf32>
    %322 = arith.mulf %317, %321 : vector<2x32xf32>
    %cst_92 = arith.constant dense<0.000000e+00> : vector<2x128xf32>
    %323 = tpu.matmul %322, %7, %cst_92 {dimension_numbers = #tpu.dot_dimension_numbers<[1], [0], [0], [1], [0, 0, 1, 1], [], []>} : vector<2x32xf32>, vector<32x128xf32>, vector<2x128xf32> -> vector<2x128xf32>
    %324 = vector.broadcast %9 : vector<1x128xf32> to vector<2x128xf32>
    %325 = arith.addf %323, %324 : vector<2x128xf32>
    %cst_93 = arith.constant dense<0.000000e+00> : vector<2x128xf32>
    %326 = tpu.matmul %298, %8, %cst_93 {dimension_numbers = #tpu.dot_dimension_numbers<[1], [0], [0], [1], [0, 0, 1, 1], [], []>} : vector<2x32xf32>, vector<32x128xf32>, vector<2x128xf32> -> vector<2x128xf32>
    %327 = arith.addf %325, %326 : vector<2x128xf32>
    %328 = arith.negf %327 : vector<2x128xf32>
    %329 = math.exp %328 : vector<2x128xf32>
    %cst_94 = arith.constant 1.000000e+00 : f32
    %330 = vector.broadcast %cst_94 : f32 to vector<2x128xf32>
    %331 = arith.addf %330, %329 : vector<2x128xf32>
    %332 = arith.divf %330, %331 : vector<2x128xf32>
    %333 = vector.extract_strided_slice %332 {offsets = [0, 0], sizes = [2, 32], strides = [1, 1]} : vector<2x128xf32> to vector<2x32xf32>
    %334 = vector.extract_strided_slice %332 {offsets = [0, 32], sizes = [2, 32], strides = [1, 1]} : vector<2x128xf32> to vector<2x32xf32>
    %335 = vector.extract_strided_slice %332 {offsets = [0, 64], sizes = [2, 32], strides = [1, 1]} : vector<2x128xf32> to vector<2x32xf32>
    %cst_95 = arith.constant 2.000000e+00 : f32
    %336 = vector.broadcast %cst_95 : f32 to vector<2x32xf32>
    %337 = arith.mulf %336, %335 : vector<2x32xf32>
    %cst_96 = arith.constant 1.000000e+00 : f32
    %338 = vector.broadcast %cst_96 : f32 to vector<2x32xf32>
    %339 = arith.subf %337, %338 : vector<2x32xf32>
    %340 = vector.extract_strided_slice %332 {offsets = [0, 96], sizes = [2, 32], strides = [1, 1]} : vector<2x128xf32> to vector<2x32xf32>
    %341 = arith.mulf %334, %296 : vector<2x32xf32>
    %342 = arith.mulf %333, %339 : vector<2x32xf32>
    %343 = arith.addf %341, %342 : vector<2x32xf32>
    %344 = math.tanh %343 : vector<2x32xf32>
    %345 = arith.mulf %340, %344 : vector<2x32xf32>
    %cst_97 = arith.constant dense<0.000000e+00> : vector<2x16xf32>
    %346 = tpu.matmul %345, %10, %cst_97 {dimension_numbers = #tpu.dot_dimension_numbers<[1], [0], [0], [1], [0, 0, 1, 1], [], []>} : vector<2x32xf32>, vector<32x16xf32>, vector<2x16xf32> -> vector<2x16xf32>
    %347 = vector.broadcast %11 : vector<1x16xf32> to vector<2x16xf32>
    %348 = arith.addf %346, %347 : vector<2x16xf32>
    %349 = vector.extract_strided_slice %5 {offsets = [14, 0], sizes = [2, 128], strides = [1, 1]} : vector<16x128xf32> to vector<2x128xf32>
    %cst_98 = arith.constant dense<0.000000e+00> : vector<2x128xf32>
    %350 = tpu.matmul %322, %6, %cst_98 {dimension_numbers = #tpu.dot_dimension_numbers<[1], [0], [0], [1], [0, 0, 1, 1], [], []>} : vector<2x32xf32>, vector<32x128xf32>, vector<2x128xf32> -> vector<2x128xf32>
    %351 = arith.addf %349, %350 : vector<2x128xf32>
    %352 = arith.negf %351 : vector<2x128xf32>
    %353 = math.exp %352 : vector<2x128xf32>
    %cst_99 = arith.constant 1.000000e+00 : f32
    %354 = vector.broadcast %cst_99 : f32 to vector<2x128xf32>
    %355 = arith.addf %354, %353 : vector<2x128xf32>
    %356 = arith.divf %354, %355 : vector<2x128xf32>
    %357 = vector.extract_strided_slice %356 {offsets = [0, 0], sizes = [2, 32], strides = [1, 1]} : vector<2x128xf32> to vector<2x32xf32>
    %358 = vector.extract_strided_slice %356 {offsets = [0, 32], sizes = [2, 32], strides = [1, 1]} : vector<2x128xf32> to vector<2x32xf32>
    %359 = vector.extract_strided_slice %356 {offsets = [0, 64], sizes = [2, 32], strides = [1, 1]} : vector<2x128xf32> to vector<2x32xf32>
    %cst_100 = arith.constant 2.000000e+00 : f32
    %360 = vector.broadcast %cst_100 : f32 to vector<2x32xf32>
    %361 = arith.mulf %360, %359 : vector<2x32xf32>
    %cst_101 = arith.constant 1.000000e+00 : f32
    %362 = vector.broadcast %cst_101 : f32 to vector<2x32xf32>
    %363 = arith.subf %361, %362 : vector<2x32xf32>
    %364 = vector.extract_strided_slice %356 {offsets = [0, 96], sizes = [2, 32], strides = [1, 1]} : vector<2x128xf32> to vector<2x32xf32>
    %365 = arith.mulf %358, %320 : vector<2x32xf32>
    %366 = arith.mulf %357, %363 : vector<2x32xf32>
    %367 = arith.addf %365, %366 : vector<2x32xf32>
    %368 = math.tanh %367 : vector<2x32xf32>
    %369 = arith.mulf %364, %368 : vector<2x32xf32>
    %cst_102 = arith.constant dense<0.000000e+00> : vector<2x128xf32>
    %370 = tpu.matmul %369, %7, %cst_102 {dimension_numbers = #tpu.dot_dimension_numbers<[1], [0], [0], [1], [0, 0, 1, 1], [], []>} : vector<2x32xf32>, vector<32x128xf32>, vector<2x128xf32> -> vector<2x128xf32>
    %371 = vector.broadcast %9 : vector<1x128xf32> to vector<2x128xf32>
    %372 = arith.addf %370, %371 : vector<2x128xf32>
    %cst_103 = arith.constant dense<0.000000e+00> : vector<2x128xf32>
    %373 = tpu.matmul %345, %8, %cst_103 {dimension_numbers = #tpu.dot_dimension_numbers<[1], [0], [0], [1], [0, 0, 1, 1], [], []>} : vector<2x32xf32>, vector<32x128xf32>, vector<2x128xf32> -> vector<2x128xf32>
    %374 = arith.addf %372, %373 : vector<2x128xf32>
    %375 = arith.negf %374 : vector<2x128xf32>
    %376 = math.exp %375 : vector<2x128xf32>
    %cst_104 = arith.constant 1.000000e+00 : f32
    %377 = vector.broadcast %cst_104 : f32 to vector<2x128xf32>
    %378 = arith.addf %377, %376 : vector<2x128xf32>
    %379 = arith.divf %377, %378 : vector<2x128xf32>
    %380 = vector.extract_strided_slice %379 {offsets = [0, 0], sizes = [2, 32], strides = [1, 1]} : vector<2x128xf32> to vector<2x32xf32>
    %381 = vector.extract_strided_slice %379 {offsets = [0, 32], sizes = [2, 32], strides = [1, 1]} : vector<2x128xf32> to vector<2x32xf32>
    %382 = vector.extract_strided_slice %379 {offsets = [0, 64], sizes = [2, 32], strides = [1, 1]} : vector<2x128xf32> to vector<2x32xf32>
    %cst_105 = arith.constant 2.000000e+00 : f32
    %383 = vector.broadcast %cst_105 : f32 to vector<2x32xf32>
    %384 = arith.mulf %383, %382 : vector<2x32xf32>
    %cst_106 = arith.constant 1.000000e+00 : f32
    %385 = vector.broadcast %cst_106 : f32 to vector<2x32xf32>
    %386 = arith.subf %384, %385 : vector<2x32xf32>
    %387 = vector.extract_strided_slice %379 {offsets = [0, 96], sizes = [2, 32], strides = [1, 1]} : vector<2x128xf32> to vector<2x32xf32>
    %388 = arith.mulf %381, %343 : vector<2x32xf32>
    %389 = arith.mulf %380, %386 : vector<2x32xf32>
    %390 = arith.addf %388, %389 : vector<2x32xf32>
    %391 = math.tanh %390 : vector<2x32xf32>
    %392 = arith.mulf %387, %391 : vector<2x32xf32>
    %cst_107 = arith.constant dense<0.000000e+00> : vector<2x16xf32>
    %393 = tpu.matmul %392, %10, %cst_107 {dimension_numbers = #tpu.dot_dimension_numbers<[1], [0], [0], [1], [0, 0, 1, 1], [], []>} : vector<2x32xf32>, vector<32x16xf32>, vector<2x16xf32> -> vector<2x16xf32>
    %394 = vector.broadcast %11 : vector<1x16xf32> to vector<2x16xf32>
    %395 = arith.addf %393, %394 : vector<2x16xf32>
    %c0_108 = arith.constant 0 : index
    %c0_109 = arith.constant 0 : index
    %c0_110 = arith.constant 0 : index
    %396 = vector.load %arg12[%c0_108, %c0_109, %c0_110] : memref<2x2x32xf32, #tpu.memory_space<vmem>>, vector<1x2x32xf32>
    %397 = vector.shape_cast %396 : vector<1x2x32xf32> to vector<2x32xf32>
    %398 = vector.shape_cast %369 : vector<2x32xf32> to vector<1x2x32xf32>
    tpu.vector_store %arg12[%c0_108, %c0_109, %c0_110], %398 {strides = array<i32>} : memref<2x2x32xf32, #tpu.memory_space<vmem>>, vector<1x2x32xf32>,
    %c0_111 = arith.constant 0 : index
    %c0_112 = arith.constant 0 : index
    %c0_113 = arith.constant 0 : index
    %399 = vector.load %arg13[%c0_111, %c0_112, %c0_113] : memref<2x2x32xf32, #tpu.memory_space<vmem>>, vector<1x2x32xf32>
    %400 = vector.shape_cast %399 : vector<1x2x32xf32> to vector<2x32xf32>
    %401 = vector.shape_cast %367 : vector<2x32xf32> to vector<1x2x32xf32>
    tpu.vector_store %arg13[%c0_111, %c0_112, %c0_113], %401 {strides = array<i32>} : memref<2x2x32xf32, #tpu.memory_space<vmem>>, vector<1x2x32xf32>,
    %c1_114 = arith.constant 1 : index
    %c0_115 = arith.constant 0 : index
    %c0_116 = arith.constant 0 : index
    %402 = vector.load %arg12[%c1_114, %c0_115, %c0_116] : memref<2x2x32xf32, #tpu.memory_space<vmem>>, vector<1x2x32xf32>
    %403 = vector.shape_cast %402 : vector<1x2x32xf32> to vector<2x32xf32>
    %404 = vector.shape_cast %392 : vector<2x32xf32> to vector<1x2x32xf32>
    tpu.vector_store %arg12[%c1_114, %c0_115, %c0_116], %404 {strides = array<i32>} : memref<2x2x32xf32, #tpu.memory_space<vmem>>, vector<1x2x32xf32>,
    %c1_117 = arith.constant 1 : index
    %c0_118 = arith.constant 0 : index
    %c0_119 = arith.constant 0 : index
    %405 = vector.load %arg13[%c1_117, %c0_118, %c0_119] : memref<2x2x32xf32, #tpu.memory_space<vmem>>, vector<1x2x32xf32>
    %406 = vector.shape_cast %405 : vector<1x2x32xf32> to vector<2x32xf32>
    %407 = vector.shape_cast %390 : vector<2x32xf32> to vector<1x2x32xf32>
    tpu.vector_store %arg13[%c1_117, %c0_118, %c0_119], %407 {strides = array<i32>} : memref<2x2x32xf32, #tpu.memory_space<vmem>>, vector<1x2x32xf32>,
    %408 = tpu.concatenate %66, %113, %160, %207, %254, %301, %348, %395 in 1 : vector<2x16xf32>, vector<2x16xf32>, vector<2x16xf32>, vector<2x16xf32>, vector<2x16xf32>, vector<2x16xf32>, vector<2x16xf32>, vector<2x16xf32> -> vector<2x128xf32>
    %c0_120 = arith.constant 0 : index
    %c0_121 = arith.constant 0 : index
    %409 = vector.load %arg11[%c0_120, %c0_121] : memref<2x128xf32, #tpu.memory_space<vmem>>, vector<2x128xf32>
    tpu.vector_store %arg11[%c0_120, %c0_121], %408 {strides = array<i32>} : memref<2x128xf32, #tpu.memory_space<vmem>>, vector<2x128xf32>,
    return
  }
}

</mosaic_0001>

<llo_original>
// kernel: decoder_forward.1
$region0: #{decoder_forward.1}
  #allocation0 [shape = 'u32[]', space=smem, size = 0x4, offset = 0x4, fixed_abs, tag = 'smem constant byte address 0x4 - core index']
  #allocation1 [shape = 'u32[144,128]{1,0:T(1,128)}', space=vmem, size = 0x12000, scoped, tag = 'internal scratch']
  %s0 = inlined_call_operand.vmem [shape: f32[16,48], index: 0, kind: input, shape index: {}]
  %s1 = inlined_call_operand.vmem [shape: f32[2,2,32], index: 1, kind: input, shape index: {}]
  %s2 = inlined_call_operand.vmem [shape: f32[2,2,32], index: 2, kind: input, shape index: {}]
  %s3 = inlined_call_operand.vmem [shape: f32[48,128], index: 3, kind: input, shape index: {}]
  %s4 = inlined_call_operand.vmem [shape: f32[32,128], index: 4, kind: input, shape index: {}]
  %s5 = inlined_call_operand.vmem [shape: f32[1,128], index: 5, kind: input, shape index: {}]
  %s6 = inlined_call_operand.vmem [shape: f32[32,128], index: 6, kind: input, shape index: {}]
  %s7 = inlined_call_operand.vmem [shape: f32[32,128], index: 7, kind: input, shape index: {}]
  %s8 = inlined_call_operand.vmem [shape: f32[1,128], index: 8, kind: input, shape index: {}]
  %s9 = inlined_call_operand.vmem [shape: f32[32,16], index: 9, kind: input, shape index: {}]
  %s10 = inlined_call_operand.vmem [shape: f32[1,16], index: 10, kind: input, shape index: {}]
  %s11 = inlined_call_operand.vmem [shape: f32[2,128], index: 11, kind: output, shape index: {0}]
  %s12 = inlined_call_operand.hbm [shape: f32[2,2,32], index: 12, kind: output, shape index: {1}]
  %s13 = inlined_call_operand.hbm [shape: f32[2,2,32], index: 13, kind: output, shape index: {2}]
  %14 = xla_tuple %s11, %s12, %s13
  %s15 = sld [smem:[#allocation0]]
  $region70: #{decoder_forward.1} parent=0
    _
  %s17 = ssub.s32 1, %s15
  %s18 = scalar_select 0, %s17, %s15
  $region1: #{decoder_forward.1} parent=0
    #allocation2 [shape = 'u8[2048]{0}', space=vmem, size = 0x800, scoped, tag = 'output window, operand 1, single buffered']
    #allocation3 [shape = 's32[1]{0}', space=sflag, size = 0x4, scoped, tag = 'scoped memory for decoder_forward.1']
    #allocation4 [shape = 'u8[2048]{0}', space=vmem, size = 0x800, scoped, tag = 'output window, operand 2, single buffered']
    #allocation5 [shape = 's32[1]{0}', space=sflag, size = 0x4, scoped, tag = 'scoped memory for decoder_forward.1']
    %19 = vsyncpa [#allocation3], 0
    %20 = vsyncpa [#allocation5], 0
    // Predicated region
    $region2: #{decoder_forward.1} parent=1 // pred_check
      _
    $region3: #{decoder_forward.1} parent=1 // pred_check_branch
      %22 = sbr.rel (0) target = $region5
    $region4: #{decoder_forward.1} parent=1 // pred_region
      _
    $region5: #{decoder_forward.1} parent=1 // pred_fallthru
      _
    // Predicated region
    $region6: #{decoder_forward.1} parent=1 // pred_check
      _
    $region7: #{decoder_forward.1} parent=1 // pred_check_branch
      %24 = sbr.rel (0) target = $region9
    $region8: #{decoder_forward.1} parent=1 // pred_region
      _
    $region9: #{decoder_forward.1} parent=1 // pred_fallthru
      _
    // Predicated region
    $region10: #{decoder_forward.1} parent=1 // pred_check
      _
    $region11: #{decoder_forward.1} parent=1 // pred_check_branch
      %26 = sbr.rel (0) target = $region13
    $region12: #{decoder_forward.1} parent=1 // pred_region
      _
    $region13: #{decoder_forward.1} parent=1 // pred_fallthru
      _
    // Predicated region
    $region14: #{decoder_forward.1} parent=1 // pred_check
      _
    $region15: #{decoder_forward.1} parent=1 // pred_check_branch
      %28 = sbr.rel (0) target = $region17
    $region16: #{decoder_forward.1} parent=1 // pred_region
      _
    $region17: #{decoder_forward.1} parent=1 // pred_fallthru
      _
    // Predicated region
    $region18: #{decoder_forward.1} parent=1 // pred_check
      _
    $region19: #{decoder_forward.1} parent=1 // pred_check_branch
      %30 = sbr.rel (0) target = $region21
    $region20: #{decoder_forward.1} parent=1 // pred_region
      _
    $region21: #{decoder_forward.1} parent=1 // pred_fallthru
      _
    // Predicated region
    $region22: #{decoder_forward.1} parent=1 // pred_check
      _
    $region23: #{decoder_forward.1} parent=1 // pred_check_branch
      %32 = sbr.rel (0) target = $region25
    $region24: #{decoder_forward.1} parent=1 // pred_region
      _
    $region25: #{decoder_forward.1} parent=1 // pred_fallthru
      _
    // Predicated region
    $region26: #{decoder_forward.1} parent=1 // pred_check
      _
    $region27: #{decoder_forward.1} parent=1 // pred_check_branch
      %34 = sbr.rel (0) target = $region29
    $region28: #{decoder_forward.1} parent=1 // pred_region
      _
    $region29: #{decoder_forward.1} parent=1 // pred_fallthru
      _
    // Predicated region
    $region30: #{decoder_forward.1} parent=1 // pred_check
      _
    $region31: #{decoder_forward.1} parent=1 // pred_check_branch
      %36 = sbr.rel (0) target = $region33
    $region32: #{decoder_forward.1} parent=1 // pred_region
      _
    $region33: #{decoder_forward.1} parent=1 // pred_fallthru
      _
    // Predicated region
    $region34: #{decoder_forward.1} parent=1 // pred_check
      _
    $region35: #{decoder_forward.1} parent=1 // pred_check_branch
      %38 = sbr.rel (0) target = $region37
    $region36: #{decoder_forward.1} parent=1 // pred_region
      _
    $region37: #{decoder_forward.1} parent=1 // pred_fallthru
      _
    // Predicated region
    $region38: #{decoder_forward.1} parent=1 // pred_check
      _
    $region39: #{decoder_forward.1} parent=1 // pred_check_branch
      %40 = sbr.rel (0) target = $region41
    $region40: #{decoder_forward.1} parent=1 // pred_region
      _
    $region41: #{decoder_forward.1} parent=1 // pred_fallthru
      _
    // Predicated region
    $region42: #{decoder_forward.1} parent=1 // pred_check
      _
    $region43: #{decoder_forward.1} parent=1 // pred_check_branch
      %42 = sbr.rel (0) target = $region45
    $region44: #{decoder_forward.1} parent=1 // pred_region
      _
    $region45: #{decoder_forward.1} parent=1 // pred_fallthru
      _
    %v43 = vld [vmem:[%s0] sm:$0xff]
    %v44 = vld [vmem:[%s0 + $0x8] sm:$0xff]
    %v45 = vld [vmem:[%s3] sm:$0xff]
    %v46 = vld [vmem:[%s3 + $0x8] sm:$0xff]
    %v47 = vld [vmem:[%s3 + $0x10] sm:$0xff]
    %v48 = vld [vmem:[%s3 + $0x18] sm:$0xff]
    %v49 = vld [vmem:[%s3 + $0x20] sm:$0xff]
    %v50 = vld [vmem:[%s3 + $0x28] sm:$0xff]
    %v51 = vld [vmem:[%s5] sm:$0x1]
    %v53 = vlaneseq
    %v54 = vshrl.u32 %v53, 7
    %v55 = vsub.s32 0, %v54
    %v56 = vrot.slane %v51, %v55
    %vm58 = vcmask 392192
    %v60 = vsel %vm58, %v43, 0
    %v63 = vsel %vm58, %v44, 0
    %65 = vmatprep.subr.mxu0 0.0
    %66 = vmatpush1.msra.mxu0 %v45
    %67 = vmatprep.subr.mxu0 0.0
    %68 = vmatpush1.msra.mxu0 %v46
    %69 = vmatprep.subr.mxu0 0.0
    %70 = vmatpush1.msra.mxu0 %v47
    %71 = vmatprep.subr.mxu0 0.0
    %72 = vmatpush1.msra.mxu0 %v48
    %73 = vmatprep.subr.mxu0 0.0
    %74 = vmatpush1.msra.mxu0 %v49
    %75 = vmatprep.subr.mxu0 0.0
    %76 = vmatpush1.msra.mxu0 %v50
    %77 = vmatprep.subr.mxu0 0.0
    %78 = vmatpush1.msra.mxu0 0.0
    %79 = vmatprep.subr.mxu0 0.0
    %80 = vmatpush1.msra.mxu0 0.0
    %81 = vmatprep.subr.mxu0 0.0
    %82 = vmatpush1.msra.mxu0 0.0
    %83 = vmatprep.subr.mxu0 0.0
    %84 = vmatpush1.msra.mxu0 0.0
    %85 = vmatprep.subr.mxu0 0.0
    %86 = vmatpush1.msra.mxu0 0.0
    %87 = vmatprep.subr.mxu0 0.0
    %88 = vmatpush1.msra.mxu0 0.0
    %89 = vmatprep.subr.mxu0 0.0
    %90 = vmatpush1.msra.mxu0 0.0
    %91 = vmatprep.subr.mxu0 0.0
    %92 = vmatpush1.msra.mxu0 0.0
    %93 = vmatprep.subr.mxu0 0.0
    %94 = vmatpush1.msra.mxu0 0.0
    %95 = vmatprep.subr.mxu0 0.0
    %96 = vmatpush1.msra.mxu0 0.0
    %97 = vmatprep.subr.mxu0 0.0
    %98 = vmatpush1.msra.mxu0 0.0
    %99 = vmatprep.subr.mxu0 0.0
    %100 = vmatpush1.msra.mxu0 0.0
    %101 = vmatprep.subr.mxu0 0.0
    %102 = vmatpush1.msra.mxu0 0.0
    %103 = vmatprep.subr.mxu0 0.0
    %104 = vmatpush1.msra.mxu0 0.0
    %105 = vmatprep.subr.mxu0 0.0
    %106 = vmatpush1.msra.mxu0 0.0
    %107 = vmatprep.subr.mxu0 0.0
    %108 = vmatpush1.msra.mxu0 0.0
    %109 = vmatprep.subr.mxu0 0.0
    %110 = vmatpush1.msra.mxu0 0.0
    %111 = vmatprep.subr.mxu0 0.0
    %112 = vmatpush1.msra.mxu0 0.0
    %113 = vmatprep.subr.mxu0 0.0
    %114 = vmatpush1.msra.mxu0 0.0
    %115 = vmatprep.subr.mxu0 0.0
    %116 = vmatpush1.msra.mxu0 0.0
    %117 = vmatprep.subr.mxu0 0.0
    %118 = vmatpush1.msra.mxu0 0.0
    %119 = vmatprep.subr.mxu0 0.0
    %120 = vmatpush1.msra.mxu0 0.0
    %121 = vmatprep.subr.mxu0 0.0
    %122 = vmatpush1.msra.mxu0 0.0
    %123 = vmatprep.subr.mxu0 0.0
    %124 = vmatpush1.msra.mxu0 0.0
    %125 = vmatprep.subr.mxu0 0.0
    %126 = vmatpush1.msra.mxu0 0.0
    %127 = vmatprep.subr.mxu0 0.0
    %128 = vmatpush1.msra.mxu0 0.0
    %129 = vmatprep.mubr.f32.mxu0 0.0
    %130 = vmatmul.mubr.f32.gmra.mrb[0].mxu0 %v60
    %v131 = vpop.f32.mrb[0].mxu0
    %v132 = vadd.f32 %v56, %v131
    %v133 = vpop.f32.mrb[0].mxu0
    %134 = vmatprep.mubr.f32.mxu0 0.0
    %135 = vmatmul.mubr.f32.gmra.mrb[0].mxu0 %v63
    %v136 = vpop.f32.mrb[0].mxu0
    %v137 = vadd.f32 %v56, %v136
    %v138 = vpop.f32.mrb[0].mxu0
    %139 = vdwg.mxu0
    %v140 = vld [vmem:[%s4] sm:$0xff]
    %v141 = vld [vmem:[%s4 + $0x8] sm:$0xff]
    %v142 = vld [vmem:[%s4 + $0x10] sm:$0xff]
    %v143 = vld [vmem:[%s4 + $0x18] sm:$0xff]
    %v144 = vld [vmem:[%s6] sm:$0xff]
    %v145 = vld [vmem:[%s6 + $0x8] sm:$0xff]
    %v146 = vld [vmem:[%s6 + $0x10] sm:$0xff]
    %v147 = vld [vmem:[%s6 + $0x18] sm:$0xff]
    %v148 = vld [vmem:[%s7] sm:$0xff]
    %v149 = vld [vmem:[%s7 + $0x8] sm:$0xff]
    %v150 = vld [vmem:[%s7 + $0x10] sm:$0xff]
    %v151 = vld [vmem:[%s7 + $0x18] sm:$0xff]
    %v152 = vld [vmem:[%s8] sm:$0x1]
    %v153 = vld [vmem:[%s9] sm:$0xff]
    %v154 = vld [vmem:[%s9 + $0x8] sm:$0xff]
    %v155 = vld [vmem:[%s9 + $0x10] sm:$0xff]
    %v156 = vld [vmem:[%s9 + $0x18] sm:$0xff]
    %v157 = vld [vmem:[%s10] sm:$0x1]
    %v158 = vld [vmem:[%s1] sm:$0x3]
    %v159 = vld [vmem:[%s2] sm:$0x3]
    %s160 = scalar_lea.vmem %s1, 2
    %v161 = vld [vmem:[%s160] sm:$0x3]
    %s162 = scalar_lea.vmem %s2, 2
    %v163 = vld [vmem:[%s162] sm:$0x3]
    %vm164 = vcmask 261120
    %v166 = vsel %vm164, %v158, 0
    %168 = vmatprep.subr.mxu0 0.0
    %169 = vmatpush1.msra.mxu0 %v140
    %170 = vmatprep.subr.mxu0 0.0
    %171 = vmatpush1.msra.mxu0 %v141
    %172 = vmatprep.subr.mxu0 0.0
    %173 = vmatpush1.msra.mxu0 %v142
    %174 = vmatprep.subr.mxu0 0.0
    %175 = vmatpush1.msra.mxu0 %v143
    %176 = vmatprep.subr.mxu0 0.0
    %177 = vmatpush1.msra.mxu0 0.0
    %178 = vmatprep.subr.mxu0 0.0
    %179 = vmatpush1.msra.mxu0 0.0
    %180 = vmatprep.subr.mxu0 0.0
    %181 = vmatpush1.msra.mxu0 0.0
    %182 = vmatprep.subr.mxu0 0.0
    %183 = vmatpush1.msra.mxu0 0.0
    %184 = vmatprep.subr.mxu0 0.0
    %185 = vmatpush1.msra.mxu0 0.0
    %186 = vmatprep.subr.mxu0 0.0
    %187 = vmatpush1.msra.mxu0 0.0
    %188 = vmatprep.subr.mxu0 0.0
    %189 = vmatpush1.msra.mxu0 0.0
    %190 = vmatprep.subr.mxu0 0.0
    %191 = vmatpush1.msra.mxu0 0.0
    %192 = vmatprep.subr.mxu0 0.0
    %193 = vmatpush1.msra.mxu0 0.0
    %194 = vmatprep.subr.mxu0 0.0
    %195 = vmatpush1.msra.mxu0 0.0
    %196 = vmatprep.subr.mxu0 0.0
    %197 = vmatpush1.msra.mxu0 0.0
    %198 = vmatprep.subr.mxu0 0.0
    %199 = vmatpush1.msra.mxu0 0.0
    %200 = vmatprep.subr.mxu0 0.0
    %201 = vmatpush1.msra.mxu0 0.0
    %202 = vmatprep.subr.mxu0 0.0
    %203 = vmatpush1.msra.mxu0 0.0
    %204 = vmatprep.subr.mxu0 0.0
    %205 = vmatpush1.msra.mxu0 0.0
    %206 = vmatprep.subr.mxu0 0.0
    %207 = vmatpush1.msra.mxu0 0.0
    %208 = vmatprep.subr.mxu0 0.0
    %209 = vmatpush1.msra.mxu0 0.0
    %210 = vmatprep.subr.mxu0 0.0
    %211 = vmatpush1.msra.mxu0 0.0
    %212 = vmatprep.subr.mxu0 0.0
    %213 = vmatpush1.msra.mxu0 0.0
    %214 = vmatprep.subr.mxu0 0.0
    %215 = vmatpush1.msra.mxu0 0.0
    %216 = vmatprep.subr.mxu0 0.0
    %217 = vmatpush1.msra.mxu0 0.0
    %218 = vmatprep.subr.mxu0 0.0
    %219 = vmatpush1.msra.mxu0 0.0
    %220 = vmatprep.subr.mxu0 0.0
    %221 = vmatpush1.msra.mxu0 0.0
    %222 = vmatprep.subr.mxu0 0.0
    %223 = vmatpush1.msra.mxu0 0.0
    %224 = vmatprep.subr.mxu0 0.0
    %225 = vmatpush1.msra.mxu0 0.0
    %226 = vmatprep.subr.mxu0 0.0
    %227 = vmatpush1.msra.mxu0 0.0
    %228 = vmatprep.subr.mxu0 0.0
    %229 = vmatpush1.msra.mxu0 0.0
    %230 = vmatprep.subr.mxu0 0.0
    %231 = vmatpush1.msra.mxu0 0.0
    %232 = vmatprep.mubr.f32.mxu0 0.0
    %233 = vmatmul.mubr.f32.gmra.mrb[0].mxu0 %v166
    %v234 = vpop.f32.mrb[0].mxu0
    %v235 = vadd.f32 0.0, %v234
    %v236 = vpop.f32.mrb[0].mxu0
    %237 = vdwg.mxu0
    %v238 = vadd.f32 %v132, %v235
    %v239 = vxor.u32 %v238, 2147483648
    %v240 = vmul.f32 %v239, 1.442695
    %v241 = vpow.pop %v240
    %v242 = vadd.f32 %v241, 1.0
    %v243 = vrcp.pop %v242
    %v244 = vmul.f32 1.0, %v243
    %v245 = vmul.f32 %v244, 2.0
    %v246 = vsub.f32 %v245, 1.0
    %248 = vrot.lane.b32.xlu0 %v159, 32
    %v249 = vpop.permute.xlu0 %248
    %v251 = vmul.f32 %v244, %v249
    %253 = vrot.lane.b32.xlu0 %v246, 64
    %v254 = vpop.permute.xlu0 %253
    %v256 = vmul.f32 %v244, %v254
    %258 = vrot.lane.b32.xlu0 %v256, 32
    %v259 = vpop.permute.xlu0 %258
    %v261 = vadd.f32 %v251, %v259
    %v262 = vtanh.pop %v261
    %264 = vrot.lane.b32.xlu0 %v262, 64
    %v265 = vpop.permute.xlu0 %264
    %v267 = vmul.f32 %v244, %v265
    %v269 = vlaneseq
    %v270 = vshrl.u32 %v269, 7
    %v271 = vsub.s32 0, %v270
    %v272 = vrot.slane %v152, %v271
    %275 = vrot.lane.b32.xlu0 %v267, 32
    %v276 = vpop.permute.xlu0 %275
    %v277 = vsel %vm164, %v276, 0
    %279 = vmatprep.subr.mxu0 0.0
    %280 = vmatpush1.msra.mxu0 %v144
    %281 = vmatprep.subr.mxu0 0.0
    %282 = vmatpush1.msra.mxu0 %v145
    %283 = vmatprep.subr.mxu0 0.0
    %284 = vmatpush1.msra.mxu0 %v146
    %285 = vmatprep.subr.mxu0 0.0
    %286 = vmatpush1.msra.mxu0 %v147
    %287 = vmatprep.subr.mxu0 0.0
    %288 = vmatpush1.msra.mxu0 0.0
    %289 = vmatprep.subr.mxu0 0.0
    %290 = vmatpush1.msra.mxu0 0.0
    %291 = vmatprep.subr.mxu0 0.0
    %292 = vmatpush1.msra.mxu0 0.0
    %293 = vmatprep.subr.mxu0 0.0
    %294 = vmatpush1.msra.mxu0 0.0
    %295 = vmatprep.subr.mxu0 0.0
    %296 = vmatpush1.msra.mxu0 0.0
    %297 = vmatprep.subr.mxu0 0.0
    %298 = vmatpush1.msra.mxu0 0.0
    %299 = vmatprep.subr.mxu0 0.0
    %300 = vmatpush1.msra.mxu0 0.0
    %301 = vmatprep.subr.mxu0 0.0
    %302 = vmatpush1.msra.mxu0 0.0
    %303 = vmatprep.subr.mxu0 0.0
    %304 = vmatpush1.msra.mxu0 0.0
    %305 = vmatprep.subr.mxu0 0.0
    %306 = vmatpush1.msra.mxu0 0.0
    %307 = vmatprep.subr.mxu0 0.0
    %308 = vmatpush1.msra.mxu0 0.0
    %309 = vmatprep.subr.mxu0 0.0
    %310 = vmatpush1.msra.mxu0 0.0
    %311 = vmatprep.subr.mxu0 0.0
    %312 = vmatpush1.msra.mxu0 0.0
    %313 = vmatprep.subr.mxu0 0.0
    %314 = vmatpush1.msra.mxu0 0.0
    %315 = vmatprep.subr.mxu0 0.0
    %316 = vmatpush1.msra.mxu0 0.0
    %317 = vmatprep.subr.mxu0 0.0
    %318 = vmatpush1.msra.mxu0 0.0
    %319 = vmatprep.subr.mxu0 0.0
    %320 = vmatpush1.msra.mxu0 0.0
    %321 = vmatprep.subr.mxu0 0.0
    %322 = vmatpush1.msra.mxu0 0.0
    %323 = vmatprep.subr.mxu0 0.0
    %324 = vmatpush1.msra.mxu0 0.0
    %325 = vmatprep.subr.mxu0 0.0
    %326 = vmatpush1.msra.mxu0 0.0
    %327 = vmatprep.subr.mxu0 0.0
    %328 = vmatpush1.msra.mxu0 0.0
    %329 = vmatprep.subr.mxu0 0.0
    %330 = vmatpush1.msra.mxu0 0.0
    %331 = vmatprep.subr.mxu0 0.0
    %332 = vmatpush1.msra.mxu0 0.0
    %333 = vmatprep.subr.mxu0 0.0
    %334 = vmatpush1.msra.mxu0 0.0
    %335 = vmatprep.subr.mxu0 0.0
    %336 = vmatpush1.msra.mxu0 0.0
    %337 = vmatprep.subr.mxu0 0.0
    %338 = vmatpush1.msra.mxu0 0.0
    %339 = vmatprep.subr.mxu0 0.0
    %340 = vmatpush1.msra.mxu0 0.0
    %341 = vmatprep.subr.mxu0 0.0
    %342 = vmatpush1.msra.mxu0 0.0
    %343 = vmatprep.mubr.f32.mxu0 0.0
    %344 = vmatmul.mubr.f32.gmra.mrb[0].mxu0 %v277
    %v345 = vpop.f32.mrb[0].mxu0
    %v346 = vadd.f32 %v272, %v345
    %v347 = vpop.f32.mrb[0].mxu0
    %348 = vdwg.mxu0
    %v350 = vsel %vm164, %v161, 0
    %352 = vmatprep.subr.mxu0 0.0
    %353 = vmatpush1.msra.mxu0 %v148
    %354 = vmatprep.subr.mxu0 0.0
    %355 = vmatpush1.msra.mxu0 %v149
    %356 = vmatprep.subr.mxu0 0.0
    %357 = vmatpush1.msra.mxu0 %v150
    %358 = vmatprep.subr.mxu0 0.0
    %359 = vmatpush1.msra.mxu0 %v151
    %360 = vmatprep.subr.mxu0 0.0
    %361 = vmatpush1.msra.mxu0 0.0
    %362 = vmatprep.subr.mxu0 0.0
    %363 = vmatpush1.msra.mxu0 0.0
    %364 = vmatprep.subr.mxu0 0.0
    %365 = vmatpush1.msra.mxu0 0.0
    %366 = vmatprep.subr.mxu0 0.0
    %367 = vmatpush1.msra.mxu0 0.0
    %368 = vmatprep.subr.mxu0 0.0
    %369 = vmatpush1.msra.mxu0 0.0
    %370 = vmatprep.subr.mxu0 0.0
    %371 = vmatpush1.msra.mxu0 0.0
    %372 = vmatprep.subr.mxu0 0.0
    %373 = vmatpush1.msra.mxu0 0.0
    %374 = vmatprep.subr.mxu0 0.0
    %375 = vmatpush1.msra.mxu0 0.0
    %376 = vmatprep.subr.mxu0 0.0
    %377 = vmatpush1.msra.mxu0 0.0
    %378 = vmatprep.subr.mxu0 0.0
    %379 = vmatpush1.msra.mxu0 0.0
    %380 = vmatprep.subr.mxu0 0.0
    %381 = vmatpush1.msra.mxu0 0.0
    %382 = vmatprep.subr.mxu0 0.0
    %383 = vmatpush1.msra.mxu0 0.0
    %384 = vmatprep.subr.mxu0 0.0
    %385 = vmatpush1.msra.mxu0 0.0
    %386 = vmatprep.subr.mxu0 0.0
    %387 = vmatpush1.msra.mxu0 0.0
    %388 = vmatprep.subr.mxu0 0.0
    %389 = vmatpush1.msra.mxu0 0.0
    %390 = vmatprep.subr.mxu0 0.0
    %391 = vmatpush1.msra.mxu0 0.0
    %392 = vmatprep.subr.mxu0 0.0
    %393 = vmatpush1.msra.mxu0 0.0
    %394 = vmatprep.subr.mxu0 0.0
    %395 = vmatpush1.msra.mxu0 0.0
    %396 = vmatprep.subr.mxu0 0.0
    %397 = vmatpush1.msra.mxu0 0.0
    %398 = vmatprep.subr.mxu0 0.0
    %399 = vmatpush1.msra.mxu0 0.0
    %400 = vmatprep.subr.mxu0 0.0
    %401 = vmatpush1.msra.mxu0 0.0
    %402 = vmatprep.subr.mxu0 0.0
    %403 = vmatpush1.msra.mxu0 0.0
    %404 = vmatprep.subr.mxu0 0.0
    %405 = vmatpush1.msra.mxu0 0.0
    %406 = vmatprep.subr.mxu0 0.0
    %407 = vmatpush1.msra.mxu0 0.0
    %408 = vmatprep.subr.mxu0 0.0
    %409 = vmatpush1.msra.mxu0 0.0
    %410 = vmatprep.subr.mxu0 0.0
    %411 = vmatpush1.msra.mxu0 0.0
    %412 = vmatprep.subr.mxu0 0.0
    %413 = vmatpush1.msra.mxu0 0.0
    %414 = vmatprep.subr.mxu0 0.0
    %415 = vmatpush1.msra.mxu0 0.0
    %416 = vmatprep.mubr.f32.mxu0 0.0
    %417 = vmatmul.mubr.f32.gmra.mrb[0].mxu0 %v350
    %v418 = vpop.f32.mrb[0].mxu0
    %v419 = vadd.f32 0.0, %v418
    %v420 = vpop.f32.mrb[0].mxu0
    %421 = vdwg.mxu0
    %v422 = vadd.f32 %v346, %v419
    %v423 = vxor.u32 %v422, 2147483648
    %v424 = vmul.f32 %v423, 1.442695
    %v425 = vpow.pop %v424
    %v426 = vadd.f32 %v425, 1.0
    %v427 = vrcp.pop %v426
    %v428 = vmul.f32 1.0, %v427
    %v429 = vmul.f32 %v428, 2.0
    %v430 = vsub.f32 %v429, 1.0
    %432 = vrot.lane.b32.xlu0 %v163, 32
    %v433 = vpop.permute.xlu0 %432
    %v435 = vmul.f32 %v428, %v433
    %437 = vrot.lane.b32.xlu0 %v430, 64
    %v438 = vpop.permute.xlu0 %437
    %v440 = vmul.f32 %v428, %v438
    %442 = vrot.lane.b32.xlu0 %v440, 32
    %v443 = vpop.permute.xlu0 %442
    %v445 = vadd.f32 %v435, %v443
    %v446 = vtanh.pop %v445
    %448 = vrot.lane.b32.xlu0 %v446, 64
    %v449 = vpop.permute.xlu0 %448
    %v451 = vmul.f32 %v428, %v449
    %v453 = vlaneseq
    %v454 = vshrl.u32 %v453, 7
    %v455 = vsub.s32 0, %v454
    %v456 = vrot.slane %v157, %v455
    %459 = vrot.lane.b32.xlu0 %v451, 32
    %v460 = vpop.permute.xlu0 %459
    %v461 = vsel %vm164, %v460, 0
    %463 = vmatprep.subr.mxu0 0.0
    %464 = vmatpush1.msra.mxu0 %v153
    %465 = vmatprep.subr.mxu0 0.0
    %466 = vmatpush1.msra.mxu0 %v154
    %467 = vmatprep.subr.mxu0 0.0
    %468 = vmatpush1.msra.mxu0 %v155
    %469 = vmatprep.subr.mxu0 0.0
    %470 = vmatpush1.msra.mxu0 %v156
    %471 = vmatprep.subr.mxu0 0.0
    %472 = vmatpush1.msra.mxu0 0.0
    %473 = vmatprep.subr.mxu0 0.0
    %474 = vmatpush1.msra.mxu0 0.0
    %475 = vmatprep.subr.mxu0 0.0
    %476 = vmatpush1.msra.mxu0 0.0
    %477 = vmatprep.subr.mxu0 0.0
    %478 = vmatpush1.msra.mxu0 0.0
    %479 = vmatprep.subr.mxu0 0.0
    %480 = vmatpush1.msra.mxu0 0.0
    %481 = vmatprep.subr.mxu0 0.0
    %482 = vmatpush1.msra.mxu0 0.0
    %483 = vmatprep.subr.mxu0 0.0
    %484 = vmatpush1.msra.mxu0 0.0
    %485 = vmatprep.subr.mxu0 0.0
    %486 = vmatpush1.msra.mxu0 0.0
    %487 = vmatprep.subr.mxu0 0.0
    %488 = vmatpush1.msra.mxu0 0.0
    %489 = vmatprep.subr.mxu0 0.0
    %490 = vmatpush1.msra.mxu0 0.0
    %491 = vmatprep.subr.mxu0 0.0
    %492 = vmatpush1.msra.mxu0 0.0
    %493 = vmatprep.subr.mxu0 0.0
    %494 = vmatpush1.msra.mxu0 0.0
    %495 = vmatprep.subr.mxu0 0.0
    %496 = vmatpush1.msra.mxu0 0.0
    %497 = vmatprep.subr.mxu0 0.0
    %498 = vmatpush1.msra.mxu0 0.0
    %499 = vmatprep.subr.mxu0 0.0
    %500 = vmatpush1.msra.mxu0 0.0
    %501 = vmatprep.subr.mxu0 0.0
    %502 = vmatpush1.msra.mxu0 0.0
    %503 = vmatprep.subr.mxu0 0.0
    %504 = vmatpush1.msra.mxu0 0.0
    %505 = vmatprep.subr.mxu0 0.0
    %506 = vmatpush1.msra.mxu0 0.0
    %507 = vmatprep.subr.mxu0 0.0
    %508 = vmatpush1.msra.mxu0 0.0
    %509 = vmatprep.subr.mxu0 0.0
    %510 = vmatpush1.msra.mxu0 0.0
    %511 = vmatprep.subr.mxu0 0.0
    %512 = vmatpush1.msra.mxu0 0.0
    %513 = vmatprep.subr.mxu0 0.0
    %514 = vmatpush1.msra.mxu0 0.0
    %515 = vmatprep.subr.mxu0 0.0
    %516 = vmatpush1.msra.mxu0 0.0
    %517 = vmatprep.subr.mxu0 0.0
    %518 = vmatpush1.msra.mxu0 0.0
    %519 = vmatprep.subr.mxu0 0.0
    %520 = vmatpush1.msra.mxu0 0.0
    %521 = vmatprep.subr.mxu0 0.0
    %522 = vmatpush1.msra.mxu0 0.0
    %523 = vmatprep.subr.mxu0 0.0
    %524 = vmatpush1.msra.mxu0 0.0
    %525 = vmatprep.subr.mxu0 0.0
    %526 = vmatpush1.msra.mxu0 0.0
    %527 = vmatprep.mubr.f32.mxu0 0.0
    %528 = vmatmul.mubr.f32.gmra.mrb[0].mxu0 %v461
    %v529 = vpop.f32.mrb[0].mxu0
    %v530 = vadd.f32 %v456, %v529
    %v531 = vpop.f32.mrb[0].mxu0
    %532 = vdwg.mxu0
    %533 = vmatprep.subr.mxu0 0.0
    %534 = vmatpush1.msra.mxu0 %v140
    %535 = vmatprep.subr.mxu0 0.0
    %536 = vmatpush1.msra.mxu0 %v141
    %537 = vmatprep.subr.mxu0 0.0
    %538 = vmatpush1.msra.mxu0 %v142
    %539 = vmatprep.subr.mxu0 0.0
    %540 = vmatpush1.msra.mxu0 %v143
    %541 = vmatprep.subr.mxu0 0.0
    %542 = vmatpush1.msra.mxu0 0.0
    %543 = vmatprep.subr.mxu0 0.0
    %544 = vmatpush1.msra.mxu0 0.0
    %545 = vmatprep.subr.mxu0 0.0
    %546 = vmatpush1.msra.mxu0 0.0
    %547 = vmatprep.subr.mxu0 0.0
    %548 = vmatpush1.msra.mxu0 0.0
    %549 = vmatprep.subr.mxu0 0.0
    %550 = vmatpush1.msra.mxu0 0.0
    %551 = vmatprep.subr.mxu0 0.0
    %552 = vmatpush1.msra.mxu0 0.0
    %553 = vmatprep.subr.mxu0 0.0
    %554 = vmatpush1.msra.mxu0 0.0
    %555 = vmatprep.subr.mxu0 0.0
    %556 = vmatpush1.msra.mxu0 0.0
    %557 = vmatprep.subr.mxu0 0.0
    %558 = vmatpush1.msra.mxu0 0.0
    %559 = vmatprep.subr.mxu0 0.0
    %560 = vmatpush1.msra.mxu0 0.0
    %561 = vmatprep.subr.mxu0 0.0
    %562 = vmatpush1.msra.mxu0 0.0
    %563 = vmatprep.subr.mxu0 0.0
    %564 = vmatpush1.msra.mxu0 0.0
    %565 = vmatprep.subr.mxu0 0.0
    %566 = vmatpush1.msra.mxu0 0.0
    %567 = vmatprep.subr.mxu0 0.0
    %568 = vmatpush1.msra.mxu0 0.0
    %569 = vmatprep.subr.mxu0 0.0
    %570 = vmatpush1.msra.mxu0 0.0
    %571 = vmatprep.subr.mxu0 0.0
    %572 = vmatpush1.msra.mxu0 0.0
    %573 = vmatprep.subr.mxu0 0.0
    %574 = vmatpush1.msra.mxu0 0.0
    %575 = vmatprep.subr.mxu0 0.0
    %576 = vmatpush1.msra.mxu0 0.0
    %577 = vmatprep.subr.mxu0 0.0
    %578 = vmatpush1.msra.mxu0 0.0
    %579 = vmatprep.subr.mxu0 0.0
    %580 = vmatpush1.msra.mxu0 0.0
    %581 = vmatprep.subr.mxu0 0.0
    %582 = vmatpush1.msra.mxu0 0.0
    %583 = vmatprep.subr.mxu0 0.0
    %584 = vmatpush1.msra.mxu0 0.0
    %585 = vmatprep.subr.mxu0 0.0
    %586 = vmatpush1.msra.mxu0 0.0
    %587 = vmatprep.subr.mxu0 0.0
    %588 = vmatpush1.msra.mxu0 0.0
    %589 = vmatprep.subr.mxu0 0.0
    %590 = vmatpush1.msra.mxu0 0.0
    %591 = vmatprep.subr.mxu0 0.0
    %592 = vmatpush1.msra.mxu0 0.0
    %593 = vmatprep.subr.mxu0 0.0
    %594 = vmatpush1.msra.mxu0 0.0
    %595 = vmatprep.subr.mxu0 0.0
    %596 = vmatpush1.msra.mxu0 0.0
    %597 = vmatprep.mubr.f32.mxu0 0.0
    %598 = vmatmul.mubr.f32.gmra.mrb[0].mxu0 %v277
    %v599 = vpop.f32.mrb[0].mxu0
    %v600 = vadd.f32 0.0, %v599
    %v601 = vpop.f32.mrb[0].mxu0
    %602 = vdwg.mxu0
    %v604 = vrot.slane %v600, 6
    %v606 = vadd.f32 %v132, %v604
    %v607 = vxor.u32 %v606, 2147483648
    %v608 = vmul.f32 %v607, 1.442695
    %v609 = vpow.pop %v608
    %v610 = vadd.f32 %v609, 1.0
    %v611 = vrcp.pop %v610
    %v612 = vmul.f32 1.0, %v611
    %v613 = vmul.f32 %v612, 2.0
    %v614 = vsub.f32 %v613, 1.0
    %v616 = vrot.slane %v261, 6
    %v618 = vmul.f32 %v612, %v616
    %620 = vrot.lane.b32.xlu0 %v614, 64
    %v621 = vpop.permute.xlu0 %620
    %v623 = vmul.f32 %v612, %v621
    %625 = vrot.lane.b32.xlu0 %v623, 32
    %v626 = vpop.permute.xlu0 %625
    %v628 = vadd.f32 %v618, %v626
    %v629 = vtanh.pop %v628
    %631 = vrot.lane.b32.xlu0 %v629, 64
    %v632 = vpop.permute.xlu0 %631
    %v634 = vmul.f32 %v612, %v632
    %v636 = vrot.slane %v634, 2
    %637 = vrot.lane.b32.xlu0 %v636, 32
    %v638 = vpop.permute.xlu0 %637
    %v639 = vsel %vm164, %v638, 0
    %641 = vmatprep.subr.mxu0 0.0
    %642 = vmatpush1.msra.mxu0 %v144
    %643 = vmatprep.subr.mxu0 0.0
    %644 = vmatpush1.msra.mxu0 %v145
    %645 = vmatprep.subr.mxu0 0.0
    %646 = vmatpush1.msra.mxu0 %v146
    %647 = vmatprep.subr.mxu0 0.0
    %648 = vmatpush1.msra.mxu0 %v147
    %649 = vmatprep.subr.mxu0 0.0
    %650 = vmatpush1.msra.mxu0 0.0
    %651 = vmatprep.subr.mxu0 0.0
    %652 = vmatpush1.msra.mxu0 0.0
    %653 = vmatprep.subr.mxu0 0.0
    %654 = vmatpush1.msra.mxu0 0.0
    %655 = vmatprep.subr.mxu0 0.0
    %656 = vmatpush1.msra.mxu0 0.0
    %657 = vmatprep.subr.mxu0 0.0
    %658 = vmatpush1.msra.mxu0 0.0
    %659 = vmatprep.subr.mxu0 0.0
    %660 = vmatpush1.msra.mxu0 0.0
    %661 = vmatprep.subr.mxu0 0.0
    %662 = vmatpush1.msra.mxu0 0.0
    %663 = vmatprep.subr.mxu0 0.0
    %664 = vmatpush1.msra.mxu0 0.0
    %665 = vmatprep.subr.mxu0 0.0
    %666 = vmatpush1.msra.mxu0 0.0
    %667 = vmatprep.subr.mxu0 0.0
    %668 = vmatpush1.msra.mxu0 0.0
    %669 = vmatprep.subr.mxu0 0.0
    %670 = vmatpush1.msra.mxu0 0.0
    %671 = vmatprep.subr.mxu0 0.0
    %672 = vmatpush1.msra.mxu0 0.0
    %673 = vmatprep.subr.mxu0 0.0
    %674 = vmatpush1.msra.mxu0 0.0
    %675 = vmatprep.subr.mxu0 0.0
    %676 = vmatpush1.msra.mxu0 0.0
    %677 = vmatprep.subr.mxu0 0.0
    %678 = vmatpush1.msra.mxu0 0.0
    %679 = vmatprep.subr.mxu0 0.0
    %680 = vmatpush1.msra.mxu0 0.0
    %681 = vmatprep.subr.mxu0 0.0
    %682 = vmatpush1.msra.mxu0 0.0
    %683 = vmatprep.subr.mxu0 0.0
    %684 = vmatpush1.msra.mxu0 0.0
    %685 = vmatprep.subr.mxu0 0.0
    %686 = vmatpush1.msra.mxu0 0.0
    %687 = vmatprep.subr.mxu0 0.0
    %688 = vmatpush1.msra.mxu0 0.0
    %689 = vmatprep.subr.mxu0 0.0
    %690 = vmatpush1.msra.mxu0 0.0
    %691 = vmatprep.subr.mxu0 0.0
    %692 = vmatpush1.msra.mxu0 0.0
    %693 = vmatprep.subr.mxu0 0.0
    %694 = vmatpush1.msra.mxu0 0.0
    %695 = vmatprep.subr.mxu0 0.0
    %696 = vmatpush1.msra.mxu0 0.0
    %697 = vmatprep.subr.mxu0 0.0
    %698 = vmatpush1.msra.mxu0 0.0
    %699 = vmatprep.subr.mxu0 0.0
    %700 = vmatpush1.msra.mxu0 0.0
    %701 = vmatprep.subr.mxu0 0.0
    %702 = vmatpush1.msra.mxu0 0.0
    %703 = vmatprep.subr.mxu0 0.0
    %704 = vmatpush1.msra.mxu0 0.0
    %705 = vmatprep.mubr.f32.mxu0 0.0
    %706 = vmatmul.mubr.f32.gmra.mrb[0].mxu0 %v639
    %v707 = vpop.f32.mrb[0].mxu0
    %v708 = vadd.f32 %v272, %v707
    %v709 = vpop.f32.mrb[0].mxu0
    %710 = vdwg.mxu0
    %711 = vmatprep.subr.mxu0 0.0
    %712 = vmatpush1.msra.mxu0 %v148
    %713 = vmatprep.subr.mxu0 0.0
    %714 = vmatpush1.msra.mxu0 %v149
    %715 = vmatprep.subr.mxu0 0.0
    %716 = vmatpush1.msra.mxu0 %v150
    %717 = vmatprep.subr.mxu0 0.0
    %718 = vmatpush1.msra.mxu0 %v151
    %719 = vmatprep.subr.mxu0 0.0
    %720 = vmatpush1.msra.mxu0 0.0
    %721 = vmatprep.subr.mxu0 0.0
    %722 = vmatpush1.msra.mxu0 0.0
    %723 = vmatprep.subr.mxu0 0.0
    %724 = vmatpush1.msra.mxu0 0.0
    %725 = vmatprep.subr.mxu0 0.0
    %726 = vmatpush1.msra.mxu0 0.0
    %727 = vmatprep.subr.mxu0 0.0
    %728 = vmatpush1.msra.mxu0 0.0
    %729 = vmatprep.subr.mxu0 0.0
    %730 = vmatpush1.msra.mxu0 0.0
    %731 = vmatprep.subr.mxu0 0.0
    %732 = vmatpush1.msra.mxu0 0.0
    %733 = vmatprep.subr.mxu0 0.0
    %734 = vmatpush1.msra.mxu0 0.0
    %735 = vmatprep.subr.mxu0 0.0
    %736 = vmatpush1.msra.mxu0 0.0
    %737 = vmatprep.subr.mxu0 0.0
    %738 = vmatpush1.msra.mxu0 0.0
    %739 = vmatprep.subr.mxu0 0.0
    %740 = vmatpush1.msra.mxu0 0.0
    %741 = vmatprep.subr.mxu0 0.0
    %742 = vmatpush1.msra.mxu0 0.0
    %743 = vmatprep.subr.mxu0 0.0
    %744 = vmatpush1.msra.mxu0 0.0
    %745 = vmatprep.subr.mxu0 0.0
    %746 = vmatpush1.msra.mxu0 0.0
    %747 = vmatprep.subr.mxu0 0.0
    %748 = vmatpush1.msra.mxu0 0.0
    %749 = vmatprep.subr.mxu0 0.0
    %750 = vmatpush1.msra.mxu0 0.0
    %751 = vmatprep.subr.mxu0 0.0
    %752 = vmatpush1.msra.mxu0 0.0
    %753 = vmatprep.subr.mxu0 0.0
    %754 = vmatpush1.msra.mxu0 0.0
    %755 = vmatprep.subr.mxu0 0.0
    %756 = vmatpush1.msra.mxu0 0.0
    %757 = vmatprep.subr.mxu0 0.0
    %758 = vmatpush1.msra.mxu0 0.0
    %759 = vmatprep.subr.mxu0 0.0
    %760 = vmatpush1.msra.mxu0 0.0
    %761 = vmatprep.subr.mxu0 0.0
    %762 = vmatpush1.msra.mxu0 0.0
    %763 = vmatprep.subr.mxu0 0.0
    %764 = vmatpush1.msra.mxu0 0.0
    %765 = vmatprep.subr.mxu0 0.0
    %766 = vmatpush1.msra.mxu0 0.0
    %767 = vmatprep.subr.mxu0 0.0
    %768 = vmatpush1.msra.mxu0 0.0
    %769 = vmatprep.subr.mxu0 0.0
    %770 = vmatpush1.msra.mxu0 0.0
    %771 = vmatprep.subr.mxu0 0.0
    %772 = vmatpush1.msra.mxu0 0.0
    %773 = vmatprep.subr.mxu0 0.0
    %774 = vmatpush1.msra.mxu0 0.0
    %775 = vmatprep.mubr.f32.mxu0 0.0
    %776 = vmatmul.mubr.f32.gmra.mrb[0].mxu0 %v461
    %v777 = vpop.f32.mrb[0].mxu0
    %v778 = vadd.f32 0.0, %v777
    %v779 = vpop.f32.mrb[0].mxu0
    %780 = vdwg.mxu0
    %v781 = vadd.f32 %v708, %v778
    %v782 = vxor.u32 %v781, 2147483648
    %v783 = vmul.f32 %v782, 1.442695
    %v784 = vpow.pop %v783
    %v785 = vadd.f32 %v784, 1.0
    %v786 = vrcp.pop %v785
    %v787 = vmul.f32 1.0, %v786
    %v788 = vmul.f32 %v787, 2.0
    %v789 = vsub.f32 %v788, 1.0
    %v790 = vmul.f32 %v787, %v445
    %792 = vrot.lane.b32.xlu0 %v789, 64
    %v793 = vpop.permute.xlu0 %792
    %v795 = vmul.f32 %v787, %v793
    %797 = vrot.lane.b32.xlu0 %v795, 32
    %v798 = vpop.permute.xlu0 %797
    %v800 = vadd.f32 %v790, %v798
    %v801 = vtanh.pop %v800
    %803 = vrot.lane.b32.xlu0 %v801, 64
    %v804 = vpop.permute.xlu0 %803
    %v806 = vmul.f32 %v787, %v804
    %808 = vrot.lane.b32.xlu0 %v806, 32
    %v809 = vpop.permute.xlu0 %808
    %v810 = vsel %vm164, %v809, 0
    %812 = vmatprep.subr.mxu0 0.0
    %813 = vmatpush1.msra.mxu0 %v153
    %814 = vmatprep.subr.mxu0 0.0
    %815 = vmatpush1.msra.mxu0 %v154
    %816 = vmatprep.subr.mxu0 0.0
    %817 = vmatpush1.msra.mxu0 %v155
    %818 = vmatprep.subr.mxu0 0.0
    %819 = vmatpush1.msra.mxu0 %v156
    %820 = vmatprep.subr.mxu0 0.0
    %821 = vmatpush1.msra.mxu0 0.0
    %822 = vmatprep.subr.mxu0 0.0
    %823 = vmatpush1.msra.mxu0 0.0
    %824 = vmatprep.subr.mxu0 0.0
    %825 = vmatpush1.msra.mxu0 0.0
    %826 = vmatprep.subr.mxu0 0.0
    %827 = vmatpush1.msra.mxu0 0.0
    %828 = vmatprep.subr.mxu0 0.0
    %829 = vmatpush1.msra.mxu0 0.0
    %830 = vmatprep.subr.mxu0 0.0
    %831 = vmatpush1.msra.mxu0 0.0
    %832 = vmatprep.subr.mxu0 0.0
    %833 = vmatpush1.msra.mxu0 0.0
    %834 = vmatprep.subr.mxu0 0.0
    %835 = vmatpush1.msra.mxu0 0.0
    %836 = vmatprep.subr.mxu0 0.0
    %837 = vmatpush1.msra.mxu0 0.0
    %838 = vmatprep.subr.mxu0 0.0
    %839 = vmatpush1.msra.mxu0 0.0
    %840 = vmatprep.subr.mxu0 0.0
    %841 = vmatpush1.msra.mxu0 0.0
    %842 = vmatprep.subr.mxu0 0.0
    %843 = vmatpush1.msra.mxu0 0.0
    %844 = vmatprep.subr.mxu0 0.0
    %845 = vmatpush1.msra.mxu0 0.0
    %846 = vmatprep.subr.mxu0 0.0
    %847 = vmatpush1.msra.mxu0 0.0
    %848 = vmatprep.subr.mxu0 0.0
    %849 = vmatpush1.msra.mxu0 0.0
    %850 = vmatprep.subr.mxu0 0.0
    %851 = vmatpush1.msra.mxu0 0.0
    %852 = vmatprep.subr.mxu0 0.0
    %853 = vmatpush1.msra.mxu0 0.0
    %854 = vmatprep.subr.mxu0 0.0
    %855 = vmatpush1.msra.mxu0 0.0
    %856 = vmatprep.subr.mxu0 0.0
    %857 = vmatpush1.msra.mxu0 0.0
    %858 = vmatprep.subr.mxu0 0.0
    %859 = vmatpush1.msra.mxu0 0.0
    %860 = vmatprep.subr.mxu0 0.0
    %861 = vmatpush1.msra.mxu0 0.0
    %862 = vmatprep.subr.mxu0 0.0
    %863 = vmatpush1.msra.mxu0 0.0
    %864 = vmatprep.subr.mxu0 0.0
    %865 = vmatpush1.msra.mxu0 0.0
    %866 = vmatprep.subr.mxu0 0.0
    %867 = vmatpush1.msra.mxu0 0.0
    %868 = vmatprep.subr.mxu0 0.0
    %869 = vmatpush1.msra.mxu0 0.0
    %870 = vmatprep.subr.mxu0 0.0
    %871 = vmatpush1.msra.mxu0 0.0
    %872 = vmatprep.subr.mxu0 0.0
    %873 = vmatpush1.msra.mxu0 0.0
    %874 = vmatprep.subr.mxu0 0.0
    %875 = vmatpush1.msra.mxu0 0.0
    %876 = vmatprep.mubr.f32.mxu0 0.0
    %877 = vmatmul.mubr.f32.gmra.mrb[0].mxu0 %v810
    %v878 = vpop.f32.mrb[0].mxu0
    %v879 = vadd.f32 %v456, %v878
    %v880 = vpop.f32.mrb[0].mxu0
    %881 = vdwg.mxu0
    %882 = vmatprep.subr.mxu0 0.0
    %883 = vmatpush1.msra.mxu0 %v140
    %884 = vmatprep.subr.mxu0 0.0
    %885 = vmatpush1.msra.mxu0 %v141
    %886 = vmatprep.subr.mxu0 0.0
    %887 = vmatpush1.msra.mxu0 %v142
    %888 = vmatprep.subr.mxu0 0.0
    %889 = vmatpush1.msra.mxu0 %v143
    %890 = vmatprep.subr.mxu0 0.0
    %891 = vmatpush1.msra.mxu0 0.0
    %892 = vmatprep.subr.mxu0 0.0
    %893 = vmatpush1.msra.mxu0 0.0
    %894 = vmatprep.subr.mxu0 0.0
    %895 = vmatpush1.msra.mxu0 0.0
    %896 = vmatprep.subr.mxu0 0.0
    %897 = vmatpush1.msra.mxu0 0.0
    %898 = vmatprep.subr.mxu0 0.0
    %899 = vmatpush1.msra.mxu0 0.0
    %900 = vmatprep.subr.mxu0 0.0
    %901 = vmatpush1.msra.mxu0 0.0
    %902 = vmatprep.subr.mxu0 0.0
    %903 = vmatpush1.msra.mxu0 0.0
    %904 = vmatprep.subr.mxu0 0.0
    %905 = vmatpush1.msra.mxu0 0.0
    %906 = vmatprep.subr.mxu0 0.0
    %907 = vmatpush1.msra.mxu0 0.0
    %908 = vmatprep.subr.mxu0 0.0
    %909 = vmatpush1.msra.mxu0 0.0
    %910 = vmatprep.subr.mxu0 0.0
    %911 = vmatpush1.msra.mxu0 0.0
    %912 = vmatprep.subr.mxu0 0.0
    %913 = vmatpush1.msra.mxu0 0.0
    %914 = vmatprep.subr.mxu0 0.0
    %915 = vmatpush1.msra.mxu0 0.0
    %916 = vmatprep.subr.mxu0 0.0
    %917 = vmatpush1.msra.mxu0 0.0
    %918 = vmatprep.subr.mxu0 0.0
    %919 = vmatpush1.msra.mxu0 0.0
    %920 = vmatprep.subr.mxu0 0.0
    %921 = vmatpush1.msra.mxu0 0.0
    %922 = vmatprep.subr.mxu0 0.0
    %923 = vmatpush1.msra.mxu0 0.0
    %924 = vmatprep.subr.mxu0 0.0
    %925 = vmatpush1.msra.mxu0 0.0
    %926 = vmatprep.subr.mxu0 0.0
    %927 = vmatpush1.msra.mxu0 0.0
    %928 = vmatprep.subr.mxu0 0.0
    %929 = vmatpush1.msra.mxu0 0.0
    %930 = vmatprep.subr.mxu0 0.0
    %931 = vmatpush1.msra.mxu0 0.0
    %932 = vmatprep.subr.mxu0 0.0
    %933 = vmatpush1.msra.mxu0 0.0
    %934 = vmatprep.subr.mxu0 0.0
    %935 = vmatpush1.msra.mxu0 0.0
    %936 = vmatprep.subr.mxu0 0.0
    %937 = vmatpush1.msra.mxu0 0.0
    %938 = vmatprep.subr.mxu0 0.0
    %939 = vmatpush1.msra.mxu0 0.0
    %940 = vmatprep.subr.mxu0 0.0
    %941 = vmatpush1.msra.mxu0 0.0
    %942 = vmatprep.subr.mxu0 0.0
    %943 = vmatpush1.msra.mxu0 0.0
    %944 = vmatprep.subr.mxu0 0.0
    %945 = vmatpush1.msra.mxu0 0.0
    %946 = vmatprep.mubr.f32.mxu0 0.0
    %947 = vmatmul.mubr.f32.gmra.mrb[0].mxu0 %v639
    %v948 = vpop.f32.mrb[0].mxu0
    %v949 = vadd.f32 0.0, %v948
    %v950 = vpop.f32.mrb[0].mxu0
    %951 = vdwg.mxu0
    %v953 = vrot.slane %v949, 4
    %v955 = vadd.f32 %v132, %v953
    %v956 = vxor.u32 %v955, 2147483648
    %v957 = vmul.f32 %v956, 1.442695
    %v958 = vpow.pop %v957
    %v959 = vadd.f32 %v958, 1.0
    %v960 = vrcp.pop %v959
    %v961 = vmul.f32 1.0, %v960
    %v962 = vmul.f32 %v961, 2.0
    %v963 = vsub.f32 %v962, 1.0
    %v965 = vrot.slane %v628, 6
    %v967 = vmul.f32 %v961, %v965
    %969 = vrot.lane.b32.xlu0 %v963, 64
    %v970 = vpop.permute.xlu0 %969
    %v972 = vmul.f32 %v961, %v970
    %974 = vrot.lane.b32.xlu0 %v972, 32
    %v975 = vpop.permute.xlu0 %974
    %v977 = vadd.f32 %v967, %v975
    %v978 = vtanh.pop %v977
    %980 = vrot.lane.b32.xlu0 %v978, 64
    %v981 = vpop.permute.xlu0 %980
    %v983 = vmul.f32 %v961, %v981
    %v985 = vrot.slane %v983, 4
    %986 = vrot.lane.b32.xlu0 %v985, 32
    %v987 = vpop.permute.xlu0 %986
    %v988 = vsel %vm164, %v987, 0
    %990 = vmatprep.subr.mxu0 0.0
    %991 = vmatpush1.msra.mxu0 %v144
    %992 = vmatprep.subr.mxu0 0.0
    %993 = vmatpush1.msra.mxu0 %v145
    %994 = vmatprep.subr.mxu0 0.0
    %995 = vmatpush1.msra.mxu0 %v146
    %996 = vmatprep.subr.mxu0 0.0
    %997 = vmatpush1.msra.mxu0 %v147
    %998 = vmatprep.subr.mxu0 0.0
    %999 = vmatpush1.msra.mxu0 0.0
    %1000 = vmatprep.subr.mxu0 0.0
    %1001 = vmatpush1.msra.mxu0 0.0
    %1002 = vmatprep.subr.mxu0 0.0
    %1003 = vmatpush1.msra.mxu0 0.0
    %1004 = vmatprep.subr.mxu0 0.0
    %1005 = vmatpush1.msra.mxu0 0.0
    %1006 = vmatprep.subr.mxu0 0.0
    %1007 = vmatpush1.msra.mxu0 0.0
    %1008 = vmatprep.subr.mxu0 0.0
    %1009 = vmatpush1.msra.mxu0 0.0
    %1010 = vmatprep.subr.mxu0 0.0
    %1011 = vmatpush1.msra.mxu0 0.0
    %1012 = vmatprep.subr.mxu0 0.0
    %1013 = vmatpush1.msra.mxu0 0.0
    %1014 = vmatprep.subr.mxu0 0.0
    %1015 = vmatpush1.msra.mxu0 0.0
    %1016 = vmatprep.subr.mxu0 0.0
    %1017 = vmatpush1.msra.mxu0 0.0
    %1018 = vmatprep.subr.mxu0 0.0
    %1019 = vmatpush1.msra.mxu0 0.0
    %1020 = vmatprep.subr.mxu0 0.0
    %1021 = vmatpush1.msra.mxu0 0.0
    %1022 = vmatprep.subr.mxu0 0.0
    %1023 = vmatpush1.msra.mxu0 0.0
    %1024 = vmatprep.subr.mxu0 0.0
    %1025 = vmatpush1.msra.mxu0 0.0
    %1026 = vmatprep.subr.mxu0 0.0
    %1027 = vmatpush1.msra.mxu0 0.0
    %1028 = vmatprep.subr.mxu0 0.0
    %1029 = vmatpush1.msra.mxu0 0.0
    %1030 = vmatprep.subr.mxu0 0.0
    %1031 = vmatpush1.msra.mxu0 0.0
    %1032 = vmatprep.subr.mxu0 0.0
    %1033 = vmatpush1.msra.mxu0 0.0
    %1034 = vmatprep.subr.mxu0 0.0
    %1035 = vmatpush1.msra.mxu0 0.0
    %1036 = vmatprep.subr.mxu0 0.0
    %1037 = vmatpush1.msra.mxu0 0.0
    %1038 = vmatprep.subr.mxu0 0.0
    %1039 = vmatpush1.msra.mxu0 0.0
    %1040 = vmatprep.subr.mxu0 0.0
    %1041 = vmatpush1.msra.mxu0 0.0
    %1042 = vmatprep.subr.mxu0 0.0
    %1043 = vmatpush1.msra.mxu0 0.0
    %1044 = vmatprep.subr.mxu0 0.0
    %1045 = vmatpush1.msra.mxu0 0.0
    %1046 = vmatprep.subr.mxu0 0.0
    %1047 = vmatpush1.msra.mxu0 0.0
    %1048 = vmatprep.subr.mxu0 0.0
    %1049 = vmatpush1.msra.mxu0 0.0
    %1050 = vmatprep.subr.mxu0 0.0
    %1051 = vmatpush1.msra.mxu0 0.0
    %1052 = vmatprep.subr.mxu0 0.0
    %1053 = vmatpush1.msra.mxu0 0.0
    %1054 = vmatprep.mubr.f32.mxu0 0.0
    %1055 = vmatmul.mubr.f32.gmra.mrb[0].mxu0 %v988
    %v1056 = vpop.f32.mrb[0].mxu0
    %v1057 = vadd.f32 %v272, %v1056
    %v1058 = vpop.f32.mrb[0].mxu0
    %1059 = vdwg.mxu0
    %1060 = vmatprep.subr.mxu0 0.0
    %1061 = vmatpush1.msra.mxu0 %v148
    %1062 = vmatprep.subr.mxu0 0.0
    %1063 = vmatpush1.msra.mxu0 %v149
    %1064 = vmatprep.subr.mxu0 0.0
    %1065 = vmatpush1.msra.mxu0 %v150
    %1066 = vmatprep.subr.mxu0 0.0
    %1067 = vmatpush1.msra.mxu0 %v151
    %1068 = vmatprep.subr.mxu0 0.0
    %1069 = vmatpush1.msra.mxu0 0.0
    %1070 = vmatprep.subr.mxu0 0.0
    %1071 = vmatpush1.msra.mxu0 0.0
    %1072 = vmatprep.subr.mxu0 0.0
    %1073 = vmatpush1.msra.mxu0 0.0
    %1074 = vmatprep.subr.mxu0 0.0
    %1075 = vmatpush1.msra.mxu0 0.0
    %1076 = vmatprep.subr.mxu0 0.0
    %1077 = vmatpush1.msra.mxu0 0.0
    %1078 = vmatprep.subr.mxu0 0.0
    %1079 = vmatpush1.msra.mxu0 0.0
    %1080 = vmatprep.subr.mxu0 0.0
    %1081 = vmatpush1.msra.mxu0 0.0
    %1082 = vmatprep.subr.mxu0 0.0
    %1083 = vmatpush1.msra.mxu0 0.0
    %1084 = vmatprep.subr.mxu0 0.0
    %1085 = vmatpush1.msra.mxu0 0.0
    %1086 = vmatprep.subr.mxu0 0.0
    %1087 = vmatpush1.msra.mxu0 0.0
    %1088 = vmatprep.subr.mxu0 0.0
    %1089 = vmatpush1.msra.mxu0 0.0
    %1090 = vmatprep.subr.mxu0 0.0
    %1091 = vmatpush1.msra.mxu0 0.0
    %1092 = vmatprep.subr.mxu0 0.0
    %1093 = vmatpush1.msra.mxu0 0.0
    %1094 = vmatprep.subr.mxu0 0.0
    %1095 = vmatpush1.msra.mxu0 0.0
    %1096 = vmatprep.subr.mxu0 0.0
    %1097 = vmatpush1.msra.mxu0 0.0
    %1098 = vmatprep.subr.mxu0 0.0
    %1099 = vmatpush1.msra.mxu0 0.0
    %1100 = vmatprep.subr.mxu0 0.0
    %1101 = vmatpush1.msra.mxu0 0.0
    %1102 = vmatprep.subr.mxu0 0.0
    %1103 = vmatpush1.msra.mxu0 0.0
    %1104 = vmatprep.subr.mxu0 0.0
    %1105 = vmatpush1.msra.mxu0 0.0
    %1106 = vmatprep.subr.mxu0 0.0
    %1107 = vmatpush1.msra.mxu0 0.0
    %1108 = vmatprep.subr.mxu0 0.0
    %1109 = vmatpush1.msra.mxu0 0.0
    %1110 = vmatprep.subr.mxu0 0.0
    %1111 = vmatpush1.msra.mxu0 0.0
    %1112 = vmatprep.subr.mxu0 0.0
    %1113 = vmatpush1.msra.mxu0 0.0
    %1114 = vmatprep.subr.mxu0 0.0
    %1115 = vmatpush1.msra.mxu0 0.0
    %1116 = vmatprep.subr.mxu0 0.0
    %1117 = vmatpush1.msra.mxu0 0.0
    %1118 = vmatprep.subr.mxu0 0.0
    %1119 = vmatpush1.msra.mxu0 0.0
    %1120 = vmatprep.subr.mxu0 0.0
    %1121 = vmatpush1.msra.mxu0 0.0
    %1122 = vmatprep.subr.mxu0 0.0
    %1123 = vmatpush1.msra.mxu0 0.0
    %1124 = vmatprep.mubr.f32.mxu0 0.0
    %1125 = vmatmul.mubr.f32.gmra.mrb[0].mxu0 %v810
    %v1126 = vpop.f32.mrb[0].mxu0
    %v1127 = vadd.f32 0.0, %v1126
    %v1128 = vpop.f32.mrb[0].mxu0
    %1129 = vdwg.mxu0
    %v1130 = vadd.f32 %v1057, %v1127
    %v1131 = vxor.u32 %v1130, 2147483648
    %v1132 = vmul.f32 %v1131, 1.442695
    %v1133 = vpow.pop %v1132
    %v1134 = vadd.f32 %v1133, 1.0
    %v1135 = vrcp.pop %v1134
    %v1136 = vmul.f32 1.0, %v1135
    %v1137 = vmul.f32 %v1136, 2.0
    %v1138 = vsub.f32 %v1137, 1.0
    %v1139 = vmul.f32 %v1136, %v800
    %1141 = vrot.lane.b32.xlu0 %v1138, 64
    %v1142 = vpop.permute.xlu0 %1141
    %v1144 = vmul.f32 %v1136, %v1142
    %1146 = vrot.lane.b32.xlu0 %v1144, 32
    %v1147 = vpop.permute.xlu0 %1146
    %v1149 = vadd.f32 %v1139, %v1147
    %v1150 = vtanh.pop %v1149
    %1152 = vrot.lane.b32.xlu0 %v1150, 64
    %v1153 = vpop.permute.xlu0 %1152
    %v1155 = vmul.f32 %v1136, %v1153
    %1157 = vrot.lane.b32.xlu0 %v1155, 32
    %v1158 = vpop.permute.xlu0 %1157
    %v1159 = vsel %vm164, %v1158, 0
    %1161 = vmatprep.subr.mxu0 0.0
    %1162 = vmatpush1.msra.mxu0 %v153
    %1163 = vmatprep.subr.mxu0 0.0
    %1164 = vmatpush1.msra.mxu0 %v154
    %1165 = vmatprep.subr.mxu0 0.0
    %1166 = vmatpush1.msra.mxu0 %v155
    %1167 = vmatprep.subr.mxu0 0.0
    %1168 = vmatpush1.msra.mxu0 %v156
    %1169 = vmatprep.subr.mxu0 0.0
    %1170 = vmatpush1.msra.mxu0 0.0
    %1171 = vmatprep.subr.mxu0 0.0
    %1172 = vmatpush1.msra.mxu0 0.0
    %1173 = vmatprep.subr.mxu0 0.0
    %1174 = vmatpush1.msra.mxu0 0.0
    %1175 = vmatprep.subr.mxu0 0.0
    %1176 = vmatpush1.msra.mxu0 0.0
    %1177 = vmatprep.subr.mxu0 0.0
    %1178 = vmatpush1.msra.mxu0 0.0
    %1179 = vmatprep.subr.mxu0 0.0
    %1180 = vmatpush1.msra.mxu0 0.0
    %1181 = vmatprep.subr.mxu0 0.0
    %1182 = vmatpush1.msra.mxu0 0.0
    %1183 = vmatprep.subr.mxu0 0.0
    %1184 = vmatpush1.msra.mxu0 0.0
    %1185 = vmatprep.subr.mxu0 0.0
    %1186 = vmatpush1.msra.mxu0 0.0
    %1187 = vmatprep.subr.mxu0 0.0
    %1188 = vmatpush1.msra.mxu0 0.0
    %1189 = vmatprep.subr.mxu0 0.0
    %1190 = vmatpush1.msra.mxu0 0.0
    %1191 = vmatprep.subr.mxu0 0.0
    %1192 = vmatpush1.msra.mxu0 0.0
    %1193 = vmatprep.subr.mxu0 0.0
    %1194 = vmatpush1.msra.mxu0 0.0
    %1195 = vmatprep.subr.mxu0 0.0
    %1196 = vmatpush1.msra.mxu0 0.0
    %1197 = vmatprep.subr.mxu0 0.0
    %1198 = vmatpush1.msra.mxu0 0.0
    %1199 = vmatprep.subr.mxu0 0.0
    %1200 = vmatpush1.msra.mxu0 0.0
    %1201 = vmatprep.subr.mxu0 0.0
    %1202 = vmatpush1.msra.mxu0 0.0
    %1203 = vmatprep.subr.mxu0 0.0
    %1204 = vmatpush1.msra.mxu0 0.0
    %1205 = vmatprep.subr.mxu0 0.0
    %1206 = vmatpush1.msra.mxu0 0.0
    %1207 = vmatprep.subr.mxu0 0.0
    %1208 = vmatpush1.msra.mxu0 0.0
    %1209 = vmatprep.subr.mxu0 0.0
    %1210 = vmatpush1.msra.mxu0 0.0
    %1211 = vmatprep.subr.mxu0 0.0
    %1212 = vmatpush1.msra.mxu0 0.0
    %1213 = vmatprep.subr.mxu0 0.0
    %1214 = vmatpush1.msra.mxu0 0.0
    %1215 = vmatprep.subr.mxu0 0.0
    %1216 = vmatpush1.msra.mxu0 0.0
    %1217 = vmatprep.subr.mxu0 0.0
    %1218 = vmatpush1.msra.mxu0 0.0
    %1219 = vmatprep.subr.mxu0 0.0
    %1220 = vmatpush1.msra.mxu0 0.0
    %1221 = vmatprep.subr.mxu0 0.0
    %1222 = vmatpush1.msra.mxu0 0.0
    %1223 = vmatprep.subr.mxu0 0.0
    %1224 = vmatpush1.msra.mxu0 0.0
    %1225 = vmatprep.mubr.f32.mxu0 0.0
    %1226 = vmatmul.mubr.f32.gmra.mrb[0].mxu0 %v1159
    %v1227 = vpop.f32.mrb[0].mxu0
    %v1228 = vadd.f32 %v456, %v1227
    %v1229 = vpop.f32.mrb[0].mxu0
    %1230 = vdwg.mxu0
    %1231 = vmatprep.subr.mxu0 0.0
    %1232 = vmatpush1.msra.mxu0 %v140
    %1233 = vmatprep.subr.mxu0 0.0
    %1234 = vmatpush1.msra.mxu0 %v141
    %1235 = vmatprep.subr.mxu0 0.0
    %1236 = vmatpush1.msra.mxu0 %v142
    %1237 = vmatprep.subr.mxu0 0.0
    %1238 = vmatpush1.msra.mxu0 %v143
    %1239 = vmatprep.subr.mxu0 0.0
    %1240 = vmatpush1.msra.mxu0 0.0
    %1241 = vmatprep.subr.mxu0 0.0
    %1242 = vmatpush1.msra.mxu0 0.0
    %1243 = vmatprep.subr.mxu0 0.0
    %1244 = vmatpush1.msra.mxu0 0.0
    %1245 = vmatprep.subr.mxu0 0.0
    %1246 = vmatpush1.msra.mxu0 0.0
    %1247 = vmatprep.subr.mxu0 0.0
    %1248 = vmatpush1.msra.mxu0 0.0
    %1249 = vmatprep.subr.mxu0 0.0
    %1250 = vmatpush1.msra.mxu0 0.0
    %1251 = vmatprep.subr.mxu0 0.0
    %1252 = vmatpush1.msra.mxu0 0.0
    %1253 = vmatprep.subr.mxu0 0.0
    %1254 = vmatpush1.msra.mxu0 0.0
    %1255 = vmatprep.subr.mxu0 0.0
    %1256 = vmatpush1.msra.mxu0 0.0
    %1257 = vmatprep.subr.mxu0 0.0
    %1258 = vmatpush1.msra.mxu0 0.0
    %1259 = vmatprep.subr.mxu0 0.0
    %1260 = vmatpush1.msra.mxu0 0.0
    %1261 = vmatprep.subr.mxu0 0.0
    %1262 = vmatpush1.msra.mxu0 0.0
    %1263 = vmatprep.subr.mxu0 0.0
    %1264 = vmatpush1.msra.mxu0 0.0
    %1265 = vmatprep.subr.mxu0 0.0
    %1266 = vmatpush1.msra.mxu0 0.0
    %1267 = vmatprep.subr.mxu0 0.0
    %1268 = vmatpush1.msra.mxu0 0.0
    %1269 = vmatprep.subr.mxu0 0.0
    %1270 = vmatpush1.msra.mxu0 0.0
    %1271 = vmatprep.subr.mxu0 0.0
    %1272 = vmatpush1.msra.mxu0 0.0
    %1273 = vmatprep.subr.mxu0 0.0
    %1274 = vmatpush1.msra.mxu0 0.0
    %1275 = vmatprep.subr.mxu0 0.0
    %1276 = vmatpush1.msra.mxu0 0.0
    %1277 = vmatprep.subr.mxu0 0.0
    %1278 = vmatpush1.msra.mxu0 0.0
    %1279 = vmatprep.subr.mxu0 0.0
    %1280 = vmatpush1.msra.mxu0 0.0
    %1281 = vmatprep.subr.mxu0 0.0
    %1282 = vmatpush1.msra.mxu0 0.0
    %1283 = vmatprep.subr.mxu0 0.0
    %1284 = vmatpush1.msra.mxu0 0.0
    %1285 = vmatprep.subr.mxu0 0.0
    %1286 = vmatpush1.msra.mxu0 0.0
    %1287 = vmatprep.subr.mxu0 0.0
    %1288 = vmatpush1.msra.mxu0 0.0
    %1289 = vmatprep.subr.mxu0 0.0
    %1290 = vmatpush1.msra.mxu0 0.0
    %1291 = vmatprep.subr.mxu0 0.0
    %1292 = vmatpush1.msra.mxu0 0.0
    %1293 = vmatprep.subr.mxu0 0.0
    %1294 = vmatpush1.msra.mxu0 0.0
    %1295 = vmatprep.mubr.f32.mxu0 0.0
    %1296 = vmatmul.mubr.f32.gmra.mrb[0].mxu0 %v988
    %v1297 = vpop.f32.mrb[0].mxu0
    %v1298 = vadd.f32 0.0, %v1297
    %v1299 = vpop.f32.mrb[0].mxu0
    %1300 = vdwg.mxu0
    %v1302 = vrot.slane %v1298, 2
    %v1304 = vadd.f32 %v132, %v1302
    %v1305 = vxor.u32 %v1304, 2147483648
    %v1306 = vmul.f32 %v1305, 1.442695
    %v1307 = vpow.pop %v1306
    %v1308 = vadd.f32 %v1307, 1.0
    %v1309 = vrcp.pop %v1308
    %v1310 = vmul.f32 1.0, %v1309
    %v1311 = vmul.f32 %v1310, 2.0
    %v1312 = vsub.f32 %v1311, 1.0
    %v1314 = vrot.slane %v977, 6
    %v1316 = vmul.f32 %v1310, %v1314
    %1318 = vrot.lane.b32.xlu0 %v1312, 64
    %v1319 = vpop.permute.xlu0 %1318
    %v1321 = vmul.f32 %v1310, %v1319
    %1323 = vrot.lane.b32.xlu0 %v1321, 32
    %v1324 = vpop.permute.xlu0 %1323
    %v1326 = vadd.f32 %v1316, %v1324
    %v1327 = vtanh.pop %v1326
    %1329 = vrot.lane.b32.xlu0 %v1327, 64
    %v1330 = vpop.permute.xlu0 %1329
    %v1332 = vmul.f32 %v1310, %v1330
    %v1334 = vrot.slane %v1332, 6
    %1335 = vrot.lane.b32.xlu0 %v1334, 32
    %v1336 = vpop.permute.xlu0 %1335
    %v1337 = vsel %vm164, %v1336, 0
    %1339 = vmatprep.subr.mxu0 0.0
    %1340 = vmatpush1.msra.mxu0 %v144
    %1341 = vmatprep.subr.mxu0 0.0
    %1342 = vmatpush1.msra.mxu0 %v145
    %1343 = vmatprep.subr.mxu0 0.0
    %1344 = vmatpush1.msra.mxu0 %v146
    %1345 = vmatprep.subr.mxu0 0.0
    %1346 = vmatpush1.msra.mxu0 %v147
    %1347 = vmatprep.subr.mxu0 0.0
    %1348 = vmatpush1.msra.mxu0 0.0
    %1349 = vmatprep.subr.mxu0 0.0
    %1350 = vmatpush1.msra.mxu0 0.0
    %1351 = vmatprep.subr.mxu0 0.0
    %1352 = vmatpush1.msra.mxu0 0.0
    %1353 = vmatprep.subr.mxu0 0.0
    %1354 = vmatpush1.msra.mxu0 0.0
    %1355 = vmatprep.subr.mxu0 0.0
    %1356 = vmatpush1.msra.mxu0 0.0
    %1357 = vmatprep.subr.mxu0 0.0
    %1358 = vmatpush1.msra.mxu0 0.0
    %1359 = vmatprep.subr.mxu0 0.0
    %1360 = vmatpush1.msra.mxu0 0.0
    %1361 = vmatprep.subr.mxu0 0.0
    %1362 = vmatpush1.msra.mxu0 0.0
    %1363 = vmatprep.subr.mxu0 0.0
    %1364 = vmatpush1.msra.mxu0 0.0
    %1365 = vmatprep.subr.mxu0 0.0
    %1366 = vmatpush1.msra.mxu0 0.0
    %1367 = vmatprep.subr.mxu0 0.0
    %1368 = vmatpush1.msra.mxu0 0.0
    %1369 = vmatprep.subr.mxu0 0.0
    %1370 = vmatpush1.msra.mxu0 0.0
    %1371 = vmatprep.subr.mxu0 0.0
    %1372 = vmatpush1.msra.mxu0 0.0
    %1373 = vmatprep.subr.mxu0 0.0
    %1374 = vmatpush1.msra.mxu0 0.0
    %1375 = vmatprep.subr.mxu0 0.0
    %1376 = vmatpush1.msra.mxu0 0.0
    %1377 = vmatprep.subr.mxu0 0.0
    %1378 = vmatpush1.msra.mxu0 0.0
    %1379 = vmatprep.subr.mxu0 0.0
    %1380 = vmatpush1.msra.mxu0 0.0
    %1381 = vmatprep.subr.mxu0 0.0
    %1382 = vmatpush1.msra.mxu0 0.0
    %1383 = vmatprep.subr.mxu0 0.0
    %1384 = vmatpush1.msra.mxu0 0.0
    %1385 = vmatprep.subr.mxu0 0.0
    %1386 = vmatpush1.msra.mxu0 0.0
    %1387 = vmatprep.subr.mxu0 0.0
    %1388 = vmatpush1.msra.mxu0 0.0
    %1389 = vmatprep.subr.mxu0 0.0
    %1390 = vmatpush1.msra.mxu0 0.0
    %1391 = vmatprep.subr.mxu0 0.0
    %1392 = vmatpush1.msra.mxu0 0.0
    %1393 = vmatprep.subr.mxu0 0.0
    %1394 = vmatpush1.msra.mxu0 0.0
    %1395 = vmatprep.subr.mxu0 0.0
    %1396 = vmatpush1.msra.mxu0 0.0
    %1397 = vmatprep.subr.mxu0 0.0
    %1398 = vmatpush1.msra.mxu0 0.0
    %1399 = vmatprep.subr.mxu0 0.0
    %1400 = vmatpush1.msra.mxu0 0.0
    %1401 = vmatprep.subr.mxu0 0.0
    %1402 = vmatpush1.msra.mxu0 0.0
    %1403 = vmatprep.mubr.f32.mxu0 0.0
    %1404 = vmatmul.mubr.f32.gmra.mrb[0].mxu0 %v1337
    %v1405 = vpop.f32.mrb[0].mxu0
    %v1406 = vadd.f32 %v272, %v1405
    %v1407 = vpop.f32.mrb[0].mxu0
    %1408 = vdwg.mxu0
    %1409 = vmatprep.subr.mxu0 0.0
    %1410 = vmatpush1.msra.mxu0 %v148
    %1411 = vmatprep.subr.mxu0 0.0
    %1412 = vmatpush1.msra.mxu0 %v149
    %1413 = vmatprep.subr.mxu0 0.0
    %1414 = vmatpush1.msra.mxu0 %v150
    %1415 = vmatprep.subr.mxu0 0.0
    %1416 = vmatpush1.msra.mxu0 %v151
    %1417 = vmatprep.subr.mxu0 0.0
    %1418 = vmatpush1.msra.mxu0 0.0
    %1419 = vmatprep.subr.mxu0 0.0
    %1420 = vmatpush1.msra.mxu0 0.0
    %1421 = vmatprep.subr.mxu0 0.0
    %1422 = vmatpush1.msra.mxu0 0.0
    %1423 = vmatprep.subr.mxu0 0.0
    %1424 = vmatpush1.msra.mxu0 0.0
    %1425 = vmatprep.subr.mxu0 0.0
    %1426 = vmatpush1.msra.mxu0 0.0
    %1427 = vmatprep.subr.mxu0 0.0
    %1428 = vmatpush1.msra.mxu0 0.0
    %1429 = vmatprep.subr.mxu0 0.0
    %1430 = vmatpush1.msra.mxu0 0.0
    %1431 = vmatprep.subr.mxu0 0.0
    %1432 = vmatpush1.msra.mxu0 0.0
    %1433 = vmatprep.subr.mxu0 0.0
    %1434 = vmatpush1.msra.mxu0 0.0
    %1435 = vmatprep.subr.mxu0 0.0
    %1436 = vmatpush1.msra.mxu0 0.0
    %1437 = vmatprep.subr.mxu0 0.0
    %1438 = vmatpush1.msra.mxu0 0.0
    %1439 = vmatprep.subr.mxu0 0.0
    %1440 = vmatpush1.msra.mxu0 0.0
    %1441 = vmatprep.subr.mxu0 0.0
    %1442 = vmatpush1.msra.mxu0 0.0
    %1443 = vmatprep.subr.mxu0 0.0
    %1444 = vmatpush1.msra.mxu0 0.0
    %1445 = vmatprep.subr.mxu0 0.0
    %1446 = vmatpush1.msra.mxu0 0.0
    %1447 = vmatprep.subr.mxu0 0.0
    %1448 = vmatpush1.msra.mxu0 0.0
    %1449 = vmatprep.subr.mxu0 0.0
    %1450 = vmatpush1.msra.mxu0 0.0
    %1451 = vmatprep.subr.mxu0 0.0
    %1452 = vmatpush1.msra.mxu0 0.0
    %1453 = vmatprep.subr.mxu0 0.0
    %1454 = vmatpush1.msra.mxu0 0.0
    %1455 = vmatprep.subr.mxu0 0.0
    %1456 = vmatpush1.msra.mxu0 0.0
    %1457 = vmatprep.subr.mxu0 0.0
    %1458 = vmatpush1.msra.mxu0 0.0
    %1459 = vmatprep.subr.mxu0 0.0
    %1460 = vmatpush1.msra.mxu0 0.0
    %1461 = vmatprep.subr.mxu0 0.0
    %1462 = vmatpush1.msra.mxu0 0.0
    %1463 = vmatprep.subr.mxu0 0.0
    %1464 = vmatpush1.msra.mxu0 0.0
    %1465 = vmatprep.subr.mxu0 0.0
    %1466 = vmatpush1.msra.mxu0 0.0
    %1467 = vmatprep.subr.mxu0 0.0
    %1468 = vmatpush1.msra.mxu0 0.0
    %1469 = vmatprep.subr.mxu0 0.0
    %1470 = vmatpush1.msra.mxu0 0.0
    %1471 = vmatprep.subr.mxu0 0.0
    %1472 = vmatpush1.msra.mxu0 0.0
    %1473 = vmatprep.mubr.f32.mxu0 0.0
    %1474 = vmatmul.mubr.f32.gmra.mrb[0].mxu0 %v1159
    %v1475 = vpop.f32.mrb[0].mxu0
    %v1476 = vadd.f32 0.0, %v1475
    %v1477 = vpop.f32.mrb[0].mxu0
    %1478 = vdwg.mxu0
    %v1479 = vadd.f32 %v1406, %v1476
    %v1480 = vxor.u32 %v1479, 2147483648
    %v1481 = vmul.f32 %v1480, 1.442695
    %v1482 = vpow.pop %v1481
    %v1483 = vadd.f32 %v1482, 1.0
    %v1484 = vrcp.pop %v1483
    %v1485 = vmul.f32 1.0, %v1484
    %v1486 = vmul.f32 %v1485, 2.0
    %v1487 = vsub.f32 %v1486, 1.0
    %v1488 = vmul.f32 %v1485, %v1149
    %1490 = vrot.lane.b32.xlu0 %v1487, 64
    %v1491 = vpop.permute.xlu0 %1490
    %v1493 = vmul.f32 %v1485, %v1491
    %1495 = vrot.lane.b32.xlu0 %v1493, 32
    %v1496 = vpop.permute.xlu0 %1495
    %v1498 = vadd.f32 %v1488, %v1496
    %v1499 = vtanh.pop %v1498
    %1501 = vrot.lane.b32.xlu0 %v1499, 64
    %v1502 = vpop.permute.xlu0 %1501
    %v1504 = vmul.f32 %v1485, %v1502
    %1506 = vrot.lane.b32.xlu0 %v1504, 32
    %v1507 = vpop.permute.xlu0 %1506
    %v1508 = vsel %vm164, %v1507, 0
    %1510 = vmatprep.subr.mxu0 0.0
    %1511 = vmatpush1.msra.mxu0 %v153
    %1512 = vmatprep.subr.mxu0 0.0
    %1513 = vmatpush1.msra.mxu0 %v154
    %1514 = vmatprep.subr.mxu0 0.0
    %1515 = vmatpush1.msra.mxu0 %v155
    %1516 = vmatprep.subr.mxu0 0.0
    %1517 = vmatpush1.msra.mxu0 %v156
    %1518 = vmatprep.subr.mxu0 0.0
    %1519 = vmatpush1.msra.mxu0 0.0
    %1520 = vmatprep.subr.mxu0 0.0
    %1521 = vmatpush1.msra.mxu0 0.0
    %1522 = vmatprep.subr.mxu0 0.0
    %1523 = vmatpush1.msra.mxu0 0.0
    %1524 = vmatprep.subr.mxu0 0.0
    %1525 = vmatpush1.msra.mxu0 0.0
    %1526 = vmatprep.subr.mxu0 0.0
    %1527 = vmatpush1.msra.mxu0 0.0
    %1528 = vmatprep.subr.mxu0 0.0
    %1529 = vmatpush1.msra.mxu0 0.0
    %1530 = vmatprep.subr.mxu0 0.0
    %1531 = vmatpush1.msra.mxu0 0.0
    %1532 = vmatprep.subr.mxu0 0.0
    %1533 = vmatpush1.msra.mxu0 0.0
    %1534 = vmatprep.subr.mxu0 0.0
    %1535 = vmatpush1.msra.mxu0 0.0
    %1536 = vmatprep.subr.mxu0 0.0
    %1537 = vmatpush1.msra.mxu0 0.0
    %1538 = vmatprep.subr.mxu0 0.0
    %1539 = vmatpush1.msra.mxu0 0.0
    %1540 = vmatprep.subr.mxu0 0.0
    %1541 = vmatpush1.msra.mxu0 0.0
    %1542 = vmatprep.subr.mxu0 0.0
    %1543 = vmatpush1.msra.mxu0 0.0
    %1544 = vmatprep.subr.mxu0 0.0
    %1545 = vmatpush1.msra.mxu0 0.0
    %1546 = vmatprep.subr.mxu0 0.0
    %1547 = vmatpush1.msra.mxu0 0.0
    %1548 = vmatprep.subr.mxu0 0.0
    %1549 = vmatpush1.msra.mxu0 0.0
    %1550 = vmatprep.subr.mxu0 0.0
    %1551 = vmatpush1.msra.mxu0 0.0
    %1552 = vmatprep.subr.mxu0 0.0
    %1553 = vmatpush1.msra.mxu0 0.0
    %1554 = vmatprep.subr.mxu0 0.0
    %1555 = vmatpush1.msra.mxu0 0.0
    %1556 = vmatprep.subr.mxu0 0.0
    %1557 = vmatpush1.msra.mxu0 0.0
    %1558 = vmatprep.subr.mxu0 0.0
    %1559 = vmatpush1.msra.mxu0 0.0
    %1560 = vmatprep.subr.mxu0 0.0
    %1561 = vmatpush1.msra.mxu0 0.0
    %1562 = vmatprep.subr.mxu0 0.0
    %1563 = vmatpush1.msra.mxu0 0.0
    %1564 = vmatprep.subr.mxu0 0.0
    %1565 = vmatpush1.msra.mxu0 0.0
    %1566 = vmatprep.subr.mxu0 0.0
    %1567 = vmatpush1.msra.mxu0 0.0
    %1568 = vmatprep.subr.mxu0 0.0
    %1569 = vmatpush1.msra.mxu0 0.0
    %1570 = vmatprep.subr.mxu0 0.0
    %1571 = vmatpush1.msra.mxu0 0.0
    %1572 = vmatprep.subr.mxu0 0.0
    %1573 = vmatpush1.msra.mxu0 0.0
    %1574 = vmatprep.mubr.f32.mxu0 0.0
    %1575 = vmatmul.mubr.f32.gmra.mrb[0].mxu0 %v1508
    %v1576 = vpop.f32.mrb[0].mxu0
    %v1577 = vadd.f32 %v456, %v1576
    %v1578 = vpop.f32.mrb[0].mxu0
    %1579 = vdwg.mxu0
    %1580 = vmatprep.subr.mxu0 0.0
    %1581 = vmatpush1.msra.mxu0 %v140
    %1582 = vmatprep.subr.mxu0 0.0
    %1583 = vmatpush1.msra.mxu0 %v141
    %1584 = vmatprep.subr.mxu0 0.0
    %1585 = vmatpush1.msra.mxu0 %v142
    %1586 = vmatprep.subr.mxu0 0.0
    %1587 = vmatpush1.msra.mxu0 %v143
    %1588 = vmatprep.subr.mxu0 0.0
    %1589 = vmatpush1.msra.mxu0 0.0
    %1590 = vmatprep.subr.mxu0 0.0
    %1591 = vmatpush1.msra.mxu0 0.0
    %1592 = vmatprep.subr.mxu0 0.0
    %1593 = vmatpush1.msra.mxu0 0.0
    %1594 = vmatprep.subr.mxu0 0.0
    %1595 = vmatpush1.msra.mxu0 0.0
    %1596 = vmatprep.subr.mxu0 0.0
    %1597 = vmatpush1.msra.mxu0 0.0
    %1598 = vmatprep.subr.mxu0 0.0
    %1599 = vmatpush1.msra.mxu0 0.0
    %1600 = vmatprep.subr.mxu0 0.0
    %1601 = vmatpush1.msra.mxu0 0.0
    %1602 = vmatprep.subr.mxu0 0.0
    %1603 = vmatpush1.msra.mxu0 0.0
    %1604 = vmatprep.subr.mxu0 0.0
    %1605 = vmatpush1.msra.mxu0 0.0
    %1606 = vmatprep.subr.mxu0 0.0
    %1607 = vmatpush1.msra.mxu0 0.0
    %1608 = vmatprep.subr.mxu0 0.0
    %1609 = vmatpush1.msra.mxu0 0.0
    %1610 = vmatprep.subr.mxu0 0.0
    %1611 = vmatpush1.msra.mxu0 0.0
    %1612 = vmatprep.subr.mxu0 0.0
    %1613 = vmatpush1.msra.mxu0 0.0
    %1614 = vmatprep.subr.mxu0 0.0
    %1615 = vmatpush1.msra.mxu0 0.0
    %1616 = vmatprep.subr.mxu0 0.0
    %1617 = vmatpush1.msra.mxu0 0.0
    %1618 = vmatprep.subr.mxu0 0.0
    %1619 = vmatpush1.msra.mxu0 0.0
    %1620 = vmatprep.subr.mxu0 0.0
    %1621 = vmatpush1.msra.mxu0 0.0
    %1622 = vmatprep.subr.mxu0 0.0
    %1623 = vmatpush1.msra.mxu0 0.0
    %1624 = vmatprep.subr.mxu0 0.0
    %1625 = vmatpush1.msra.mxu0 0.0
    %1626 = vmatprep.subr.mxu0 0.0
    %1627 = vmatpush1.msra.mxu0 0.0
    %1628 = vmatprep.subr.mxu0 0.0
    %1629 = vmatpush1.msra.mxu0 0.0
    %1630 = vmatprep.subr.mxu0 0.0
    %1631 = vmatpush1.msra.mxu0 0.0
    %1632 = vmatprep.subr.mxu0 0.0
    %1633 = vmatpush1.msra.mxu0 0.0
    %1634 = vmatprep.subr.mxu0 0.0
    %1635 = vmatpush1.msra.mxu0 0.0
    %1636 = vmatprep.subr.mxu0 0.0
    %1637 = vmatpush1.msra.mxu0 0.0
    %1638 = vmatprep.subr.mxu0 0.0
    %1639 = vmatpush1.msra.mxu0 0.0
    %1640 = vmatprep.subr.mxu0 0.0
    %1641 = vmatpush1.msra.mxu0 0.0
    %1642 = vmatprep.subr.mxu0 0.0
    %1643 = vmatpush1.msra.mxu0 0.0
    %1644 = vmatprep.mubr.f32.mxu0 0.0
    %1645 = vmatmul.mubr.f32.gmra.mrb[0].mxu0 %v1337
    %v1646 = vpop.f32.mrb[0].mxu0
    %v1647 = vadd.f32 0.0, %v1646
    %v1648 = vpop.f32.mrb[0].mxu0
    %1649 = vdwg.mxu0
    %v1650 = vadd.f32 %v137, %v1647
    %v1651 = vxor.u32 %v1650, 2147483648
    %v1652 = vmul.f32 %v1651, 1.442695
    %v1653 = vpow.pop %v1652
    %v1654 = vadd.f32 %v1653, 1.0
    %v1655 = vrcp.pop %v1654
    %v1656 = vmul.f32 1.0, %v1655
    %v1657 = vmul.f32 %v1656, 2.0
    %v1658 = vsub.f32 %v1657, 1.0
    %v1660 = vrot.slane %v1326, 6
    %v1662 = vmul.f32 %v1656, %v1660
    %1664 = vrot.lane.b32.xlu0 %v1658, 64
    %v1665 = vpop.permute.xlu0 %1664
    %v1667 = vmul.f32 %v1656, %v1665
    %1669 = vrot.lane.b32.xlu0 %v1667, 32
    %v1670 = vpop.permute.xlu0 %1669
    %v1672 = vadd.f32 %v1662, %v1670
    %v1673 = vtanh.pop %v1672
    %1675 = vrot.lane.b32.xlu0 %v1673, 64
    %v1676 = vpop.permute.xlu0 %1675
    %v1678 = vmul.f32 %v1656, %v1676
    %1680 = vrot.lane.b32.xlu0 %v1678, 32
    %v1681 = vpop.permute.xlu0 %1680
    %v1682 = vsel %vm164, %v1681, 0
    %1684 = vmatprep.subr.mxu0 0.0
    %1685 = vmatpush1.msra.mxu0 %v144
    %1686 = vmatprep.subr.mxu0 0.0
    %1687 = vmatpush1.msra.mxu0 %v145
    %1688 = vmatprep.subr.mxu0 0.0
    %1689 = vmatpush1.msra.mxu0 %v146
    %1690 = vmatprep.subr.mxu0 0.0
    %1691 = vmatpush1.msra.mxu0 %v147
    %1692 = vmatprep.subr.mxu0 0.0
    %1693 = vmatpush1.msra.mxu0 0.0
    %1694 = vmatprep.subr.mxu0 0.0
    %1695 = vmatpush1.msra.mxu0 0.0
    %1696 = vmatprep.subr.mxu0 0.0
    %1697 = vmatpush1.msra.mxu0 0.0
    %1698 = vmatprep.subr.mxu0 0.0
    %1699 = vmatpush1.msra.mxu0 0.0
    %1700 = vmatprep.subr.mxu0 0.0
    %1701 = vmatpush1.msra.mxu0 0.0
    %1702 = vmatprep.subr.mxu0 0.0
    %1703 = vmatpush1.msra.mxu0 0.0
    %1704 = vmatprep.subr.mxu0 0.0
    %1705 = vmatpush1.msra.mxu0 0.0
    %1706 = vmatprep.subr.mxu0 0.0
    %1707 = vmatpush1.msra.mxu0 0.0
    %1708 = vmatprep.subr.mxu0 0.0
    %1709 = vmatpush1.msra.mxu0 0.0
    %1710 = vmatprep.subr.mxu0 0.0
    %1711 = vmatpush1.msra.mxu0 0.0
    %1712 = vmatprep.subr.mxu0 0.0
    %1713 = vmatpush1.msra.mxu0 0.0
    %1714 = vmatprep.subr.mxu0 0.0
    %1715 = vmatpush1.msra.mxu0 0.0
    %1716 = vmatprep.subr.mxu0 0.0
    %1717 = vmatpush1.msra.mxu0 0.0
    %1718 = vmatprep.subr.mxu0 0.0
    %1719 = vmatpush1.msra.mxu0 0.0
    %1720 = vmatprep.subr.mxu0 0.0
    %1721 = vmatpush1.msra.mxu0 0.0
    %1722 = vmatprep.subr.mxu0 0.0
    %1723 = vmatpush1.msra.mxu0 0.0
    %1724 = vmatprep.subr.mxu0 0.0
    %1725 = vmatpush1.msra.mxu0 0.0
    %1726 = vmatprep.subr.mxu0 0.0
    %1727 = vmatpush1.msra.mxu0 0.0
    %1728 = vmatprep.subr.mxu0 0.0
    %1729 = vmatpush1.msra.mxu0 0.0
    %1730 = vmatprep.subr.mxu0 0.0
    %1731 = vmatpush1.msra.mxu0 0.0
    %1732 = vmatprep.subr.mxu0 0.0
    %1733 = vmatpush1.msra.mxu0 0.0
    %1734 = vmatprep.subr.mxu0 0.0
    %1735 = vmatpush1.msra.mxu0 0.0
    %1736 = vmatprep.subr.mxu0 0.0
    %1737 = vmatpush1.msra.mxu0 0.0
    %1738 = vmatprep.subr.mxu0 0.0
    %1739 = vmatpush1.msra.mxu0 0.0
    %1740 = vmatprep.subr.mxu0 0.0
    %1741 = vmatpush1.msra.mxu0 0.0
    %1742 = vmatprep.subr.mxu0 0.0
    %1743 = vmatpush1.msra.mxu0 0.0
    %1744 = vmatprep.subr.mxu0 0.0
    %1745 = vmatpush1.msra.mxu0 0.0
    %1746 = vmatprep.subr.mxu0 0.0
    %1747 = vmatpush1.msra.mxu0 0.0
    %1748 = vmatprep.mubr.f32.mxu0 0.0
    %1749 = vmatmul.mubr.f32.gmra.mrb[0].mxu0 %v1682
    %v1750 = vpop.f32.mrb[0].mxu0
    %v1751 = vadd.f32 %v272, %v1750
    %v1752 = vpop.f32.mrb[0].mxu0
    %1753 = vdwg.mxu0
    %1754 = vmatprep.subr.mxu0 0.0
    %1755 = vmatpush1.msra.mxu0 %v148
    %1756 = vmatprep.subr.mxu0 0.0
    %1757 = vmatpush1.msra.mxu0 %v149
    %1758 = vmatprep.subr.mxu0 0.0
    %1759 = vmatpush1.msra.mxu0 %v150
    %1760 = vmatprep.subr.mxu0 0.0
    %1761 = vmatpush1.msra.mxu0 %v151
    %1762 = vmatprep.subr.mxu0 0.0
    %1763 = vmatpush1.msra.mxu0 0.0
    %1764 = vmatprep.subr.mxu0 0.0
    %1765 = vmatpush1.msra.mxu0 0.0
    %1766 = vmatprep.subr.mxu0 0.0
    %1767 = vmatpush1.msra.mxu0 0.0
    %1768 = vmatprep.subr.mxu0 0.0
    %1769 = vmatpush1.msra.mxu0 0.0
    %1770 = vmatprep.subr.mxu0 0.0
    %1771 = vmatpush1.msra.mxu0 0.0
    %1772 = vmatprep.subr.mxu0 0.0
    %1773 = vmatpush1.msra.mxu0 0.0
    %1774 = vmatprep.subr.mxu0 0.0
    %1775 = vmatpush1.msra.mxu0 0.0
    %1776 = vmatprep.subr.mxu0 0.0
    %1777 = vmatpush1.msra.mxu0 0.0
    %1778 = vmatprep.subr.mxu0 0.0
    %1779 = vmatpush1.msra.mxu0 0.0
    %1780 = vmatprep.subr.mxu0 0.0
    %1781 = vmatpush1.msra.mxu0 0.0
    %1782 = vmatprep.subr.mxu0 0.0
    %1783 = vmatpush1.msra.mxu0 0.0
    %1784 = vmatprep.subr.mxu0 0.0
    %1785 = vmatpush1.msra.mxu0 0.0
    %1786 = vmatprep.subr.mxu0 0.0
    %1787 = vmatpush1.msra.mxu0 0.0
    %1788 = vmatprep.subr.mxu0 0.0
    %1789 = vmatpush1.msra.mxu0 0.0
    %1790 = vmatprep.subr.mxu0 0.0
    %1791 = vmatpush1.msra.mxu0 0.0
    %1792 = vmatprep.subr.mxu0 0.0
    %1793 = vmatpush1.msra.mxu0 0.0
    %1794 = vmatprep.subr.mxu0 0.0
    %1795 = vmatpush1.msra.mxu0 0.0
    %1796 = vmatprep.subr.mxu0 0.0
    %1797 = vmatpush1.msra.mxu0 0.0
    %1798 = vmatprep.subr.mxu0 0.0
    %1799 = vmatpush1.msra.mxu0 0.0
    %1800 = vmatprep.subr.mxu0 0.0
    %1801 = vmatpush1.msra.mxu0 0.0
    %1802 = vmatprep.subr.mxu0 0.0
    %1803 = vmatpush1.msra.mxu0 0.0
    %1804 = vmatprep.subr.mxu0 0.0
    %1805 = vmatpush1.msra.mxu0 0.0
    %1806 = vmatprep.subr.mxu0 0.0
    %1807 = vmatpush1.msra.mxu0 0.0
    %1808 = vmatprep.subr.mxu0 0.0
    %1809 = vmatpush1.msra.mxu0 0.0
    %1810 = vmatprep.subr.mxu0 0.0
    %1811 = vmatpush1.msra.mxu0 0.0
    %1812 = vmatprep.subr.mxu0 0.0
    %1813 = vmatpush1.msra.mxu0 0.0
    %1814 = vmatprep.subr.mxu0 0.0
    %1815 = vmatpush1.msra.mxu0 0.0
    %1816 = vmatprep.subr.mxu0 0.0
    %1817 = vmatpush1.msra.mxu0 0.0
    %1818 = vmatprep.mubr.f32.mxu0 0.0
    %1819 = vmatmul.mubr.f32.gmra.mrb[0].mxu0 %v1508
    %v1820 = vpop.f32.mrb[0].mxu0
    %v1821 = vadd.f32 0.0, %v1820
    %v1822 = vpop.f32.mrb[0].mxu0
    %1823 = vdwg.mxu0
    %v1824 = vadd.f32 %v1751, %v1821
    %v1825 = vxor.u32 %v1824, 2147483648
    %v1826 = vmul.f32 %v1825, 1.442695
    %v1827 = vpow.pop %v1826
    %v1828 = vadd.f32 %v1827, 1.0
    %v1829 = vrcp.pop %v1828
    %v1830 = vmul.f32 1.0, %v1829
    %v1831 = vmul.f32 %v1830, 2.0
    %v1832 = vsub.f32 %v1831, 1.0
    %v1833 = vmul.f32 %v1830, %v1498
    %1835 = vrot.lane.b32.xlu0 %v1832, 64
    %v1836 = vpop.permute.xlu0 %1835
    %v1838 = vmul.f32 %v1830, %v1836
    %1840 = vrot.lane.b32.xlu0 %v1838, 32
    %v1841 = vpop.permute.xlu0 %1840
    %v1843 = vadd.f32 %v1833, %v1841
    %v1844 = vtanh.pop %v1843
    %1846 = vrot.lane.b32.xlu0 %v1844, 64
    %v1847 = vpop.permute.xlu0 %1846
    %v1849 = vmul.f32 %v1830, %v1847
    %1851 = vrot.lane.b32.xlu0 %v1849, 32
    %v1852 = vpop.permute.xlu0 %1851
    %v1853 = vsel %vm164, %v1852, 0
    %1855 = vmatprep.subr.mxu0 0.0
    %1856 = vmatpush1.msra.mxu0 %v153
    %1857 = vmatprep.subr.mxu0 0.0
    %1858 = vmatpush1.msra.mxu0 %v154
    %1859 = vmatprep.subr.mxu0 0.0
    %1860 = vmatpush1.msra.mxu0 %v155
    %1861 = vmatprep.subr.mxu0 0.0
    %1862 = vmatpush1.msra.mxu0 %v156
    %1863 = vmatprep.subr.mxu0 0.0
    %1864 = vmatpush1.msra.mxu0 0.0
    %1865 = vmatprep.subr.mxu0 0.0
    %1866 = vmatpush1.msra.mxu0 0.0
    %1867 = vmatprep.subr.mxu0 0.0
    %1868 = vmatpush1.msra.mxu0 0.0
    %1869 = vmatprep.subr.mxu0 0.0
    %1870 = vmatpush1.msra.mxu0 0.0
    %1871 = vmatprep.subr.mxu0 0.0
    %1872 = vmatpush1.msra.mxu0 0.0
    %1873 = vmatprep.subr.mxu0 0.0
    %1874 = vmatpush1.msra.mxu0 0.0
    %1875 = vmatprep.subr.mxu0 0.0
    %1876 = vmatpush1.msra.mxu0 0.0
    %1877 = vmatprep.subr.mxu0 0.0
    %1878 = vmatpush1.msra.mxu0 0.0
    %1879 = vmatprep.subr.mxu0 0.0
    %1880 = vmatpush1.msra.mxu0 0.0
    %1881 = vmatprep.subr.mxu0 0.0
    %1882 = vmatpush1.msra.mxu0 0.0
    %1883 = vmatprep.subr.mxu0 0.0
    %1884 = vmatpush1.msra.mxu0 0.0
    %1885 = vmatprep.subr.mxu0 0.0
    %1886 = vmatpush1.msra.mxu0 0.0
    %1887 = vmatprep.subr.mxu0 0.0
    %1888 = vmatpush1.msra.mxu0 0.0
    %1889 = vmatprep.subr.mxu0 0.0
    %1890 = vmatpush1.msra.mxu0 0.0
    %1891 = vmatprep.subr.mxu0 0.0
    %1892 = vmatpush1.msra.mxu0 0.0
    %1893 = vmatprep.subr.mxu0 0.0
    %1894 = vmatpush1.msra.mxu0 0.0
    %1895 = vmatprep.subr.mxu0 0.0
    %1896 = vmatpush1.msra.mxu0 0.0
    %1897 = vmatprep.subr.mxu0 0.0
    %1898 = vmatpush1.msra.mxu0 0.0
    %1899 = vmatprep.subr.mxu0 0.0
    %1900 = vmatpush1.msra.mxu0 0.0
    %1901 = vmatprep.subr.mxu0 0.0
    %1902 = vmatpush1.msra.mxu0 0.0
    %1903 = vmatprep.subr.mxu0 0.0
    %1904 = vmatpush1.msra.mxu0 0.0
    %1905 = vmatprep.subr.mxu0 0.0
    %1906 = vmatpush1.msra.mxu0 0.0
    %1907 = vmatprep.subr.mxu0 0.0
    %1908 = vmatpush1.msra.mxu0 0.0
    %1909 = vmatprep.subr.mxu0 0.0
    %1910 = vmatpush1.msra.mxu0 0.0
    %1911 = vmatprep.subr.mxu0 0.0
    %1912 = vmatpush1.msra.mxu0 0.0
    %1913 = vmatprep.subr.mxu0 0.0
    %1914 = vmatpush1.msra.mxu0 0.0
    %1915 = vmatprep.subr.mxu0 0.0
    %1916 = vmatpush1.msra.mxu0 0.0
    %1917 = vmatprep.subr.mxu0 0.0
    %1918 = vmatpush1.msra.mxu0 0.0
    %1919 = vmatprep.mubr.f32.mxu0 0.0
    %1920 = vmatmul.mubr.f32.gmra.mrb[0].mxu0 %v1853
    %v1921 = vpop.f32.mrb[0].mxu0
    %v1922 = vadd.f32 %v456, %v1921
    %v1923 = vpop.f32.mrb[0].mxu0
    %1924 = vdwg.mxu0
    %1925 = vmatprep.subr.mxu0 0.0
    %1926 = vmatpush1.msra.mxu0 %v140
    %1927 = vmatprep.subr.mxu0 0.0
    %1928 = vmatpush1.msra.mxu0 %v141
    %1929 = vmatprep.subr.mxu0 0.0
    %1930 = vmatpush1.msra.mxu0 %v142
    %1931 = vmatprep.subr.mxu0 0.0
    %1932 = vmatpush1.msra.mxu0 %v143
    %1933 = vmatprep.subr.mxu0 0.0
    %1934 = vmatpush1.msra.mxu0 0.0
    %1935 = vmatprep.subr.mxu0 0.0
    %1936 = vmatpush1.msra.mxu0 0.0
    %1937 = vmatprep.subr.mxu0 0.0
    %1938 = vmatpush1.msra.mxu0 0.0
    %1939 = vmatprep.subr.mxu0 0.0
    %1940 = vmatpush1.msra.mxu0 0.0
    %1941 = vmatprep.subr.mxu0 0.0
    %1942 = vmatpush1.msra.mxu0 0.0
    %1943 = vmatprep.subr.mxu0 0.0
    %1944 = vmatpush1.msra.mxu0 0.0
    %1945 = vmatprep.subr.mxu0 0.0
    %1946 = vmatpush1.msra.mxu0 0.0
    %1947 = vmatprep.subr.mxu0 0.0
    %1948 = vmatpush1.msra.mxu0 0.0
    %1949 = vmatprep.subr.mxu0 0.0
    %1950 = vmatpush1.msra.mxu0 0.0
    %1951 = vmatprep.subr.mxu0 0.0
    %1952 = vmatpush1.msra.mxu0 0.0
    %1953 = vmatprep.subr.mxu0 0.0
    %1954 = vmatpush1.msra.mxu0 0.0
    %1955 = vmatprep.subr.mxu0 0.0
    %1956 = vmatpush1.msra.mxu0 0.0
    %1957 = vmatprep.subr.mxu0 0.0
    %1958 = vmatpush1.msra.mxu0 0.0
    %1959 = vmatprep.subr.mxu0 0.0
    %1960 = vmatpush1.msra.mxu0 0.0
    %1961 = vmatprep.subr.mxu0 0.0
    %1962 = vmatpush1.msra.mxu0 0.0
    %1963 = vmatprep.subr.mxu0 0.0
    %1964 = vmatpush1.msra.mxu0 0.0
    %1965 = vmatprep.subr.mxu0 0.0
    %1966 = vmatpush1.msra.mxu0 0.0
    %1967 = vmatprep.subr.mxu0 0.0
    %1968 = vmatpush1.msra.mxu0 0.0
    %1969 = vmatprep.subr.mxu0 0.0
    %1970 = vmatpush1.msra.mxu0 0.0
    %1971 = vmatprep.subr.mxu0 0.0
    %1972 = vmatpush1.msra.mxu0 0.0
    %1973 = vmatprep.subr.mxu0 0.0
    %1974 = vmatpush1.msra.mxu0 0.0
    %1975 = vmatprep.subr.mxu0 0.0
    %1976 = vmatpush1.msra.mxu0 0.0
    %1977 = vmatprep.subr.mxu0 0.0
    %1978 = vmatpush1.msra.mxu0 0.0
    %1979 = vmatprep.subr.mxu0 0.0
    %1980 = vmatpush1.msra.mxu0 0.0
    %1981 = vmatprep.subr.mxu0 0.0
    %1982 = vmatpush1.msra.mxu0 0.0
    %1983 = vmatprep.subr.mxu0 0.0
    %1984 = vmatpush1.msra.mxu0 0.0
    %1985 = vmatprep.subr.mxu0 0.0
    %1986 = vmatpush1.msra.mxu0 0.0
    %1987 = vmatprep.subr.mxu0 0.0
    %1988 = vmatpush1.msra.mxu0 0.0
    %1989 = vmatprep.mubr.f32.mxu0 0.0
    %1990 = vmatmul.mubr.f32.gmra.mrb[0].mxu0 %v1682
    %v1991 = vpop.f32.mrb[0].mxu0
    %v1992 = vadd.f32 0.0, %v1991
    %v1993 = vpop.f32.mrb[0].mxu0
    %1994 = vdwg.mxu0
    %v1996 = vrot.slane %v1992, 6
    %v1998 = vadd.f32 %v137, %v1996
    %v1999 = vxor.u32 %v1998, 2147483648
    %v2000 = vmul.f32 %v1999, 1.442695
    %v2001 = vpow.pop %v2000
    %v2002 = vadd.f32 %v2001, 1.0
    %v2003 = vrcp.pop %v2002
    %v2004 = vmul.f32 1.0, %v2003
    %v2005 = vmul.f32 %v2004, 2.0
    %v2006 = vsub.f32 %v2005, 1.0
    %v2008 = vrot.slane %v1672, 6
    %v2010 = vmul.f32 %v2004, %v2008
    %2012 = vrot.lane.b32.xlu0 %v2006, 64
    %v2013 = vpop.permute.xlu0 %2012
    %v2015 = vmul.f32 %v2004, %v2013
    %2017 = vrot.lane.b32.xlu0 %v2015, 32
    %v2018 = vpop.permute.xlu0 %2017
    %v2020 = vadd.f32 %v2010, %v2018
    %v2021 = vtanh.pop %v2020
    %2023 = vrot.lane.b32.xlu0 %v2021, 64
    %v2024 = vpop.permute.xlu0 %2023
    %v2026 = vmul.f32 %v2004, %v2024
    %v2028 = vrot.slane %v2026, 2
    %2029 = vrot.lane.b32.xlu0 %v2028, 32
    %v2030 = vpop.permute.xlu0 %2029
    %v2031 = vsel %vm164, %v2030, 0
    %2033 = vmatprep.subr.mxu0 0.0
    %2034 = vmatpush1.msra.mxu0 %v144
    %2035 = vmatprep.subr.mxu0 0.0
    %2036 = vmatpush1.msra.mxu0 %v145
    %2037 = vmatprep.subr.mxu0 0.0
    %2038 = vmatpush1.msra.mxu0 %v146
    %2039 = vmatprep.subr.mxu0 0.0
    %2040 = vmatpush1.msra.mxu0 %v147
    %2041 = vmatprep.subr.mxu0 0.0
    %2042 = vmatpush1.msra.mxu0 0.0
    %2043 = vmatprep.subr.mxu0 0.0
    %2044 = vmatpush1.msra.mxu0 0.0
    %2045 = vmatprep.subr.mxu0 0.0
    %2046 = vmatpush1.msra.mxu0 0.0
    %2047 = vmatprep.subr.mxu0 0.0
    %2048 = vmatpush1.msra.mxu0 0.0
    %2049 = vmatprep.subr.mxu0 0.0
    %2050 = vmatpush1.msra.mxu0 0.0
    %2051 = vmatprep.subr.mxu0 0.0
    %2052 = vmatpush1.msra.mxu0 0.0
    %2053 = vmatprep.subr.mxu0 0.0
    %2054 = vmatpush1.msra.mxu0 0.0
    %2055 = vmatprep.subr.mxu0 0.0
    %2056 = vmatpush1.msra.mxu0 0.0
    %2057 = vmatprep.subr.mxu0 0.0
    %2058 = vmatpush1.msra.mxu0 0.0
    %2059 = vmatprep.subr.mxu0 0.0
    %2060 = vmatpush1.msra.mxu0 0.0
    %2061 = vmatprep.subr.mxu0 0.0
    %2062 = vmatpush1.msra.mxu0 0.0
    %2063 = vmatprep.subr.mxu0 0.0
    %2064 = vmatpush1.msra.mxu0 0.0
    %2065 = vmatprep.subr.mxu0 0.0
    %2066 = vmatpush1.msra.mxu0 0.0
    %2067 = vmatprep.subr.mxu0 0.0
    %2068 = vmatpush1.msra.mxu0 0.0
    %2069 = vmatprep.subr.mxu0 0.0
    %2070 = vmatpush1.msra.mxu0 0.0
    %2071 = vmatprep.subr.mxu0 0.0
    %2072 = vmatpush1.msra.mxu0 0.0
    %2073 = vmatprep.subr.mxu0 0.0
    %2074 = vmatpush1.msra.mxu0 0.0
    %2075 = vmatprep.subr.mxu0 0.0
    %2076 = vmatpush1.msra.mxu0 0.0
    %2077 = vmatprep.subr.mxu0 0.0
    %2078 = vmatpush1.msra.mxu0 0.0
    %2079 = vmatprep.subr.mxu0 0.0
    %2080 = vmatpush1.msra.mxu0 0.0
    %2081 = vmatprep.subr.mxu0 0.0
    %2082 = vmatpush1.msra.mxu0 0.0
    %2083 = vmatprep.subr.mxu0 0.0
    %2084 = vmatpush1.msra.mxu0 0.0
    %2085 = vmatprep.subr.mxu0 0.0
    %2086 = vmatpush1.msra.mxu0 0.0
    %2087 = vmatprep.subr.mxu0 0.0
    %2088 = vmatpush1.msra.mxu0 0.0
    %2089 = vmatprep.subr.mxu0 0.0
    %2090 = vmatpush1.msra.mxu0 0.0
    %2091 = vmatprep.subr.mxu0 0.0
    %2092 = vmatpush1.msra.mxu0 0.0
    %2093 = vmatprep.subr.mxu0 0.0
    %2094 = vmatpush1.msra.mxu0 0.0
    %2095 = vmatprep.subr.mxu0 0.0
    %2096 = vmatpush1.msra.mxu0 0.0
    %2097 = vmatprep.mubr.f32.mxu0 0.0
    %2098 = vmatmul.mubr.f32.gmra.mrb[0].mxu0 %v2031
    %v2099 = vpop.f32.mrb[0].mxu0
    %v2100 = vadd.f32 %v272, %v2099
    %v2101 = vpop.f32.mrb[0].mxu0
    %2102 = vdwg.mxu0
    %2103 = vmatprep.subr.mxu0 0.0
    %2104 = vmatpush1.msra.mxu0 %v148
    %2105 = vmatprep.subr.mxu0 0.0
    %2106 = vmatpush1.msra.mxu0 %v149
    %2107 = vmatprep.subr.mxu0 0.0
    %2108 = vmatpush1.msra.mxu0 %v150
    %2109 = vmatprep.subr.mxu0 0.0
    %2110 = vmatpush1.msra.mxu0 %v151
    %2111 = vmatprep.subr.mxu0 0.0
    %2112 = vmatpush1.msra.mxu0 0.0
    %2113 = vmatprep.subr.mxu0 0.0
    %2114 = vmatpush1.msra.mxu0 0.0
    %2115 = vmatprep.subr.mxu0 0.0
    %2116 = vmatpush1.msra.mxu0 0.0
    %2117 = vmatprep.subr.mxu0 0.0
    %2118 = vmatpush1.msra.mxu0 0.0
    %2119 = vmatprep.subr.mxu0 0.0
    %2120 = vmatpush1.msra.mxu0 0.0
    %2121 = vmatprep.subr.mxu0 0.0
    %2122 = vmatpush1.msra.mxu0 0.0
    %2123 = vmatprep.subr.mxu0 0.0
    %2124 = vmatpush1.msra.mxu0 0.0
    %2125 = vmatprep.subr.mxu0 0.0
    %2126 = vmatpush1.msra.mxu0 0.0
    %2127 = vmatprep.subr.mxu0 0.0
    %2128 = vmatpush1.msra.mxu0 0.0
    %2129 = vmatprep.subr.mxu0 0.0
    %2130 = vmatpush1.msra.mxu0 0.0
    %2131 = vmatprep.subr.mxu0 0.0
    %2132 = vmatpush1.msra.mxu0 0.0
    %2133 = vmatprep.subr.mxu0 0.0
    %2134 = vmatpush1.msra.mxu0 0.0
    %2135 = vmatprep.subr.mxu0 0.0
    %2136 = vmatpush1.msra.mxu0 0.0
    %2137 = vmatprep.subr.mxu0 0.0
    %2138 = vmatpush1.msra.mxu0 0.0
    %2139 = vmatprep.subr.mxu0 0.0
    %2140 = vmatpush1.msra.mxu0 0.0
    %2141 = vmatprep.subr.mxu0 0.0
    %2142 = vmatpush1.msra.mxu0 0.0
    %2143 = vmatprep.subr.mxu0 0.0
    %2144 = vmatpush1.msra.mxu0 0.0
    %2145 = vmatprep.subr.mxu0 0.0
    %2146 = vmatpush1.msra.mxu0 0.0
    %2147 = vmatprep.subr.mxu0 0.0
    %2148 = vmatpush1.msra.mxu0 0.0
    %2149 = vmatprep.subr.mxu0 0.0
    %2150 = vmatpush1.msra.mxu0 0.0
    %2151 = vmatprep.subr.mxu0 0.0
    %2152 = vmatpush1.msra.mxu0 0.0
    %2153 = vmatprep.subr.mxu0 0.0
    %2154 = vmatpush1.msra.mxu0 0.0
    %2155 = vmatprep.subr.mxu0 0.0
    %2156 = vmatpush1.msra.mxu0 0.0
    %2157 = vmatprep.subr.mxu0 0.0
    %2158 = vmatpush1.msra.mxu0 0.0
    %2159 = vmatprep.subr.mxu0 0.0
    %2160 = vmatpush1.msra.mxu0 0.0
    %2161 = vmatprep.subr.mxu0 0.0
    %2162 = vmatpush1.msra.mxu0 0.0
    %2163 = vmatprep.subr.mxu0 0.0
    %2164 = vmatpush1.msra.mxu0 0.0
    %2165 = vmatprep.subr.mxu0 0.0
    %2166 = vmatpush1.msra.mxu0 0.0
    %2167 = vmatprep.mubr.f32.mxu0 0.0
    %2168 = vmatmul.mubr.f32.gmra.mrb[0].mxu0 %v1853
    %v2169 = vpop.f32.mrb[0].mxu0
    %v2170 = vadd.f32 0.0, %v2169
    %v2171 = vpop.f32.mrb[0].mxu0
    %2172 = vdwg.mxu0
    %v2173 = vadd.f32 %v2100, %v2170
    %v2174 = vxor.u32 %v2173, 2147483648
    %v2175 = vmul.f32 %v2174, 1.442695
    %v2176 = vpow.pop %v2175
    %v2177 = vadd.f32 %v2176, 1.0
    %v2178 = vrcp.pop %v2177
    %v2179 = vmul.f32 1.0, %v2178
    %v2180 = vmul.f32 %v2179, 2.0
    %v2181 = vsub.f32 %v2180, 1.0
    %v2182 = vmul.f32 %v2179, %v1843
    %2184 = vrot.lane.b32.xlu0 %v2181, 64
    %v2185 = vpop.permute.xlu0 %2184
    %v2187 = vmul.f32 %v2179, %v2185
    %2189 = vrot.lane.b32.xlu0 %v2187, 32
    %v2190 = vpop.permute.xlu0 %2189
    %v2192 = vadd.f32 %v2182, %v2190
    %v2193 = vtanh.pop %v2192
    %2195 = vrot.lane.b32.xlu0 %v2193, 64
    %v2196 = vpop.permute.xlu0 %2195
    %v2198 = vmul.f32 %v2179, %v2196
    %2200 = vrot.lane.b32.xlu0 %v2198, 32
    %v2201 = vpop.permute.xlu0 %2200
    %v2202 = vsel %vm164, %v2201, 0
    %2204 = vmatprep.subr.mxu0 0.0
    %2205 = vmatpush1.msra.mxu0 %v153
    %2206 = vmatprep.subr.mxu0 0.0
    %2207 = vmatpush1.msra.mxu0 %v154
    %2208 = vmatprep.subr.mxu0 0.0
    %2209 = vmatpush1.msra.mxu0 %v155
    %2210 = vmatprep.subr.mxu0 0.0
    %2211 = vmatpush1.msra.mxu0 %v156
    %2212 = vmatprep.subr.mxu0 0.0
    %2213 = vmatpush1.msra.mxu0 0.0
    %2214 = vmatprep.subr.mxu0 0.0
    %2215 = vmatpush1.msra.mxu0 0.0
    %2216 = vmatprep.subr.mxu0 0.0
    %2217 = vmatpush1.msra.mxu0 0.0
    %2218 = vmatprep.subr.mxu0 0.0
    %2219 = vmatpush1.msra.mxu0 0.0
    %2220 = vmatprep.subr.mxu0 0.0
    %2221 = vmatpush1.msra.mxu0 0.0
    %2222 = vmatprep.subr.mxu0 0.0
    %2223 = vmatpush1.msra.mxu0 0.0
    %2224 = vmatprep.subr.mxu0 0.0
    %2225 = vmatpush1.msra.mxu0 0.0
    %2226 = vmatprep.subr.mxu0 0.0
    %2227 = vmatpush1.msra.mxu0 0.0
    %2228 = vmatprep.subr.mxu0 0.0
    %2229 = vmatpush1.msra.mxu0 0.0
    %2230 = vmatprep.subr.mxu0 0.0
    %2231 = vmatpush1.msra.mxu0 0.0
    %2232 = vmatprep.subr.mxu0 0.0
    %2233 = vmatpush1.msra.mxu0 0.0
    %2234 = vmatprep.subr.mxu0 0.0
    %2235 = vmatpush1.msra.mxu0 0.0
    %2236 = vmatprep.subr.mxu0 0.0
    %2237 = vmatpush1.msra.mxu0 0.0
    %2238 = vmatprep.subr.mxu0 0.0
    %2239 = vmatpush1.msra.mxu0 0.0
    %2240 = vmatprep.subr.mxu0 0.0
    %2241 = vmatpush1.msra.mxu0 0.0
    %2242 = vmatprep.subr.mxu0 0.0
    %2243 = vmatpush1.msra.mxu0 0.0
    %2244 = vmatprep.subr.mxu0 0.0
    %2245 = vmatpush1.msra.mxu0 0.0
    %2246 = vmatprep.subr.mxu0 0.0
    %2247 = vmatpush1.msra.mxu0 0.0
    %2248 = vmatprep.subr.mxu0 0.0
    %2249 = vmatpush1.msra.mxu0 0.0
    %2250 = vmatprep.subr.mxu0 0.0
    %2251 = vmatpush1.msra.mxu0 0.0
    %2252 = vmatprep.subr.mxu0 0.0
    %2253 = vmatpush1.msra.mxu0 0.0
    %2254 = vmatprep.subr.mxu0 0.0
    %2255 = vmatpush1.msra.mxu0 0.0
    %2256 = vmatprep.subr.mxu0 0.0
    %2257 = vmatpush1.msra.mxu0 0.0
    %2258 = vmatprep.subr.mxu0 0.0
    %2259 = vmatpush1.msra.mxu0 0.0
    %2260 = vmatprep.subr.mxu0 0.0
    %2261 = vmatpush1.msra.mxu0 0.0
    %2262 = vmatprep.subr.mxu0 0.0
    %2263 = vmatpush1.msra.mxu0 0.0
    %2264 = vmatprep.subr.mxu0 0.0
    %2265 = vmatpush1.msra.mxu0 0.0
    %2266 = vmatprep.subr.mxu0 0.0
    %2267 = vmatpush1.msra.mxu0 0.0
    %2268 = vmatprep.mubr.f32.mxu0 0.0
    %2269 = vmatmul.mubr.f32.gmra.mrb[0].mxu0 %v2202
    %v2270 = vpop.f32.mrb[0].mxu0
    %v2271 = vadd.f32 %v456, %v2270
    %v2272 = vpop.f32.mrb[0].mxu0
    %2273 = vdwg.mxu0
    %2274 = vmatprep.subr.mxu0 0.0
    %2275 = vmatpush1.msra.mxu0 %v140
    %2276 = vmatprep.subr.mxu0 0.0
    %2277 = vmatpush1.msra.mxu0 %v141
    %2278 = vmatprep.subr.mxu0 0.0
    %2279 = vmatpush1.msra.mxu0 %v142
    %2280 = vmatprep.subr.mxu0 0.0
    %2281 = vmatpush1.msra.mxu0 %v143
    %2282 = vmatprep.subr.mxu0 0.0
    %2283 = vmatpush1.msra.mxu0 0.0
    %2284 = vmatprep.subr.mxu0 0.0
    %2285 = vmatpush1.msra.mxu0 0.0
    %2286 = vmatprep.subr.mxu0 0.0
    %2287 = vmatpush1.msra.mxu0 0.0
    %2288 = vmatprep.subr.mxu0 0.0
    %2289 = vmatpush1.msra.mxu0 0.0
    %2290 = vmatprep.subr.mxu0 0.0
    %2291 = vmatpush1.msra.mxu0 0.0
    %2292 = vmatprep.subr.mxu0 0.0
    %2293 = vmatpush1.msra.mxu0 0.0
    %2294 = vmatprep.subr.mxu0 0.0
    %2295 = vmatpush1.msra.mxu0 0.0
    %2296 = vmatprep.subr.mxu0 0.0
    %2297 = vmatpush1.msra.mxu0 0.0
    %2298 = vmatprep.subr.mxu0 0.0
    %2299 = vmatpush1.msra.mxu0 0.0
    %2300 = vmatprep.subr.mxu0 0.0
    %2301 = vmatpush1.msra.mxu0 0.0
    %2302 = vmatprep.subr.mxu0 0.0
    %2303 = vmatpush1.msra.mxu0 0.0
    %2304 = vmatprep.subr.mxu0 0.0
    %2305 = vmatpush1.msra.mxu0 0.0
    %2306 = vmatprep.subr.mxu0 0.0
    %2307 = vmatpush1.msra.mxu0 0.0
    %2308 = vmatprep.subr.mxu0 0.0
    %2309 = vmatpush1.msra.mxu0 0.0
    %2310 = vmatprep.subr.mxu0 0.0
    %2311 = vmatpush1.msra.mxu0 0.0
    %2312 = vmatprep.subr.mxu0 0.0
    %2313 = vmatpush1.msra.mxu0 0.0
    %2314 = vmatprep.subr.mxu0 0.0
    %2315 = vmatpush1.msra.mxu0 0.0
    %2316 = vmatprep.subr.mxu0 0.0
    %2317 = vmatpush1.msra.mxu0 0.0
    %2318 = vmatprep.subr.mxu0 0.0
    %2319 = vmatpush1.msra.mxu0 0.0
    %2320 = vmatprep.subr.mxu0 0.0
    %2321 = vmatpush1.msra.mxu0 0.0
    %2322 = vmatprep.subr.mxu0 0.0
    %2323 = vmatpush1.msra.mxu0 0.0
    %2324 = vmatprep.subr.mxu0 0.0
    %2325 = vmatpush1.msra.mxu0 0.0
    %2326 = vmatprep.subr.mxu0 0.0
    %2327 = vmatpush1.msra.mxu0 0.0
    %2328 = vmatprep.subr.mxu0 0.0
    %2329 = vmatpush1.msra.mxu0 0.0
    %2330 = vmatprep.subr.mxu0 0.0
    %2331 = vmatpush1.msra.mxu0 0.0
    %2332 = vmatprep.subr.mxu0 0.0
    %2333 = vmatpush1.msra.mxu0 0.0
    %2334 = vmatprep.subr.mxu0 0.0
    %2335 = vmatpush1.msra.mxu0 0.0
    %2336 = vmatprep.subr.mxu0 0.0
    %2337 = vmatpush1.msra.mxu0 0.0
    %2338 = vmatprep.mubr.f32.mxu0 0.0
    %2339 = vmatmul.mubr.f32.gmra.mrb[0].mxu0 %v2031
    %v2340 = vpop.f32.mrb[0].mxu0
    %v2341 = vadd.f32 0.0, %v2340
    %v2342 = vpop.f32.mrb[0].mxu0
    %2343 = vdwg.mxu0
    %v2345 = vrot.slane %v2341, 4
    %v2347 = vadd.f32 %v137, %v2345
    %v2348 = vxor.u32 %v2347, 2147483648
    %v2349 = vmul.f32 %v2348, 1.442695
    %v2350 = vpow.pop %v2349
    %v2351 = vadd.f32 %v2350, 1.0
    %v2352 = vrcp.pop %v2351
    %v2353 = vmul.f32 1.0, %v2352
    %v2354 = vmul.f32 %v2353, 2.0
    %v2355 = vsub.f32 %v2354, 1.0
    %v2357 = vrot.slane %v2020, 6
    %v2359 = vmul.f32 %v2353, %v2357
    %2361 = vrot.lane.b32.xlu0 %v2355, 64
    %v2362 = vpop.permute.xlu0 %2361
    %v2364 = vmul.f32 %v2353, %v2362
    %2366 = vrot.lane.b32.xlu0 %v2364, 32
    %v2367 = vpop.permute.xlu0 %2366
    %v2369 = vadd.f32 %v2359, %v2367
    %v2370 = vtanh.pop %v2369
    %2372 = vrot.lane.b32.xlu0 %v2370, 64
    %v2373 = vpop.permute.xlu0 %2372
    %v2375 = vmul.f32 %v2353, %v2373
    %v2377 = vrot.slane %v2375, 4
    %2378 = vrot.lane.b32.xlu0 %v2377, 32
    %v2379 = vpop.permute.xlu0 %2378
    %v2380 = vsel %vm164, %v2379, 0
    %2382 = vmatprep.subr.mxu0 0.0
    %2383 = vmatpush1.msra.mxu0 %v144
    %2384 = vmatprep.subr.mxu0 0.0
    %2385 = vmatpush1.msra.mxu0 %v145
    %2386 = vmatprep.subr.mxu0 0.0
    %2387 = vmatpush1.msra.mxu0 %v146
    %2388 = vmatprep.subr.mxu0 0.0
    %2389 = vmatpush1.msra.mxu0 %v147
    %2390 = vmatprep.subr.mxu0 0.0
    %2391 = vmatpush1.msra.mxu0 0.0
    %2392 = vmatprep.subr.mxu0 0.0
    %2393 = vmatpush1.msra.mxu0 0.0
    %2394 = vmatprep.subr.mxu0 0.0
    %2395 = vmatpush1.msra.mxu0 0.0
    %2396 = vmatprep.subr.mxu0 0.0
    %2397 = vmatpush1.msra.mxu0 0.0
    %2398 = vmatprep.subr.mxu0 0.0
    %2399 = vmatpush1.msra.mxu0 0.0
    %2400 = vmatprep.subr.mxu0 0.0
    %2401 = vmatpush1.msra.mxu0 0.0
    %2402 = vmatprep.subr.mxu0 0.0
    %2403 = vmatpush1.msra.mxu0 0.0
    %2404 = vmatprep.subr.mxu0 0.0
    %2405 = vmatpush1.msra.mxu0 0.0
    %2406 = vmatprep.subr.mxu0 0.0
    %2407 = vmatpush1.msra.mxu0 0.0
    %2408 = vmatprep.subr.mxu0 0.0
    %2409 = vmatpush1.msra.mxu0 0.0
    %2410 = vmatprep.subr.mxu0 0.0
    %2411 = vmatpush1.msra.mxu0 0.0
    %2412 = vmatprep.subr.mxu0 0.0
    %2413 = vmatpush1.msra.mxu0 0.0
    %2414 = vmatprep.subr.mxu0 0.0
    %2415 = vmatpush1.msra.mxu0 0.0
    %2416 = vmatprep.subr.mxu0 0.0
    %2417 = vmatpush1.msra.mxu0 0.0
    %2418 = vmatprep.subr.mxu0 0.0
    %2419 = vmatpush1.msra.mxu0 0.0
    %2420 = vmatprep.subr.mxu0 0.0
    %2421 = vmatpush1.msra.mxu0 0.0
    %2422 = vmatprep.subr.mxu0 0.0
    %2423 = vmatpush1.msra.mxu0 0.0
    %2424 = vmatprep.subr.mxu0 0.0
    %2425 = vmatpush1.msra.mxu0 0.0
    %2426 = vmatprep.subr.mxu0 0.0
    %2427 = vmatpush1.msra.mxu0 0.0
    %2428 = vmatprep.subr.mxu0 0.0
    %2429 = vmatpush1.msra.mxu0 0.0
    %2430 = vmatprep.subr.mxu0 0.0
    %2431 = vmatpush1.msra.mxu0 0.0
    %2432 = vmatprep.subr.mxu0 0.0
    %2433 = vmatpush1.msra.mxu0 0.0
    %2434 = vmatprep.subr.mxu0 0.0
    %2435 = vmatpush1.msra.mxu0 0.0
    %2436 = vmatprep.subr.mxu0 0.0
    %2437 = vmatpush1.msra.mxu0 0.0
    %2438 = vmatprep.subr.mxu0 0.0
    %2439 = vmatpush1.msra.mxu0 0.0
    %2440 = vmatprep.subr.mxu0 0.0
    %2441 = vmatpush1.msra.mxu0 0.0
    %2442 = vmatprep.subr.mxu0 0.0
    %2443 = vmatpush1.msra.mxu0 0.0
    %2444 = vmatprep.subr.mxu0 0.0
    %2445 = vmatpush1.msra.mxu0 0.0
    %2446 = vmatprep.mubr.f32.mxu0 0.0
    %2447 = vmatmul.mubr.f32.gmra.mrb[0].mxu0 %v2380
    %v2448 = vpop.f32.mrb[0].mxu0
    %v2449 = vadd.f32 %v272, %v2448
    %v2450 = vpop.f32.mrb[0].mxu0
    %2451 = vdwg.mxu0
    %2452 = vmatprep.subr.mxu0 0.0
    %2453 = vmatpush1.msra.mxu0 %v148
    %2454 = vmatprep.subr.mxu0 0.0
    %2455 = vmatpush1.msra.mxu0 %v149
    %2456 = vmatprep.subr.mxu0 0.0
    %2457 = vmatpush1.msra.mxu0 %v150
    %2458 = vmatprep.subr.mxu0 0.0
    %2459 = vmatpush1.msra.mxu0 %v151
    %2460 = vmatprep.subr.mxu0 0.0
    %2461 = vmatpush1.msra.mxu0 0.0
    %2462 = vmatprep.subr.mxu0 0.0
    %2463 = vmatpush1.msra.mxu0 0.0
    %2464 = vmatprep.subr.mxu0 0.0
    %2465 = vmatpush1.msra.mxu0 0.0
    %2466 = vmatprep.subr.mxu0 0.0
    %2467 = vmatpush1.msra.mxu0 0.0
    %2468 = vmatprep.subr.mxu0 0.0
    %2469 = vmatpush1.msra.mxu0 0.0
    %2470 = vmatprep.subr.mxu0 0.0
    %2471 = vmatpush1.msra.mxu0 0.0
    %2472 = vmatprep.subr.mxu0 0.0
    %2473 = vmatpush1.msra.mxu0 0.0
    %2474 = vmatprep.subr.mxu0 0.0
    %2475 = vmatpush1.msra.mxu0 0.0
    %2476 = vmatprep.subr.mxu0 0.0
    %2477 = vmatpush1.msra.mxu0 0.0
    %2478 = vmatprep.subr.mxu0 0.0
    %2479 = vmatpush1.msra.mxu0 0.0
    %2480 = vmatprep.subr.mxu0 0.0
    %2481 = vmatpush1.msra.mxu0 0.0
    %2482 = vmatprep.subr.mxu0 0.0
    %2483 = vmatpush1.msra.mxu0 0.0
    %2484 = vmatprep.subr.mxu0 0.0
    %2485 = vmatpush1.msra.mxu0 0.0
    %2486 = vmatprep.subr.mxu0 0.0
    %2487 = vmatpush1.msra.mxu0 0.0
    %2488 = vmatprep.subr.mxu0 0.0
    %2489 = vmatpush1.msra.mxu0 0.0
    %2490 = vmatprep.subr.mxu0 0.0
    %2491 = vmatpush1.msra.mxu0 0.0
    %2492 = vmatprep.subr.mxu0 0.0
    %2493 = vmatpush1.msra.mxu0 0.0
    %2494 = vmatprep.subr.mxu0 0.0
    %2495 = vmatpush1.msra.mxu0 0.0
    %2496 = vmatprep.subr.mxu0 0.0
    %2497 = vmatpush1.msra.mxu0 0.0
    %2498 = vmatprep.subr.mxu0 0.0
    %2499 = vmatpush1.msra.mxu0 0.0
    %2500 = vmatprep.subr.mxu0 0.0
    %2501 = vmatpush1.msra.mxu0 0.0
    %2502 = vmatprep.subr.mxu0 0.0
    %2503 = vmatpush1.msra.mxu0 0.0
    %2504 = vmatprep.subr.mxu0 0.0
    %2505 = vmatpush1.msra.mxu0 0.0
    %2506 = vmatprep.subr.mxu0 0.0
    %2507 = vmatpush1.msra.mxu0 0.0
    %2508 = vmatprep.subr.mxu0 0.0
    %2509 = vmatpush1.msra.mxu0 0.0
    %2510 = vmatprep.subr.mxu0 0.0
    %2511 = vmatpush1.msra.mxu0 0.0
    %2512 = vmatprep.subr.mxu0 0.0
    %2513 = vmatpush1.msra.mxu0 0.0
    %2514 = vmatprep.subr.mxu0 0.0
    %2515 = vmatpush1.msra.mxu0 0.0
    %2516 = vmatprep.mubr.f32.mxu0 0.0
    %2517 = vmatmul.mubr.f32.gmra.mrb[0].mxu0 %v2202
    %v2518 = vpop.f32.mrb[0].mxu0
    %v2519 = vadd.f32 0.0, %v2518
    %v2520 = vpop.f32.mrb[0].mxu0
    %2521 = vdwg.mxu0
    %v2522 = vadd.f32 %v2449, %v2519
    %v2523 = vxor.u32 %v2522, 2147483648
    %v2524 = vmul.f32 %v2523, 1.442695
    %v2525 = vpow.pop %v2524
    %v2526 = vadd.f32 %v2525, 1.0
    %v2527 = vrcp.pop %v2526
    %v2528 = vmul.f32 1.0, %v2527
    %v2529 = vmul.f32 %v2528, 2.0
    %v2530 = vsub.f32 %v2529, 1.0
    %v2531 = vmul.f32 %v2528, %v2192
    %2533 = vrot.lane.b32.xlu0 %v2530, 64
    %v2534 = vpop.permute.xlu0 %2533
    %v2536 = vmul.f32 %v2528, %v2534
    %2538 = vrot.lane.b32.xlu0 %v2536, 32
    %v2539 = vpop.permute.xlu0 %2538
    %v2541 = vadd.f32 %v2531, %v2539
    %v2542 = vtanh.pop %v2541
    %2544 = vrot.lane.b32.xlu0 %v2542, 64
    %v2545 = vpop.permute.xlu0 %2544
    %v2547 = vmul.f32 %v2528, %v2545
    %2549 = vrot.lane.b32.xlu0 %v2547, 32
    %v2550 = vpop.permute.xlu0 %2549
    %v2551 = vsel %vm164, %v2550, 0
    %2553 = vmatprep.subr.mxu0 0.0
    %2554 = vmatpush1.msra.mxu0 %v153
    %2555 = vmatprep.subr.mxu0 0.0
    %2556 = vmatpush1.msra.mxu0 %v154
    %2557 = vmatprep.subr.mxu0 0.0
    %2558 = vmatpush1.msra.mxu0 %v155
    %2559 = vmatprep.subr.mxu0 0.0
    %2560 = vmatpush1.msra.mxu0 %v156
    %2561 = vmatprep.subr.mxu0 0.0
    %2562 = vmatpush1.msra.mxu0 0.0
    %2563 = vmatprep.subr.mxu0 0.0
    %2564 = vmatpush1.msra.mxu0 0.0
    %2565 = vmatprep.subr.mxu0 0.0
    %2566 = vmatpush1.msra.mxu0 0.0
    %2567 = vmatprep.subr.mxu0 0.0
    %2568 = vmatpush1.msra.mxu0 0.0
    %2569 = vmatprep.subr.mxu0 0.0
    %2570 = vmatpush1.msra.mxu0 0.0
    %2571 = vmatprep.subr.mxu0 0.0
    %2572 = vmatpush1.msra.mxu0 0.0
    %2573 = vmatprep.subr.mxu0 0.0
    %2574 = vmatpush1.msra.mxu0 0.0
    %2575 = vmatprep.subr.mxu0 0.0
    %2576 = vmatpush1.msra.mxu0 0.0
    %2577 = vmatprep.subr.mxu0 0.0
    %2578 = vmatpush1.msra.mxu0 0.0
    %2579 = vmatprep.subr.mxu0 0.0
    %2580 = vmatpush1.msra.mxu0 0.0
    %2581 = vmatprep.subr.mxu0 0.0
    %2582 = vmatpush1.msra.mxu0 0.0
    %2583 = vmatprep.subr.mxu0 0.0
    %2584 = vmatpush1.msra.mxu0 0.0
    %2585 = vmatprep.subr.mxu0 0.0
    %2586 = vmatpush1.msra.mxu0 0.0
    %2587 = vmatprep.subr.mxu0 0.0
    %2588 = vmatpush1.msra.mxu0 0.0
    %2589 = vmatprep.subr.mxu0 0.0
    %2590 = vmatpush1.msra.mxu0 0.0
    %2591 = vmatprep.subr.mxu0 0.0
    %2592 = vmatpush1.msra.mxu0 0.0
    %2593 = vmatprep.subr.mxu0 0.0
    %2594 = vmatpush1.msra.mxu0 0.0
    %2595 = vmatprep.subr.mxu0 0.0
    %2596 = vmatpush1.msra.mxu0 0.0
    %2597 = vmatprep.subr.mxu0 0.0
    %2598 = vmatpush1.msra.mxu0 0.0
    %2599 = vmatprep.subr.mxu0 0.0
    %2600 = vmatpush1.msra.mxu0 0.0
    %2601 = vmatprep.subr.mxu0 0.0
    %2602 = vmatpush1.msra.mxu0 0.0
    %2603 = vmatprep.subr.mxu0 0.0
    %2604 = vmatpush1.msra.mxu0 0.0
    %2605 = vmatprep.subr.mxu0 0.0
    %2606 = vmatpush1.msra.mxu0 0.0
    %2607 = vmatprep.subr.mxu0 0.0
    %2608 = vmatpush1.msra.mxu0 0.0
    %2609 = vmatprep.subr.mxu0 0.0
    %2610 = vmatpush1.msra.mxu0 0.0
    %2611 = vmatprep.subr.mxu0 0.0
    %2612 = vmatpush1.msra.mxu0 0.0
    %2613 = vmatprep.subr.mxu0 0.0
    %2614 = vmatpush1.msra.mxu0 0.0
    %2615 = vmatprep.subr.mxu0 0.0
    %2616 = vmatpush1.msra.mxu0 0.0
    %2617 = vmatprep.mubr.f32.mxu0 0.0
    %2618 = vmatmul.mubr.f32.gmra.mrb[0].mxu0 %v2551
    %v2619 = vpop.f32.mrb[0].mxu0
    %v2620 = vadd.f32 %v456, %v2619
    %v2621 = vpop.f32.mrb[0].mxu0
    %2622 = vdwg.mxu0
    %2623 = vmatprep.subr.mxu0 0.0
    %2624 = vmatpush1.msra.mxu0 %v140
    %2625 = vmatprep.subr.mxu0 0.0
    %2626 = vmatpush1.msra.mxu0 %v141
    %2627 = vmatprep.subr.mxu0 0.0
    %2628 = vmatpush1.msra.mxu0 %v142
    %2629 = vmatprep.subr.mxu0 0.0
    %2630 = vmatpush1.msra.mxu0 %v143
    %2631 = vmatprep.subr.mxu0 0.0
    %2632 = vmatpush1.msra.mxu0 0.0
    %2633 = vmatprep.subr.mxu0 0.0
    %2634 = vmatpush1.msra.mxu0 0.0
    %2635 = vmatprep.subr.mxu0 0.0
    %2636 = vmatpush1.msra.mxu0 0.0
    %2637 = vmatprep.subr.mxu0 0.0
    %2638 = vmatpush1.msra.mxu0 0.0
    %2639 = vmatprep.subr.mxu0 0.0
    %2640 = vmatpush1.msra.mxu0 0.0
    %2641 = vmatprep.subr.mxu0 0.0
    %2642 = vmatpush1.msra.mxu0 0.0
    %2643 = vmatprep.subr.mxu0 0.0
    %2644 = vmatpush1.msra.mxu0 0.0
    %2645 = vmatprep.subr.mxu0 0.0
    %2646 = vmatpush1.msra.mxu0 0.0
    %2647 = vmatprep.subr.mxu0 0.0
    %2648 = vmatpush1.msra.mxu0 0.0
    %2649 = vmatprep.subr.mxu0 0.0
    %2650 = vmatpush1.msra.mxu0 0.0
    %2651 = vmatprep.subr.mxu0 0.0
    %2652 = vmatpush1.msra.mxu0 0.0
    %2653 = vmatprep.subr.mxu0 0.0
    %2654 = vmatpush1.msra.mxu0 0.0
    %2655 = vmatprep.subr.mxu0 0.0
    %2656 = vmatpush1.msra.mxu0 0.0
    %2657 = vmatprep.subr.mxu0 0.0
    %2658 = vmatpush1.msra.mxu0 0.0
    %2659 = vmatprep.subr.mxu0 0.0
    %2660 = vmatpush1.msra.mxu0 0.0
    %2661 = vmatprep.subr.mxu0 0.0
    %2662 = vmatpush1.msra.mxu0 0.0
    %2663 = vmatprep.subr.mxu0 0.0
    %2664 = vmatpush1.msra.mxu0 0.0
    %2665 = vmatprep.subr.mxu0 0.0
    %2666 = vmatpush1.msra.mxu0 0.0
    %2667 = vmatprep.subr.mxu0 0.0
    %2668 = vmatpush1.msra.mxu0 0.0
    %2669 = vmatprep.subr.mxu0 0.0
    %2670 = vmatpush1.msra.mxu0 0.0
    %2671 = vmatprep.subr.mxu0 0.0
    %2672 = vmatpush1.msra.mxu0 0.0
    %2673 = vmatprep.subr.mxu0 0.0
    %2674 = vmatpush1.msra.mxu0 0.0
    %2675 = vmatprep.subr.mxu0 0.0
    %2676 = vmatpush1.msra.mxu0 0.0
    %2677 = vmatprep.subr.mxu0 0.0
    %2678 = vmatpush1.msra.mxu0 0.0
    %2679 = vmatprep.subr.mxu0 0.0
    %2680 = vmatpush1.msra.mxu0 0.0
    %2681 = vmatprep.subr.mxu0 0.0
    %2682 = vmatpush1.msra.mxu0 0.0
    %2683 = vmatprep.subr.mxu0 0.0
    %2684 = vmatpush1.msra.mxu0 0.0
    %2685 = vmatprep.subr.mxu0 0.0
    %2686 = vmatpush1.msra.mxu0 0.0
    %2687 = vmatprep.mubr.f32.mxu0 0.0
    %2688 = vmatmul.mubr.f32.gmra.mrb[0].mxu0 %v2380
    %v2689 = vpop.f32.mrb[0].mxu0
    %v2690 = vadd.f32 0.0, %v2689
    %v2691 = vpop.f32.mrb[0].mxu0
    %2692 = vdwg.mxu0
    %v2694 = vrot.slane %v2690, 2
    %v2696 = vadd.f32 %v137, %v2694
    %v2697 = vxor.u32 %v2696, 2147483648
    %v2698 = vmul.f32 %v2697, 1.442695
    %v2699 = vpow.pop %v2698
    %v2700 = vadd.f32 %v2699, 1.0
    %v2701 = vrcp.pop %v2700
    %v2702 = vmul.f32 1.0, %v2701
    %v2703 = vmul.f32 %v2702, 2.0
    %v2704 = vsub.f32 %v2703, 1.0
    %v2706 = vrot.slane %v2369, 6
    %v2708 = vmul.f32 %v2702, %v2706
    %2710 = vrot.lane.b32.xlu0 %v2704, 64
    %v2711 = vpop.permute.xlu0 %2710
    %v2713 = vmul.f32 %v2702, %v2711
    %2715 = vrot.lane.b32.xlu0 %v2713, 32
    %v2716 = vpop.permute.xlu0 %2715
    %v2718 = vadd.f32 %v2708, %v2716
    %v2719 = vtanh.pop %v2718
    %2721 = vrot.lane.b32.xlu0 %v2719, 64
    %v2722 = vpop.permute.xlu0 %2721
    %v2724 = vmul.f32 %v2702, %v2722
    %v2726 = vrot.slane %v2724, 6
    %2727 = vrot.lane.b32.xlu0 %v2726, 32
    %v2728 = vpop.permute.xlu0 %2727
    %v2729 = vsel %vm164, %v2728, 0
    %2731 = vmatprep.subr.mxu0 0.0
    %2732 = vmatpush1.msra.mxu0 %v144
    %2733 = vmatprep.subr.mxu0 0.0
    %2734 = vmatpush1.msra.mxu0 %v145
    %2735 = vmatprep.subr.mxu0 0.0
    %2736 = vmatpush1.msra.mxu0 %v146
    %2737 = vmatprep.subr.mxu0 0.0
    %2738 = vmatpush1.msra.mxu0 %v147
    %2739 = vmatprep.subr.mxu0 0.0
    %2740 = vmatpush1.msra.mxu0 0.0
    %2741 = vmatprep.subr.mxu0 0.0
    %2742 = vmatpush1.msra.mxu0 0.0
    %2743 = vmatprep.subr.mxu0 0.0
    %2744 = vmatpush1.msra.mxu0 0.0
    %2745 = vmatprep.subr.mxu0 0.0
    %2746 = vmatpush1.msra.mxu0 0.0
    %2747 = vmatprep.subr.mxu0 0.0
    %2748 = vmatpush1.msra.mxu0 0.0
    %2749 = vmatprep.subr.mxu0 0.0
    %2750 = vmatpush1.msra.mxu0 0.0
    %2751 = vmatprep.subr.mxu0 0.0
    %2752 = vmatpush1.msra.mxu0 0.0
    %2753 = vmatprep.subr.mxu0 0.0
    %2754 = vmatpush1.msra.mxu0 0.0
    %2755 = vmatprep.subr.mxu0 0.0
    %2756 = vmatpush1.msra.mxu0 0.0
    %2757 = vmatprep.subr.mxu0 0.0
    %2758 = vmatpush1.msra.mxu0 0.0
    %2759 = vmatprep.subr.mxu0 0.0
    %2760 = vmatpush1.msra.mxu0 0.0
    %2761 = vmatprep.subr.mxu0 0.0
    %2762 = vmatpush1.msra.mxu0 0.0
    %2763 = vmatprep.subr.mxu0 0.0
    %2764 = vmatpush1.msra.mxu0 0.0
    %2765 = vmatprep.subr.mxu0 0.0
    %2766 = vmatpush1.msra.mxu0 0.0
    %2767 = vmatprep.subr.mxu0 0.0
    %2768 = vmatpush1.msra.mxu0 0.0
    %2769 = vmatprep.subr.mxu0 0.0
    %2770 = vmatpush1.msra.mxu0 0.0
    %2771 = vmatprep.subr.mxu0 0.0
    %2772 = vmatpush1.msra.mxu0 0.0
    %2773 = vmatprep.subr.mxu0 0.0
    %2774 = vmatpush1.msra.mxu0 0.0
    %2775 = vmatprep.subr.mxu0 0.0
    %2776 = vmatpush1.msra.mxu0 0.0
    %2777 = vmatprep.subr.mxu0 0.0
    %2778 = vmatpush1.msra.mxu0 0.0
    %2779 = vmatprep.subr.mxu0 0.0
    %2780 = vmatpush1.msra.mxu0 0.0
    %2781 = vmatprep.subr.mxu0 0.0
    %2782 = vmatpush1.msra.mxu0 0.0
    %2783 = vmatprep.subr.mxu0 0.0
    %2784 = vmatpush1.msra.mxu0 0.0
    %2785 = vmatprep.subr.mxu0 0.0
    %2786 = vmatpush1.msra.mxu0 0.0
    %2787 = vmatprep.subr.mxu0 0.0
    %2788 = vmatpush1.msra.mxu0 0.0
    %2789 = vmatprep.subr.mxu0 0.0
    %2790 = vmatpush1.msra.mxu0 0.0
    %2791 = vmatprep.subr.mxu0 0.0
    %2792 = vmatpush1.msra.mxu0 0.0
    %2793 = vmatprep.subr.mxu0 0.0
    %2794 = vmatpush1.msra.mxu0 0.0
    %2795 = vmatprep.mubr.f32.mxu0 0.0
    %2796 = vmatmul.mubr.f32.gmra.mrb[0].mxu0 %v2729
    %v2797 = vpop.f32.mrb[0].mxu0
    %v2798 = vadd.f32 %v272, %v2797
    %v2799 = vpop.f32.mrb[0].mxu0
    %2800 = vdwg.mxu0
    %2801 = vmatprep.subr.mxu0 0.0
    %2802 = vmatpush1.msra.mxu0 %v148
    %2803 = vmatprep.subr.mxu0 0.0
    %2804 = vmatpush1.msra.mxu0 %v149
    %2805 = vmatprep.subr.mxu0 0.0
    %2806 = vmatpush1.msra.mxu0 %v150
    %2807 = vmatprep.subr.mxu0 0.0
    %2808 = vmatpush1.msra.mxu0 %v151
    %2809 = vmatprep.subr.mxu0 0.0
    %2810 = vmatpush1.msra.mxu0 0.0
    %2811 = vmatprep.subr.mxu0 0.0
    %2812 = vmatpush1.msra.mxu0 0.0
    %2813 = vmatprep.subr.mxu0 0.0
    %2814 = vmatpush1.msra.mxu0 0.0
    %2815 = vmatprep.subr.mxu0 0.0
    %2816 = vmatpush1.msra.mxu0 0.0
    %2817 = vmatprep.subr.mxu0 0.0
    %2818 = vmatpush1.msra.mxu0 0.0
    %2819 = vmatprep.subr.mxu0 0.0
    %2820 = vmatpush1.msra.mxu0 0.0
    %2821 = vmatprep.subr.mxu0 0.0
    %2822 = vmatpush1.msra.mxu0 0.0
    %2823 = vmatprep.subr.mxu0 0.0
    %2824 = vmatpush1.msra.mxu0 0.0
    %2825 = vmatprep.subr.mxu0 0.0
    %2826 = vmatpush1.msra.mxu0 0.0
    %2827 = vmatprep.subr.mxu0 0.0
    %2828 = vmatpush1.msra.mxu0 0.0
    %2829 = vmatprep.subr.mxu0 0.0
    %2830 = vmatpush1.msra.mxu0 0.0
    %2831 = vmatprep.subr.mxu0 0.0
    %2832 = vmatpush1.msra.mxu0 0.0
    %2833 = vmatprep.subr.mxu0 0.0
    %2834 = vmatpush1.msra.mxu0 0.0
    %2835 = vmatprep.subr.mxu0 0.0
    %2836 = vmatpush1.msra.mxu0 0.0
    %2837 = vmatprep.subr.mxu0 0.0
    %2838 = vmatpush1.msra.mxu0 0.0
    %2839 = vmatprep.subr.mxu0 0.0
    %2840 = vmatpush1.msra.mxu0 0.0
    %2841 = vmatprep.subr.mxu0 0.0
    %2842 = vmatpush1.msra.mxu0 0.0
    %2843 = vmatprep.subr.mxu0 0.0
    %2844 = vmatpush1.msra.mxu0 0.0
    %2845 = vmatprep.subr.mxu0 0.0
    %2846 = vmatpush1.msra.mxu0 0.0
    %2847 = vmatprep.subr.mxu0 0.0
    %2848 = vmatpush1.msra.mxu0 0.0
    %2849 = vmatprep.subr.mxu0 0.0
    %2850 = vmatpush1.msra.mxu0 0.0
    %2851 = vmatprep.subr.mxu0 0.0
    %2852 = vmatpush1.msra.mxu0 0.0
    %2853 = vmatprep.subr.mxu0 0.0
    %2854 = vmatpush1.msra.mxu0 0.0
    %2855 = vmatprep.subr.mxu0 0.0
    %2856 = vmatpush1.msra.mxu0 0.0
    %2857 = vmatprep.subr.mxu0 0.0
    %2858 = vmatpush1.msra.mxu0 0.0
    %2859 = vmatprep.subr.mxu0 0.0
    %2860 = vmatpush1.msra.mxu0 0.0
    %2861 = vmatprep.subr.mxu0 0.0
    %2862 = vmatpush1.msra.mxu0 0.0
    %2863 = vmatprep.subr.mxu0 0.0
    %2864 = vmatpush1.msra.mxu0 0.0
    %2865 = vmatprep.mubr.f32.mxu0 0.0
    %2866 = vmatmul.mubr.f32.gmra.mrb[0].mxu0 %v2551
    %v2867 = vpop.f32.mrb[0].mxu0
    %v2868 = vadd.f32 0.0, %v2867
    %v2869 = vpop.f32.mrb[0].mxu0
    %2870 = vdwg.mxu0
    %v2871 = vadd.f32 %v2798, %v2868
    %v2872 = vxor.u32 %v2871, 2147483648
    %v2873 = vmul.f32 %v2872, 1.442695
    %v2874 = vpow.pop %v2873
    %v2875 = vadd.f32 %v2874, 1.0
    %v2876 = vrcp.pop %v2875
    %v2877 = vmul.f32 1.0, %v2876
    %v2878 = vmul.f32 %v2877, 2.0
    %v2879 = vsub.f32 %v2878, 1.0
    %v2880 = vmul.f32 %v2877, %v2541
    %2882 = vrot.lane.b32.xlu0 %v2879, 64
    %v2883 = vpop.permute.xlu0 %2882
    %v2885 = vmul.f32 %v2877, %v2883
    %2887 = vrot.lane.b32.xlu0 %v2885, 32
    %v2888 = vpop.permute.xlu0 %2887
    %v2890 = vadd.f32 %v2880, %v2888
    %v2891 = vtanh.pop %v2890
    %2893 = vrot.lane.b32.xlu0 %v2891, 64
    %v2894 = vpop.permute.xlu0 %2893
    %v2896 = vmul.f32 %v2877, %v2894
    %2898 = vrot.lane.b32.xlu0 %v2896, 32
    %v2899 = vpop.permute.xlu0 %2898
    %v2900 = vsel %vm164, %v2899, 0
    %2902 = vmatprep.subr.mxu0 0.0
    %2903 = vmatpush1.msra.mxu0 %v153
    %2904 = vmatprep.subr.mxu0 0.0
    %2905 = vmatpush1.msra.mxu0 %v154
    %2906 = vmatprep.subr.mxu0 0.0
    %2907 = vmatpush1.msra.mxu0 %v155
    %2908 = vmatprep.subr.mxu0 0.0
    %2909 = vmatpush1.msra.mxu0 %v156
    %2910 = vmatprep.subr.mxu0 0.0
    %2911 = vmatpush1.msra.mxu0 0.0
    %2912 = vmatprep.subr.mxu0 0.0
    %2913 = vmatpush1.msra.mxu0 0.0
    %2914 = vmatprep.subr.mxu0 0.0
    %2915 = vmatpush1.msra.mxu0 0.0
    %2916 = vmatprep.subr.mxu0 0.0
    %2917 = vmatpush1.msra.mxu0 0.0
    %2918 = vmatprep.subr.mxu0 0.0
    %2919 = vmatpush1.msra.mxu0 0.0
    %2920 = vmatprep.subr.mxu0 0.0
    %2921 = vmatpush1.msra.mxu0 0.0
    %2922 = vmatprep.subr.mxu0 0.0
    %2923 = vmatpush1.msra.mxu0 0.0
    %2924 = vmatprep.subr.mxu0 0.0
    %2925 = vmatpush1.msra.mxu0 0.0
    %2926 = vmatprep.subr.mxu0 0.0
    %2927 = vmatpush1.msra.mxu0 0.0
    %2928 = vmatprep.subr.mxu0 0.0
    %2929 = vmatpush1.msra.mxu0 0.0
    %2930 = vmatprep.subr.mxu0 0.0
    %2931 = vmatpush1.msra.mxu0 0.0
    %2932 = vmatprep.subr.mxu0 0.0
    %2933 = vmatpush1.msra.mxu0 0.0
    %2934 = vmatprep.subr.mxu0 0.0
    %2935 = vmatpush1.msra.mxu0 0.0
    %2936 = vmatprep.subr.mxu0 0.0
    %2937 = vmatpush1.msra.mxu0 0.0
    %2938 = vmatprep.subr.mxu0 0.0
    %2939 = vmatpush1.msra.mxu0 0.0
    %2940 = vmatprep.subr.mxu0 0.0
    %2941 = vmatpush1.msra.mxu0 0.0
    %2942 = vmatprep.subr.mxu0 0.0
    %2943 = vmatpush1.msra.mxu0 0.0
    %2944 = vmatprep.subr.mxu0 0.0
    %2945 = vmatpush1.msra.mxu0 0.0
    %2946 = vmatprep.subr.mxu0 0.0
    %2947 = vmatpush1.msra.mxu0 0.0
    %2948 = vmatprep.subr.mxu0 0.0
    %2949 = vmatpush1.msra.mxu0 0.0
    %2950 = vmatprep.subr.mxu0 0.0
    %2951 = vmatpush1.msra.mxu0 0.0
    %2952 = vmatprep.subr.mxu0 0.0
    %2953 = vmatpush1.msra.mxu0 0.0
    %2954 = vmatprep.subr.mxu0 0.0
    %2955 = vmatpush1.msra.mxu0 0.0
    %2956 = vmatprep.subr.mxu0 0.0
    %2957 = vmatpush1.msra.mxu0 0.0
    %2958 = vmatprep.subr.mxu0 0.0
    %2959 = vmatpush1.msra.mxu0 0.0
    %2960 = vmatprep.subr.mxu0 0.0
    %2961 = vmatpush1.msra.mxu0 0.0
    %2962 = vmatprep.subr.mxu0 0.0
    %2963 = vmatpush1.msra.mxu0 0.0
    %2964 = vmatprep.subr.mxu0 0.0
    %2965 = vmatpush1.msra.mxu0 0.0
    %2966 = vmatprep.mubr.f32.mxu0 0.0
    %2967 = vmatmul.mubr.f32.gmra.mrb[0].mxu0 %v2900
    %v2968 = vpop.f32.mrb[0].mxu0
    %v2969 = vadd.f32 %v456, %v2968
    %v2970 = vpop.f32.mrb[0].mxu0
    %2971 = vdwg.mxu0
    %2972 = vrot.lane.b32.xlu0 %v2724, 32
    %v2973 = vpop.permute.xlu0 %2972
    %vm2975 = vcmask 261126
    %2976 = vst.msk [vmem:[#allocation2 - $0x6] sm:$0xc0] %vm2975, %v2973
    %2978 = vrot.lane.b32.xlu0 %v2718, 96
    %v2979 = vpop.permute.xlu0 %2978
    %2981 = vst.msk [vmem:[#allocation4 - $0x6] sm:$0xc0] %vm2975, %v2979
    %s2983 = scalar_lea.vmem [#allocation2], 2
    %vm2984 = vcmask 254976
    %2985 = vst.msk [vmem:[%s2983] sm:$0x3] %vm2984, %v2899
    %2987 = vrot.lane.b32.xlu0 %v2890, 96
    %v2988 = vpop.permute.xlu0 %2987
    %s2990 = scalar_lea.vmem [#allocation4], 2
    %2991 = vst.msk [vmem:[%s2990] sm:$0x3] %vm2984, %v2988
    %2993 = vrot.lane.b32.xlu0 %v879, 16
    %v2994 = vpop.permute.xlu0 %2993
    %2997 = vrot.lane.b32.xlu0 %v1228, 32
    %v2998 = vpop.permute.xlu0 %2997
    %3001 = vrot.lane.b32.xlu0 %v1577, 48
    %v3002 = vpop.permute.xlu0 %3001
    %3005 = vrot.lane.b32.xlu0 %v1922, 64
    %v3006 = vpop.permute.xlu0 %3005
    %3009 = vrot.lane.b32.xlu0 %v2271, 80
    %v3010 = vpop.permute.xlu0 %3009
    %3013 = vrot.lane.b32.xlu0 %v2620, 96
    %v3014 = vpop.permute.xlu0 %3013
    %3017 = vrot.lane.b32.xlu0 %v2969, 112
    %v3018 = vpop.permute.xlu0 %3017
    %vm3020 = vcmask 130048
    %v3021 = vsel %vm3020, %v530, %v2994
    %v3022 = vsel %vm164, %v3021, %v2998
    %v3023 = vsel %vm58, %v3022, %v3002
    %vm3024 = vcmask 523264
    %v3025 = vsel %vm3024, %v3023, %v3006
    %vm3026 = vcmask 654336
    %v3027 = vsel %vm3026, %v3025, %v3010
    %vm3028 = vcmask 785408
    %v3029 = vsel %vm3028, %v3027, %v3014
    %vm3030 = vcmask 916480
    %v3031 = vsel %vm3030, %v3029, %v3018
    %3032 = vst [vmem:[%s11] sm:$0x3] %v3031
    // Predicated region
    $region46: #{decoder_forward.1} parent=1 // pred_check
      _
    $region47: #{decoder_forward.1} parent=1 // pred_check_branch
      %3034 = sbr.rel (0) target = $region49
    $region48: #{decoder_forward.1} parent=1 // pred_region
      _
    $region49: #{decoder_forward.1} parent=1 // pred_fallthru
      _
    // Predicated region
    $region50: #{decoder_forward.1} parent=1 // pred_check
      _
    $region51: #{decoder_forward.1} parent=1 // pred_check_branch
      %3036 = sbr.rel (0) target = $region53
    $region52: #{decoder_forward.1} parent=1 // pred_region
      %s3038 = ssub.s32 64, 64
      %3039 = vsyncadd [#allocation3], %s3038
      %s3040 = sshll.u32 [#allocation2], 4
      %s3041 = int_to_ptr.vmem [resolvable:$true] %s3040
      %3046 = dma.vmem_to_hbm [thread:$0]  %s3041, 64, %s12, [#allocation3], 32, 32, 2
    $region53: #{decoder_forward.1} parent=1 // pred_fallthru
      _
    // Predicated region
    $region54: #{decoder_forward.1} parent=1 // pred_check
      _
    $region55: #{decoder_forward.1} parent=1 // pred_check_branch
      %3048 = sbr.rel (0) target = $region57
    $region56: #{decoder_forward.1} parent=1 // pred_region
      %s3050 = ssub.s32 64, 64
      %3051 = vsyncadd [#allocation5], %s3050
      %s3052 = sshll.u32 [#allocation4], 4
      %s3053 = int_to_ptr.vmem [resolvable:$true] %s3052
      %3058 = dma.vmem_to_hbm [thread:$0]  %s3053, 64, %s13, [#allocation5], 32, 32, 2
    $region57: #{decoder_forward.1} parent=1 // pred_fallthru
      _
    // Predicated region
    $region58: #{decoder_forward.1} parent=1 // pred_check
      _
    $region59: #{decoder_forward.1} parent=1 // pred_check_branch
      %3060 = sbr.rel (0) target = $region61
    $region60: #{decoder_forward.1} parent=1 // pred_region
      _
    $region61: #{decoder_forward.1} parent=1 // pred_fallthru
      _
    // Predicated region
    $region62: #{decoder_forward.1} parent=1 // pred_check
      _
    $region63: #{decoder_forward.1} parent=1 // pred_check_branch
      %3062 = sbr.rel (0) target = $region65
    $region64: #{decoder_forward.1} parent=1 // pred_region
      %3063 = dma.done [#allocation3], 64
    $region65: #{decoder_forward.1} parent=1 // pred_fallthru
      _
    // Predicated region
    $region66: #{decoder_forward.1} parent=1 // pred_check
      _
    $region67: #{decoder_forward.1} parent=1 // pred_check_branch
      %3065 = sbr.rel (0) target = $region69
    $region68: #{decoder_forward.1} parent=1 // pred_region
      %3066 = dma.done [#allocation5], 64
    $region69: #{decoder_forward.1} parent=1 // pred_fallthru
      _
    %3067 = vsyncpa [#allocation3], 1
    %3068 = vsyncpa [#allocation5], 1

</llo_original>
